<compile_context>
chip_gen: v7x
topology: tpu7x:2x2x1
jax: 0.10.0
libtpu: 0.0.40
codegen_flags: <defaults>
</compile_context>

<pallas_src>
import functools

import jax
import jax.numpy as jnp
from jax.experimental import pallas as pl
from jax.experimental.pallas import tpu as pltpu


# --------------------------------------------------------------------------
# Fused Conv3x3 + BN1 + ReLU1 + (pre-shuffle) BN2 + ReLU2 kernel
# --------------------------------------------------------------------------
def _decoder_block_kernel(x_ref, w_ref, s1_ref, b1_ref, s2_ref, b2_ref,
                          o_ref, xpad_ref, *, H, W, Cin, Cmid):
    # x_ref   : (1, H, W, Cin)    bf16 input tile (one batch element)
    # w_ref   : (9, Cin, Cmid)    bf16 conv taps, index = ky*3 + kx
    # s1,b1   : (1, Cmid)         f32 folded BN1 scale / bias
    # s2,b2   : (1, Cmid)         f32 folded BN2 scale / bias (expanded to mid)
    # o_ref   : (1, H, W, Cmid)   f32 fused output (pre-PixelShuffle layout)
    # xpad_ref: (H+2, W+2, Cin)   f32 VMEM scratch, zero-padded input tile

    # Fold the spatial zero-padding into the kernel (no jnp.pad in HBM).
    xpad_ref[...] = jnp.zeros_like(xpad_ref)
    xpad_ref[pl.ds(1, H), pl.ds(1, W), :] = x_ref[0].astype(jnp.float32)

    # Shift-and-accumulate over the 9 taps; accumulator lives in vregs.
    acc = jnp.zeros((H * W, Cmid), jnp.float32)
    for idx in range(9):
        ky, kx = idx // 3, idx % 3
        patch = xpad_ref[pl.ds(ky, H), pl.ds(kx, W), :]
        patch = patch.reshape(H * W, Cin).astype(jnp.bfloat16)
        acc = acc + jnp.dot(patch, w_ref[idx],
                            preferred_element_type=jnp.float32)

    y = jnp.maximum(acc * s1_ref[...] + b1_ref[...], 0.0)   # BN1 + ReLU1
    y = jnp.maximum(y * s2_ref[...] + b2_ref[...], 0.0)     # BN2 + ReLU2
    o_ref[0] = y.reshape(H, W, Cmid)                         # single store


def decoder_block_forward(x_nchw, params, *, eps=1e-5):
    """DecoderBlock forward (pixelshuffle mode, BN_enable=True, eval-mode BN).

    x_nchw: (N, in_channels, H, W) f32.  Returns (N, mid_channels//4, 2H, 2W).
    """
    N, Cin, H, W = x_nchw.shape
    w = params["conv_w"]                                # (Cmid, Cin, 3, 3) OIHW
    Cmid = w.shape[0]
    assert Cmid % 4 == 0, "PixelShuffle(2) needs mid_channels % 4 == 0"
    Cout = Cmid // 4

    # Fold eval-mode BatchNorms into per-channel scale / bias.
    scale1 = params["gamma1"] / jnp.sqrt(params["var1"] + eps)
    bias1 = params["beta1"] - params["mean1"] * scale1
    scale2 = params["gamma2"] / jnp.sqrt(params["var2"] + eps)
    bias2 = params["beta2"] - params["mean2"] * scale2
    # PixelShuffle maps conv channel m -> output channel m // 4, so BN2/ReLU2
    # can be applied before the shuffle with expanded scale / bias.
    s2e = jnp.repeat(scale2, 4)
    b2e = jnp.repeat(bias2, 4)

    x_nhwc = jnp.transpose(x_nchw, (0, 2, 3, 1)).astype(jnp.bfloat16)
    w_k = jnp.transpose(w, (2, 3, 1, 0)).reshape(9, Cin, Cmid)
    w_k = w_k.astype(jnp.bfloat16)

    kernel = functools.partial(_decoder_block_kernel,
                               H=H, W=W, Cin=Cin, Cmid=Cmid)
    t = pl.pallas_call(
        kernel,
        out_shape=jax.ShapeDtypeStruct((N, H, W, Cmid), jnp.float32),
        grid_spec=pltpu.PrefetchScalarGridSpec(
            num_scalar_prefetch=0,
            grid=(N,),
            in_specs=[
                pl.BlockSpec((1, H, W, Cin), lambda n: (n, 0, 0, 0)),
                pl.BlockSpec((9, Cin, Cmid), lambda n: (0, 0, 0)),
                pl.BlockSpec((1, Cmid), lambda n: (0, 0)),
                pl.BlockSpec((1, Cmid), lambda n: (0, 0)),
                pl.BlockSpec((1, Cmid), lambda n: (0, 0)),
                pl.BlockSpec((1, Cmid), lambda n: (0, 0)),
            ],
            out_specs=pl.BlockSpec((1, H, W, Cmid), lambda n: (n, 0, 0, 0)),
            scratch_shapes=[pltpu.VMEM((H + 2, W + 2, Cin), jnp.float32)],
        ),
        compiler_params=pltpu.CompilerParams(
            dimension_semantics=("parallel",)),
    )(x_nhwc, w_k, scale1.reshape(1, Cmid), bias1.reshape(1, Cmid),
      s2e.reshape(1, Cmid), b2e.reshape(1, Cmid))

    # PixelShuffle (pure permutation) fused with the NHWC -> NCHW return
    # transpose; layout plumbing only, keeps the Pallas store lane-dense.
    out = t.reshape(N, H, W, Cout, 2, 2)
    out = jnp.transpose(out, (0, 3, 1, 4, 2, 5))
    return out.reshape(N, Cout, 2 * H, 2 * W)


# --------------------------------------------------------------------------
# Deterministic parameter init + pure-JAX reference (same bf16 inputs)
# --------------------------------------------------------------------------
def init_params(key, in_channels, mid_channels):
    out_channels = mid_channels // 4
    ks = jax.random.split(key, 9)
    return dict(
        conv_w=0.05 * jax.random.normal(
            ks[0], (mid_channels, in_channels, 3, 3), jnp.float32),
        gamma1=1.0 + 0.1 * jax.random.normal(ks[1], (mid_channels,), jnp.float32),
        beta1=0.1 * jax.random.normal(ks[2], (mid_channels,), jnp.float32),
        mean1=0.1 * jax.random.normal(ks[3], (mid_channels,), jnp.float32),
        var1=1.0 + 0.1 * jax.random.uniform(ks[4], (mid_channels,), jnp.float32),
        gamma2=1.0 + 0.1 * jax.random.normal(ks[5], (out_channels,), jnp.float32),
        beta2=0.1 * jax.random.normal(ks[6], (out_channels,), jnp.float32),
        mean2=0.1 * jax.random.normal(ks[7], (out_channels,), jnp.float32),
        var2=1.0 + 0.1 * jax.random.uniform(ks[8], (out_channels,), jnp.float32),
    )


def reference_forward(x_nchw, p, *, eps=1e-5):
    """Pure-JAX reference with the same bf16-cast inputs as the kernel."""
    Cmid = p["conv_w"].shape[0]
    Cout = Cmid // 4
    x = jnp.transpose(x_nchw, (0, 2, 3, 1)).astype(jnp.bfloat16)
    w = jnp.transpose(p["conv_w"], (2, 3, 1, 0)).astype(jnp.bfloat16)  # HWIO
    t = jax.lax.conv_general_dilated(
        x, w, window_strides=(1, 1), padding=((1, 1), (1, 1)),
        dimension_numbers=("NHWC", "HWIO", "NHWC"),
        preferred_element_type=jnp.float32)
    s1 = p["gamma1"] / jnp.sqrt(p["var1"] + eps)
    b1 = p["beta1"] - p["mean1"] * s1
    t = jnp.maximum(t * s1 + b1, 0.0)
    N, H, W, _ = t.shape
    # PixelShuffle(2): NHWC (N,H,W,4*Cout) -> NCHW (N,Cout,2H,2W)
    t = t.reshape(N, H, W, Cout, 2, 2)
    t = jnp.transpose(t, (0, 3, 1, 4, 2, 5)).reshape(N, Cout, 2 * H, 2 * W)
    s2 = (p["gamma2"] / jnp.sqrt(p["var2"] + eps))[None, :, None, None]
    b2 = (p["beta2"] - p["mean2"] * p["gamma2"]
          / jnp.sqrt(p["var2"] + eps))[None, :, None, None]
    return jnp.maximum(t * s2 + b2, 0.0)


if __name__ == "__main__":
    key = jax.random.PRNGKey(0)
    kx, kp = jax.random.split(key)

    # DecoderBlock(in_channels=128, mid_channels=128) -> out_channels = 32
    N, Cin, H, W = 2, 128, 16, 16
    Cmid = 128
    Cout = Cmid // 4

    x = jax.random.normal(kx, (N, Cin, H, W), jnp.float32)
    params = init_params(kp, Cin, Cmid)

    out = decoder_block_forward(x, params)
    ref = reference_forward(x, params)
    jax.block_until_ready((out, ref))

    assert out.shape == (N, Cout, 2 * H, 2 * W), out.shape
    assert bool(jnp.all(jnp.isfinite(out)))
    err = float(jnp.max(jnp.abs(out - ref)))
    assert err < 5e-2, f"max abs err vs reference: {err}"
    print("KERNEL_OK")
</pallas_src>

<mosaic_0001>
module attributes {stable_mosaic.version = 11 : i64} {
  func.func @_decoder_block_kernel(%arg0: i32, %arg1: memref<1x16x16x128xbf16, #tpu.memory_space<vmem>>, %arg2: memref<9x128x128xbf16, #tpu.memory_space<vmem>>, %arg3: memref<1x128xf32, #tpu.memory_space<vmem>>, %arg4: memref<1x128xf32, #tpu.memory_space<vmem>>, %arg5: memref<1x128xf32, #tpu.memory_space<vmem>>, %arg6: memref<1x128xf32, #tpu.memory_space<vmem>>, %arg7: memref<1x16x16x128xf32, #tpu.memory_space<vmem>>, %arg8: memref<18x18x128xf32, #tpu.memory_space<vmem>>) attributes {dimension_semantics = [#tpu.dimension_semantics<parallel>], iteration_bounds = array<i64: 2>, scalar_prefetch = 0 : i64, scratch_operands = 1 : i64, tpu.core_type = #tpu.core_type<tc>, window_params = [{transform_indices = @transform_0, window_bounds = array<i64: 1, 16, 16, 128>}, {pipeline_mode = #tpu.pipeline_mode<synchronous>, transform_indices = @transform_1, window_bounds = array<i64: 9, 128, 128>}, {pipeline_mode = #tpu.pipeline_mode<synchronous>, transform_indices = @transform_2, window_bounds = array<i64: 1, 128>}, {pipeline_mode = #tpu.pipeline_mode<synchronous>, transform_indices = @transform_3, window_bounds = array<i64: 1, 128>}, {pipeline_mode = #tpu.pipeline_mode<synchronous>, transform_indices = @transform_4, window_bounds = array<i64: 1, 128>}, {pipeline_mode = #tpu.pipeline_mode<synchronous>, transform_indices = @transform_5, window_bounds = array<i64: 1, 128>}, {transform_indices = @transform_6, window_bounds = array<i64: 1, 16, 16, 128>}]} {
    %cst = arith.constant 0.000000e+00 : f32
    %0 = vector.broadcast %cst : f32 to vector<18x18x128xf32>
    %c0 = arith.constant 0 : index
    %c0_0 = arith.constant 0 : index
    %c0_1 = arith.constant 0 : index
    %1 = vector.load %arg8[%c0, %c0_0, %c0_1] : memref<18x18x128xf32, #tpu.memory_space<vmem>>, vector<18x18x128xf32>
    tpu.vector_store %arg8[%c0, %c0_0, %c0_1], %0 {strides = array<i32>} : memref<18x18x128xf32, #tpu.memory_space<vmem>>, vector<18x18x128xf32>,
    %c0_2 = arith.constant 0 : index
    %c0_3 = arith.constant 0 : index
    %c0_4 = arith.constant 0 : index
    %c0_5 = arith.constant 0 : index
    %2 = vector.load %arg1[%c0_2, %c0_3, %c0_4, %c0_5] : memref<1x16x16x128xbf16, #tpu.memory_space<vmem>>, vector<1x16x16x128xbf16>
    %3 = vector.shape_cast %2 : vector<1x16x16x128xbf16> to vector<16x16x128xbf16>
    %4 = arith.extf %3 : vector<16x16x128xbf16> to vector<16x16x128xf32>
    %c1 = arith.constant 1 : index
    %c1_6 = arith.constant 1 : index
    %c0_7 = arith.constant 0 : index
    %5 = vector.load %arg8[%c1, %c1_6, %c0_7] : memref<18x18x128xf32, #tpu.memory_space<vmem>>, vector<16x16x128xf32>
    tpu.vector_store %arg8[%c1, %c1_6, %c0_7], %4 {strides = array<i32>} : memref<18x18x128xf32, #tpu.memory_space<vmem>>, vector<16x16x128xf32>,
    %cst_8 = arith.constant 0.000000e+00 : f32
    %6 = vector.broadcast %cst_8 : f32 to vector<256x128xf32>
    %c0_9 = arith.constant 0 : index
    %c0_10 = arith.constant 0 : index
    %c0_11 = arith.constant 0 : index
    %7 = vector.load %arg8[%c0_9, %c0_10, %c0_11] : memref<18x18x128xf32, #tpu.memory_space<vmem>>, vector<16x16x128xf32>
    %8 = vector.shape_cast %7 : vector<16x16x128xf32> to vector<256x128xf32>
    %9 = arith.truncf %8 : vector<256x128xf32> to vector<256x128xbf16>
    %c0_12 = arith.constant 0 : index
    %c0_13 = arith.constant 0 : index
    %c0_14 = arith.constant 0 : index
    %10 = vector.load %arg2[%c0_12, %c0_13, %c0_14] : memref<9x128x128xbf16, #tpu.memory_space<vmem>>, vector<1x128x128xbf16>
    %11 = vector.shape_cast %10 : vector<1x128x128xbf16> to vector<128x128xbf16>
    %cst_15 = arith.constant dense<0.000000e+00> : vector<256x128xf32>
    %12 = tpu.matmul %9, %11, %cst_15 {dimension_numbers = #tpu.dot_dimension_numbers<[1], [0], [0], [1], [0, 0, 1, 1], [], []>} : vector<256x128xbf16>, vector<128x128xbf16>, vector<256x128xf32> -> vector<256x128xf32>
    %13 = arith.addf %6, %12 : vector<256x128xf32>
    %c0_16 = arith.constant 0 : index
    %c1_17 = arith.constant 1 : index
    %c0_18 = arith.constant 0 : index
    %14 = vector.load %arg8[%c0_16, %c1_17, %c0_18] : memref<18x18x128xf32, #tpu.memory_space<vmem>>, vector<16x16x128xf32>
    %15 = vector.shape_cast %14 : vector<16x16x128xf32> to vector<256x128xf32>
    %16 = arith.truncf %15 : vector<256x128xf32> to vector<256x128xbf16>
    %c1_19 = arith.constant 1 : index
    %c0_20 = arith.constant 0 : index
    %c0_21 = arith.constant 0 : index
    %17 = vector.load %arg2[%c1_19, %c0_20, %c0_21] : memref<9x128x128xbf16, #tpu.memory_space<vmem>>, vector<1x128x128xbf16>
    %18 = vector.shape_cast %17 : vector<1x128x128xbf16> to vector<128x128xbf16>
    %cst_22 = arith.constant dense<0.000000e+00> : vector<256x128xf32>
    %19 = tpu.matmul %16, %18, %cst_22 {dimension_numbers = #tpu.dot_dimension_numbers<[1], [0], [0], [1], [0, 0, 1, 1], [], []>} : vector<256x128xbf16>, vector<128x128xbf16>, vector<256x128xf32> -> vector<256x128xf32>
    %20 = arith.addf %13, %19 : vector<256x128xf32>
    %c0_23 = arith.constant 0 : index
    %c2 = arith.constant 2 : index
    %c0_24 = arith.constant 0 : index
    %21 = vector.load %arg8[%c0_23, %c2, %c0_24] : memref<18x18x128xf32, #tpu.memory_space<vmem>>, vector<16x16x128xf32>
    %22 = vector.shape_cast %21 : vector<16x16x128xf32> to vector<256x128xf32>
    %23 = arith.truncf %22 : vector<256x128xf32> to vector<256x128xbf16>
    %c2_25 = arith.constant 2 : index
    %c0_26 = arith.constant 0 : index
    %c0_27 = arith.constant 0 : index
    %24 = vector.load %arg2[%c2_25, %c0_26, %c0_27] : memref<9x128x128xbf16, #tpu.memory_space<vmem>>, vector<1x128x128xbf16>
    %25 = vector.shape_cast %24 : vector<1x128x128xbf16> to vector<128x128xbf16>
    %cst_28 = arith.constant dense<0.000000e+00> : vector<256x128xf32>
    %26 = tpu.matmul %23, %25, %cst_28 {dimension_numbers = #tpu.dot_dimension_numbers<[1], [0], [0], [1], [0, 0, 1, 1], [], []>} : vector<256x128xbf16>, vector<128x128xbf16>, vector<256x128xf32> -> vector<256x128xf32>
    %27 = arith.addf %20, %26 : vector<256x128xf32>
    %c1_29 = arith.constant 1 : index
    %c0_30 = arith.constant 0 : index
    %c0_31 = arith.constant 0 : index
    %28 = vector.load %arg8[%c1_29, %c0_30, %c0_31] : memref<18x18x128xf32, #tpu.memory_space<vmem>>, vector<16x16x128xf32>
    %29 = vector.shape_cast %28 : vector<16x16x128xf32> to vector<256x128xf32>
    %30 = arith.truncf %29 : vector<256x128xf32> to vector<256x128xbf16>
    %c3 = arith.constant 3 : index
    %c0_32 = arith.constant 0 : index
    %c0_33 = arith.constant 0 : index
    %31 = vector.load %arg2[%c3, %c0_32, %c0_33] : memref<9x128x128xbf16, #tpu.memory_space<vmem>>, vector<1x128x128xbf16>
    %32 = vector.shape_cast %31 : vector<1x128x128xbf16> to vector<128x128xbf16>
    %cst_34 = arith.constant dense<0.000000e+00> : vector<256x128xf32>
    %33 = tpu.matmul %30, %32, %cst_34 {dimension_numbers = #tpu.dot_dimension_numbers<[1], [0], [0], [1], [0, 0, 1, 1], [], []>} : vector<256x128xbf16>, vector<128x128xbf16>, vector<256x128xf32> -> vector<256x128xf32>
    %34 = arith.addf %27, %33 : vector<256x128xf32>
    %c1_35 = arith.constant 1 : index
    %c1_36 = arith.constant 1 : index
    %c0_37 = arith.constant 0 : index
    %35 = vector.load %arg8[%c1_35, %c1_36, %c0_37] : memref<18x18x128xf32, #tpu.memory_space<vmem>>, vector<16x16x128xf32>
    %36 = vector.shape_cast %35 : vector<16x16x128xf32> to vector<256x128xf32>
    %37 = arith.truncf %36 : vector<256x128xf32> to vector<256x128xbf16>
    %c4 = arith.constant 4 : index
    %c0_38 = arith.constant 0 : index
    %c0_39 = arith.constant 0 : index
    %38 = vector.load %arg2[%c4, %c0_38, %c0_39] : memref<9x128x128xbf16, #tpu.memory_space<vmem>>, vector<1x128x128xbf16>
    %39 = vector.shape_cast %38 : vector<1x128x128xbf16> to vector<128x128xbf16>
    %cst_40 = arith.constant dense<0.000000e+00> : vector<256x128xf32>
    %40 = tpu.matmul %37, %39, %cst_40 {dimension_numbers = #tpu.dot_dimension_numbers<[1], [0], [0], [1], [0, 0, 1, 1], [], []>} : vector<256x128xbf16>, vector<128x128xbf16>, vector<256x128xf32> -> vector<256x128xf32>
    %41 = arith.addf %34, %40 : vector<256x128xf32>
    %c1_41 = arith.constant 1 : index
    %c2_42 = arith.constant 2 : index
    %c0_43 = arith.constant 0 : index
    %42 = vector.load %arg8[%c1_41, %c2_42, %c0_43] : memref<18x18x128xf32, #tpu.memory_space<vmem>>, vector<16x16x128xf32>
    %43 = vector.shape_cast %42 : vector<16x16x128xf32> to vector<256x128xf32>
    %44 = arith.truncf %43 : vector<256x128xf32> to vector<256x128xbf16>
    %c5 = arith.constant 5 : index
    %c0_44 = arith.constant 0 : index
    %c0_45 = arith.constant 0 : index
    %45 = vector.load %arg2[%c5, %c0_44, %c0_45] : memref<9x128x128xbf16, #tpu.memory_space<vmem>>, vector<1x128x128xbf16>
    %46 = vector.shape_cast %45 : vector<1x128x128xbf16> to vector<128x128xbf16>
    %cst_46 = arith.constant dense<0.000000e+00> : vector<256x128xf32>
    %47 = tpu.matmul %44, %46, %cst_46 {dimension_numbers = #tpu.dot_dimension_numbers<[1], [0], [0], [1], [0, 0, 1, 1], [], []>} : vector<256x128xbf16>, vector<128x128xbf16>, vector<256x128xf32> -> vector<256x128xf32>
    %48 = arith.addf %41, %47 : vector<256x128xf32>
    %c2_47 = arith.constant 2 : index
    %c0_48 = arith.constant 0 : index
    %c0_49 = arith.constant 0 : index
    %49 = vector.load %arg8[%c2_47, %c0_48, %c0_49] : memref<18x18x128xf32, #tpu.memory_space<vmem>>, vector<16x16x128xf32>
    %50 = vector.shape_cast %49 : vector<16x16x128xf32> to vector<256x128xf32>
    %51 = arith.truncf %50 : vector<256x128xf32> to vector<256x128xbf16>
    %c6 = arith.constant 6 : index
    %c0_50 = arith.constant 0 : index
    %c0_51 = arith.constant 0 : index
    %52 = vector.load %arg2[%c6, %c0_50, %c0_51] : memref<9x128x128xbf16, #tpu.memory_space<vmem>>, vector<1x128x128xbf16>
    %53 = vector.shape_cast %52 : vector<1x128x128xbf16> to vector<128x128xbf16>
    %cst_52 = arith.constant dense<0.000000e+00> : vector<256x128xf32>
    %54 = tpu.matmul %51, %53, %cst_52 {dimension_numbers = #tpu.dot_dimension_numbers<[1], [0], [0], [1], [0, 0, 1, 1], [], []>} : vector<256x128xbf16>, vector<128x128xbf16>, vector<256x128xf32> -> vector<256x128xf32>
    %55 = arith.addf %48, %54 : vector<256x128xf32>
    %c2_53 = arith.constant 2 : index
    %c1_54 = arith.constant 1 : index
    %c0_55 = arith.constant 0 : index
    %56 = vector.load %arg8[%c2_53, %c1_54, %c0_55] : memref<18x18x128xf32, #tpu.memory_space<vmem>>, vector<16x16x128xf32>
    %57 = vector.shape_cast %56 : vector<16x16x128xf32> to vector<256x128xf32>
    %58 = arith.truncf %57 : vector<256x128xf32> to vector<256x128xbf16>
    %c7 = arith.constant 7 : index
    %c0_56 = arith.constant 0 : index
    %c0_57 = arith.constant 0 : index
    %59 = vector.load %arg2[%c7, %c0_56, %c0_57] : memref<9x128x128xbf16, #tpu.memory_space<vmem>>, vector<1x128x128xbf16>
    %60 = vector.shape_cast %59 : vector<1x128x128xbf16> to vector<128x128xbf16>
    %cst_58 = arith.constant dense<0.000000e+00> : vector<256x128xf32>
    %61 = tpu.matmul %58, %60, %cst_58 {dimension_numbers = #tpu.dot_dimension_numbers<[1], [0], [0], [1], [0, 0, 1, 1], [], []>} : vector<256x128xbf16>, vector<128x128xbf16>, vector<256x128xf32> -> vector<256x128xf32>
    %62 = arith.addf %55, %61 : vector<256x128xf32>
    %c2_59 = arith.constant 2 : index
    %c2_60 = arith.constant 2 : index
    %c0_61 = arith.constant 0 : index
    %63 = vector.load %arg8[%c2_59, %c2_60, %c0_61] : memref<18x18x128xf32, #tpu.memory_space<vmem>>, vector<16x16x128xf32>
    %64 = vector.shape_cast %63 : vector<16x16x128xf32> to vector<256x128xf32>
    %65 = arith.truncf %64 : vector<256x128xf32> to vector<256x128xbf16>
    %c8 = arith.constant 8 : index
    %c0_62 = arith.constant 0 : index
    %c0_63 = arith.constant 0 : index
    %66 = vector.load %arg2[%c8, %c0_62, %c0_63] : memref<9x128x128xbf16, #tpu.memory_space<vmem>>, vector<1x128x128xbf16>
    %67 = vector.shape_cast %66 : vector<1x128x128xbf16> to vector<128x128xbf16>
    %cst_64 = arith.constant dense<0.000000e+00> : vector<256x128xf32>
    %68 = tpu.matmul %65, %67, %cst_64 {dimension_numbers = #tpu.dot_dimension_numbers<[1], [0], [0], [1], [0, 0, 1, 1], [], []>} : vector<256x128xbf16>, vector<128x128xbf16>, vector<256x128xf32> -> vector<256x128xf32>
    %69 = arith.addf %62, %68 : vector<256x128xf32>
    %c0_65 = arith.constant 0 : index
    %c0_66 = arith.constant 0 : index
    %70 = vector.load %arg3[%c0_65, %c0_66] : memref<1x128xf32, #tpu.memory_space<vmem>>, vector<1x128xf32>
    %71 = vector.broadcast %70 : vector<1x128xf32> to vector<256x128xf32>
    %72 = arith.mulf %69, %71 : vector<256x128xf32>
    %c0_67 = arith.constant 0 : index
    %c0_68 = arith.constant 0 : index
    %73 = vector.load %arg4[%c0_67, %c0_68] : memref<1x128xf32, #tpu.memory_space<vmem>>, vector<1x128xf32>
    %74 = vector.broadcast %73 : vector<1x128xf32> to vector<256x128xf32>
    %75 = arith.addf %72, %74 : vector<256x128xf32>
    %cst_69 = arith.constant 0.000000e+00 : f32
    %76 = vector.broadcast %cst_69 : f32 to vector<256x128xf32>
    %77 = arith.maximumf %75, %76 : vector<256x128xf32>
    %c0_70 = arith.constant 0 : index
    %c0_71 = arith.constant 0 : index
    %78 = vector.load %arg5[%c0_70, %c0_71] : memref<1x128xf32, #tpu.memory_space<vmem>>, vector<1x128xf32>
    %79 = vector.broadcast %78 : vector<1x128xf32> to vector<256x128xf32>
    %80 = arith.mulf %77, %79 : vector<256x128xf32>
    %c0_72 = arith.constant 0 : index
    %c0_73 = arith.constant 0 : index
    %81 = vector.load %arg6[%c0_72, %c0_73] : memref<1x128xf32, #tpu.memory_space<vmem>>, vector<1x128xf32>
    %82 = vector.broadcast %81 : vector<1x128xf32> to vector<256x128xf32>
    %83 = arith.addf %80, %82 : vector<256x128xf32>
    %cst_74 = arith.constant 0.000000e+00 : f32
    %84 = vector.broadcast %cst_74 : f32 to vector<256x128xf32>
    %85 = arith.maximumf %83, %84 : vector<256x128xf32>
    %86 = vector.shape_cast %85 : vector<256x128xf32> to vector<16x16x128xf32>
    %c0_75 = arith.constant 0 : index
    %c0_76 = arith.constant 0 : index
    %c0_77 = arith.constant 0 : index
    %c0_78 = arith.constant 0 : index
    %87 = vector.load %arg7[%c0_75, %c0_76, %c0_77, %c0_78] : memref<1x16x16x128xf32, #tpu.memory_space<vmem>>, vector<1x16x16x128xf32>
    %88 = vector.shape_cast %87 : vector<1x16x16x128xf32> to vector<16x16x128xf32>
    %89 = vector.shape_cast %86 : vector<16x16x128xf32> to vector<1x16x16x128xf32>
    tpu.vector_store %arg7[%c0_75, %c0_76, %c0_77, %c0_78], %89 {strides = array<i32>} : memref<1x16x16x128xf32, #tpu.memory_space<vmem>>, vector<1x16x16x128xf32>,
    return
  }
  func.func @transform_0(%arg0: i32) -> (i32, i32, i32, i32) {
    %c0_i32 = arith.constant 0 : i32
    %c0_i32_0 = arith.constant 0 : i32
    %c0_i32_1 = arith.constant 0 : i32
    %c0_i32_2 = arith.constant 0 : i32
    return %arg0, %c0_i32, %c0_i32_0, %c0_i32_1 : i32, i32, i32, i32
  }
  func.func @transform_1(%arg0: i32) -> (i32, i32, i32) {
    %c0_i32 = arith.constant 0 : i32
    %c0_i32_0 = arith.constant 0 : i32
    %c0_i32_1 = arith.constant 0 : i32
    %c0_i32_2 = arith.constant 0 : i32
    return %c0_i32, %c0_i32_0, %c0_i32_1 : i32, i32, i32
  }
  func.func @transform_2(%arg0: i32) -> (i32, i32) {
    %c0_i32 = arith.constant 0 : i32
    %c0_i32_0 = arith.constant 0 : i32
    %c0_i32_1 = arith.constant 0 : i32
    return %c0_i32, %c0_i32_0 : i32, i32
  }
  func.func @transform_3(%arg0: i32) -> (i32, i32) {
    %c0_i32 = arith.constant 0 : i32
    %c0_i32_0 = arith.constant 0 : i32
    %c0_i32_1 = arith.constant 0 : i32
    return %c0_i32, %c0_i32_0 : i32, i32
  }
  func.func @transform_4(%arg0: i32) -> (i32, i32) {
    %c0_i32 = arith.constant 0 : i32
    %c0_i32_0 = arith.constant 0 : i32
    %c0_i32_1 = arith.constant 0 : i32
    return %c0_i32, %c0_i32_0 : i32, i32
  }
  func.func @transform_5(%arg0: i32) -> (i32, i32) {
    %c0_i32 = arith.constant 0 : i32
    %c0_i32_0 = arith.constant 0 : i32
    %c0_i32_1 = arith.constant 0 : i32
    return %c0_i32, %c0_i32_0 : i32, i32
  }
  func.func @transform_6(%arg0: i32) -> (i32, i32, i32, i32) {
    %c0_i32 = arith.constant 0 : i32
    %c0_i32_0 = arith.constant 0 : i32
    %c0_i32_1 = arith.constant 0 : i32
    %c0_i32_2 = arith.constant 0 : i32
    return %arg0, %c0_i32, %c0_i32_0, %c0_i32_1 : i32, i32, i32, i32
  }
}

</mosaic_0001>

<llo_original>
// kernel: tpu_custom_call.1
$region0: #{tpu_custom_call.1}
  #allocation0 [shape = 'u32[]', space=smem, size = 0x4, offset = 0x4, fixed_abs, tag = 'smem constant byte address 0x4 - core index']
  #allocation1 [shape = 'u32[144,128]{1,0:T(1,128)}', space=vmem, size = 0x12000, scoped, tag = 'internal scratch']
  #allocation2 [shape = 'f32[18,18,128]{2,1,0:T(8,128)}', space=vmem, size = 0x36000, scoped, tag = 'scratch operand']
  %s0 = inlined_call_operand.hbm [shape: bf16[2,16,16,128], index: 0, kind: input, shape index: {}]
  %s1 = inlined_call_operand.hbm [shape: bf16[9,128,128], index: 1, kind: input, shape index: {}]
  %s2 = inlined_call_operand.vmem [shape: f32[1,128], index: 2, kind: input, shape index: {}]
  %s3 = inlined_call_operand.vmem [shape: f32[1,128], index: 3, kind: input, shape index: {}]
  %s4 = inlined_call_operand.vmem [shape: f32[1,128], index: 4, kind: input, shape index: {}]
  %s5 = inlined_call_operand.vmem [shape: f32[1,128], index: 5, kind: input, shape index: {}]
  %s6 = inlined_call_operand.hbm [shape: f32[2,16,16,128], index: 6, kind: output, shape index: {}]
  %s7 = sld [smem:[#allocation0]]
  $region65: #{tpu_custom_call.1} parent=0
    _
  %s9 = ssub.s32 1, %s7
  %s10 = scalar_select 0, %s9, %s7
  $region1: #{tpu_custom_call.1} parent=0
    #allocation3 [shape = 'u8[131072]{0}', space=vmem, size = 0x20000, scoped, tag = 'input window, operand 0']
    #allocation4 [shape = 's32[2]{0}', space=sflag, size = 0x8, scoped, tag = 'scoped memory for tpu_custom_call.1']
    #allocation5 [shape = 's32[2]{0}', space=sflag, size = 0x8, scoped, tag = 'scoped memory for tpu_custom_call.1']
    #allocation6 [shape = 'u8[294912]{0}', space=vmem, size = 0x48000, scoped, tag = 'input window, operand 1, single buffered']
    #allocation7 [shape = 's32[1]{0}', space=sflag, size = 0x4, scoped, tag = 'scoped memory for tpu_custom_call.1']
    #allocation8 [shape = 'u8[262144]{0}', space=vmem, size = 0x40000, scoped, tag = 'output window, operand 0']
    %11 = vsyncpa [#allocation4], 0
    %s12 = scalar_lea.sflag [#allocation4], 1
    %13 = vsyncpa %s12, 0
    %14 = vsyncpa [#allocation7], 0
    %15 = vsyncpa [#allocation5], 0
    %s16 = scalar_lea.sflag [#allocation5], 1
    %17 = vsyncpa %s16, 0
    loop: start=0, step=1, limit=4
    $region2: #{tpu_custom_call.1} parent=1 // loop_pre_header
      _
    $region3: #{tpu_custom_call.1} parent=1 // loop_header
      %s19 = sphi 0, %s23
      %p20 = scmp.ge.s32.totalorder %s19, 4
      %s29 = sphi 0, %s31
      %s32 = sphi 0, %s29
      %s33 = sphi 0, %s32
      %s49 = sphi 0, %s33
      %s53 = sphi 0, %s53
      %s55 = sphi 0, %s53
      %s56 = sphi 0, %s55
      %s70 = sphi 0, %s56
      %s74 = sphi 0, %s74
      %s76 = sphi 0, %s74
      %s77 = sphi 0, %s76
      %s91 = sphi 0, %s77
      %s95 = sphi 0, %s95
      %s97 = sphi 0, %s95
      %s98 = sphi 0, %s97
      %s112 = sphi 0, %s98
      %s116 = sphi 0, %s116
      %s118 = sphi 0, %s116
      %s119 = sphi 0, %s118
      %s133 = sphi 0, %s119
      %s137 = sphi 0, %s137
      %s139 = sphi 0, %s137
      %s140 = sphi 0, %s139
      %s154 = sphi 0, %s140
      %s160 = sphi 0, %s162
      %s163 = sphi 0, %s160
      %s164 = sphi 0, %s163
      %s180 = sphi 0, %s164
    $region4: #{tpu_custom_call.1} parent=1 // loop_header_branch
      %22 = sbr.rel (%p20) target = $region8
    $region5: #{tpu_custom_call.1} parent=1 // loop_body
      %s24 = ssub.s32 %s19, 1
      %s25 = ssub.s32 %s19, 2
      %s26 = sadd.s32 %s19, 1
      %s27 = ssub.s32 %s19, %s26
      %p28 = scmp.eq.s32.totalorder %s27, 0
      %s30 = sadd.s32 %s29, 1
      %s31 = scalar_select %p28, %s29, %s30
      %p34 = pneg %p28
      %p35 = scmp.eq.s32.totalorder %s19, 1
      %p36 = por %p34, %p35
      %p37 = scmp.ne.s32.totalorder %s29, %s32
      %p38 = scmp.eq.s32.totalorder %s19, 0
      %p39 = por %p37, %p38
      %p40 = scmp.ne.s32.totalorder %s29, %s32
      %p41 = scmp.eq.s32.totalorder %s24, 1
      %p42 = por %p40, %p41
      %p43 = scmp.ne.s32.totalorder %s32, %s33
      %p44 = scmp.eq.s32.totalorder %s24, 0
      %p45 = por %p43, %p44
      %p46 = scmp.ne.s32.totalorder %s32, %s33
      %p47 = scmp.eq.s32.totalorder %s25, 1
      %p48 = por %p46, %p47
      %p50 = scmp.ne.s32.totalorder %s33, %s49
      %p51 = scmp.eq.s32.totalorder %s25, 0
      %p52 = por %p50, %p51
      %s54 = sadd.s32 %s53, 1
      %p57 = scmp.eq.s32.totalorder %s19, 1
      %p58 = scmp.ne.s32.totalorder %s53, %s55
      %p59 = scmp.eq.s32.totalorder %s19, 0
      %p60 = por %p58, %p59
      %p61 = scmp.ne.s32.totalorder %s53, %s55
      %p62 = scmp.eq.s32.totalorder %s24, 1
      %p63 = por %p61, %p62
      %p64 = scmp.ne.s32.totalorder %s55, %s56
      %p65 = scmp.eq.s32.totalorder %s24, 0
      %p66 = por %p64, %p65
      %p67 = scmp.ne.s32.totalorder %s55, %s56
      %p68 = scmp.eq.s32.totalorder %s25, 1
      %p69 = por %p67, %p68
      %p71 = scmp.ne.s32.totalorder %s56, %s70
      %p72 = scmp.eq.s32.totalorder %s25, 0
      %p73 = por %p71, %p72
      %s75 = sadd.s32 %s74, 1
      %p78 = scmp.eq.s32.totalorder %s19, 1
      %p79 = scmp.ne.s32.totalorder %s74, %s76
      %p80 = scmp.eq.s32.totalorder %s19, 0
      %p81 = por %p79, %p80
      %p82 = scmp.ne.s32.totalorder %s74, %s76
      %p83 = scmp.eq.s32.totalorder %s24, 1
      %p84 = por %p82, %p83
      %p85 = scmp.ne.s32.totalorder %s76, %s77
      %p86 = scmp.eq.s32.totalorder %s24, 0
      %p87 = por %p85, %p86
      %p88 = scmp.ne.s32.totalorder %s76, %s77
      %p89 = scmp.eq.s32.totalorder %s25, 1
      %p90 = por %p88, %p89
      %p92 = scmp.ne.s32.totalorder %s77, %s91
      %p93 = scmp.eq.s32.totalorder %s25, 0
      %p94 = por %p92, %p93
      %s96 = sadd.s32 %s95, 1
      %p99 = scmp.eq.s32.totalorder %s19, 1
      %p100 = scmp.ne.s32.totalorder %s95, %s97
      %p101 = scmp.eq.s32.totalorder %s19, 0
      %p102 = por %p100, %p101
      %p103 = scmp.ne.s32.totalorder %s95, %s97
      %p104 = scmp.eq.s32.totalorder %s24, 1
      %p105 = por %p103, %p104
      %p106 = scmp.ne.s32.totalorder %s97, %s98
      %p107 = scmp.eq.s32.totalorder %s24, 0
      %p108 = por %p106, %p107
      %p109 = scmp.ne.s32.totalorder %s97, %s98
      %p110 = scmp.eq.s32.totalorder %s25, 1
      %p111 = por %p109, %p110
      %p113 = scmp.ne.s32.totalorder %s98, %s112
      %p114 = scmp.eq.s32.totalorder %s25, 0
      %p115 = por %p113, %p114
      %s117 = sadd.s32 %s116, 1
      %p120 = scmp.eq.s32.totalorder %s19, 1
      %p121 = scmp.ne.s32.totalorder %s116, %s118
      %p122 = scmp.eq.s32.totalorder %s19, 0
      %p123 = por %p121, %p122
      %p124 = scmp.ne.s32.totalorder %s116, %s118
      %p125 = scmp.eq.s32.totalorder %s24, 1
      %p126 = por %p124, %p125
      %p127 = scmp.ne.s32.totalorder %s118, %s119
      %p128 = scmp.eq.s32.totalorder %s24, 0
      %p129 = por %p127, %p128
      %p130 = scmp.ne.s32.totalorder %s118, %s119
      %p131 = scmp.eq.s32.totalorder %s25, 1
      %p132 = por %p130, %p131
      %p134 = scmp.ne.s32.totalorder %s119, %s133
      %p135 = scmp.eq.s32.totalorder %s25, 0
      %p136 = por %p134, %p135
      %s138 = sadd.s32 %s137, 1
      %p141 = scmp.eq.s32.totalorder %s19, 1
      %p142 = scmp.ne.s32.totalorder %s137, %s139
      %p143 = scmp.eq.s32.totalorder %s19, 0
      %p144 = por %p142, %p143
      %p145 = scmp.ne.s32.totalorder %s137, %s139
      %p146 = scmp.eq.s32.totalorder %s24, 1
      %p147 = por %p145, %p146
      %p148 = scmp.ne.s32.totalorder %s139, %s140
      %p149 = scmp.eq.s32.totalorder %s24, 0
      %p150 = por %p148, %p149
      %p151 = scmp.ne.s32.totalorder %s139, %s140
      %p152 = scmp.eq.s32.totalorder %s25, 1
      %p153 = por %p151, %p152
      %p155 = scmp.ne.s32.totalorder %s140, %s154
      %p156 = scmp.eq.s32.totalorder %s25, 0
      %p157 = por %p155, %p156
      %s158 = ssub.s32 %s19, %s26
      %p159 = scmp.eq.s32.totalorder %s158, 0
      %s161 = sadd.s32 %s160, 1
      %s162 = scalar_select %p159, %s160, %s161
      %p165 = pneg %p159
      %p166 = scmp.eq.s32.totalorder %s19, 1
      %p167 = por %p165, %p166
      %p168 = scmp.ne.s32.totalorder %s160, %s163
      %p169 = scmp.eq.s32.totalorder %s19, 0
      %p170 = por %p168, %p169
      %p171 = scmp.ne.s32.totalorder %s160, %s163
      %p172 = scmp.eq.s32.totalorder %s24, 1
      %p173 = por %p171, %p172
      %p174 = scmp.ne.s32.totalorder %s163, %s164
      %p175 = scmp.eq.s32.totalorder %s24, 0
      %p176 = por %p174, %p175
      %p177 = scmp.ne.s32.totalorder %s163, %s164
      %p178 = scmp.eq.s32.totalorder %s25, 1
      %p179 = por %p177, %p178
      %p181 = scmp.ne.s32.totalorder %s164, %s180
      %p182 = scmp.eq.s32.totalorder %s25, 0
      %p183 = por %p181, %p182
      %p184 = scmp.le.s32.totalorder 1, %s19
      %p185 = scmp.lt.s32.totalorder %s19, 3
      %p186 = pnand %p184, %p185
      %p187 = pneg %p186
      // Predicated region
      $region9: #{tpu_custom_call.1} parent=5 // pred_check
        _
      $region10: #{tpu_custom_call.1} parent=5 // pred_check_branch
        %189 = sbr.rel (%p186) target = $region12
      $region11: #{tpu_custom_call.1} parent=5 // pred_region
        %s190 = ssub.s32 %s19, 1
        // Predicated region
        $region13: #{tpu_custom_call.1} parent=11 // pred_check
          %p191 = pneg %p66
        $region14: #{tpu_custom_call.1} parent=11 // pred_check_branch
          %193 = sbr.rel (%p191) target = $region16
        $region15: #{tpu_custom_call.1} parent=11 // pred_region
          %s195 = ssub.s32 9216, 9216
          %196 = vsyncadd [#allocation7], %s195
          %s197 = sshll.u32 [#allocation6], 4
          %s198 = int_to_ptr.vmem [resolvable:$true] %s197
          %203 = dma.hbm_to_vmem [thread:$0]  %s1, 9216, %s198, [#allocation7], 64, 64, 4
        $region16: #{tpu_custom_call.1} parent=11 // pred_fallthru
          _
        // Predicated region
        $region17: #{tpu_custom_call.1} parent=11 // pred_check
          %p204 = pneg %p87
        $region18: #{tpu_custom_call.1} parent=11 // pred_check_branch
          %206 = sbr.rel (%p204) target = $region20
        $region19: #{tpu_custom_call.1} parent=11 // pred_region
          _
        $region20: #{tpu_custom_call.1} parent=11 // pred_fallthru
          _
        // Predicated region
        $region21: #{tpu_custom_call.1} parent=11 // pred_check
          %p207 = pneg %p108
        $region22: #{tpu_custom_call.1} parent=11 // pred_check_branch
          %209 = sbr.rel (%p207) target = $region24
        $region23: #{tpu_custom_call.1} parent=11 // pred_region
          _
        $region24: #{tpu_custom_call.1} parent=11 // pred_fallthru
          _
        // Predicated region
        $region25: #{tpu_custom_call.1} parent=11 // pred_check
          %p210 = pneg %p129
        $region26: #{tpu_custom_call.1} parent=11 // pred_check_branch
          %212 = sbr.rel (%p210) target = $region28
        $region27: #{tpu_custom_call.1} parent=11 // pred_region
          _
        $region28: #{tpu_custom_call.1} parent=11 // pred_fallthru
          _
        // Predicated region
        $region29: #{tpu_custom_call.1} parent=11 // pred_check
          %p213 = pneg %p150
        $region30: #{tpu_custom_call.1} parent=11 // pred_check_branch
          %215 = sbr.rel (%p213) target = $region32
        $region31: #{tpu_custom_call.1} parent=11 // pred_region
          _
        $region32: #{tpu_custom_call.1} parent=11 // pred_fallthru
          _
      $region12: #{tpu_custom_call.1} parent=5 // pred_fallthru
        _
      %p216 = scmp.lt.s32.totalorder %s19, 2
      // Predicated region
      $region33: #{tpu_custom_call.1} parent=5 // pred_check
        %p217 = pneg %p216
      $region34: #{tpu_custom_call.1} parent=5 // pred_check_branch
        %219 = sbr.rel (%p217) target = $region36
      $region35: #{tpu_custom_call.1} parent=5 // pred_region
        // Predicated region
        $region37: #{tpu_custom_call.1} parent=35 // pred_check
          %p220 = pneg %p39
        $region38: #{tpu_custom_call.1} parent=35 // pred_check_branch
          %222 = sbr.rel (%p220) target = $region40
        $region39: #{tpu_custom_call.1} parent=35 // pred_region
          %s223 = sand.u32 %s29, 1
          %s224 = scalar_lea.sflag [#allocation4], %s223
          %s225 = sand.u32 %s29, 1
          %s226 = smul.addr %s225, 128
          %s227 = scalar_lea.vmem [#allocation3], %s226
          %s229 = ssub.s32 2048, 2048
          %230 = vsyncadd %s224, %s229
          %s231 = smul.addr %s19, 32
          %s232 = smul.addr %s231, 64
          %s233 = scalar_lea.hbm %s0, %s232
          %s234 = sshll.u32 %s227, 4
          %s235 = int_to_ptr.vmem [resolvable:$true] %s234
          %240 = dma.hbm_to_vmem [thread:$0]  %s233, 2048, %s235, %s224, 64, 64, 4
        $region40: #{tpu_custom_call.1} parent=35 // pred_fallthru
          _
      $region36: #{tpu_custom_call.1} parent=5 // pred_fallthru
        _
      %p241 = scmp.le.s32.totalorder 1, %s19
      %p242 = scmp.lt.s32.totalorder %s19, 3
      %p243 = pnand %p241, %p242
      %p244 = pneg %p243
      // Predicated region
      $region41: #{tpu_custom_call.1} parent=5 // pred_check
        _
      $region42: #{tpu_custom_call.1} parent=5 // pred_check_branch
        %246 = sbr.rel (%p243) target = $region44
      $region43: #{tpu_custom_call.1} parent=5 // pred_region
        %s247 = ssub.s32 %s19, 1
        %s248 = sand.u32 %s32, 1
        %s249 = scalar_lea.sflag [#allocation4], %s248
        %s250 = sand.u32 %s32, 1
        %s251 = smul.addr %s250, 128
        %s252 = scalar_lea.vmem [#allocation3], %s251
        // Predicated region
        $region45: #{tpu_custom_call.1} parent=43 // pred_check
          %p253 = pneg %p45
        $region46: #{tpu_custom_call.1} parent=43 // pred_check_branch
          %255 = sbr.rel (%p253) target = $region48
        $region47: #{tpu_custom_call.1} parent=43 // pred_region
          %256 = dma.done %s249, 2048
        $region48: #{tpu_custom_call.1} parent=43 // pred_fallthru
          _
        // Predicated region
        $region49: #{tpu_custom_call.1} parent=43 // pred_check
          %p257 = pneg %p66
        $region50: #{tpu_custom_call.1} parent=43 // pred_check_branch
          %259 = sbr.rel (%p257) target = $region52
        $region51: #{tpu_custom_call.1} parent=43 // pred_region
          %260 = dma.done [#allocation7], 9216
        $region52: #{tpu_custom_call.1} parent=43 // pred_fallthru
          _
        %s261 = sand.u32 %s32, 1
        %s262 = scalar_lea.sflag [#allocation4], %s261
        %s263 = sand.u32 %s32, 1
        %s264 = smul.addr %s263, 128
        %s265 = scalar_lea.vmem [#allocation3], %s264
        %p266 = pneg %p45
        %p267 = pneg %p42
        %p268 = pneg %p66
        %p269 = pneg %p63
        %p270 = pneg %p87
        %p271 = pneg %p84
        %p272 = pneg %p108
        %p273 = pneg %p105
        %p274 = pneg %p129
        %p275 = pneg %p126
        %p276 = pneg %p150
        %p277 = pneg %p147
        %p278 = pneg %p176
        %p279 = pneg %p173
        %s280 = sand.u32 %s163, 1
        %s281 = scalar_lea.sflag [#allocation5], %s280
        %s282 = sand.u32 %s163, 1
        %s283 = smul.addr %s282, 256
        %s284 = scalar_lea.vmem [#allocation8], %s283
        %286 = vst [vmem:[#allocation2] sm:$0xff] 0.0
        %287 = vst [vmem:[#allocation2 + $0x8] sm:$0xff] 0.0
        %288 = vst [vmem:[#allocation2 + $0x10] sm:$0x3] 0.0
        %289 = vst [vmem:[#allocation2 + $0x18] sm:$0xff] 0.0
        %290 = vst [vmem:[#allocation2 + $0x20] sm:$0xff] 0.0
        %291 = vst [vmem:[#allocation2 + $0x28] sm:$0x3] 0.0
        %292 = vst [vmem:[#allocation2 + $0x30] sm:$0xff] 0.0
        %293 = vst [vmem:[#allocation2 + $0x38] sm:$0xff] 0.0
        %294 = vst [vmem:[#allocation2 + $0x40] sm:$0x3] 0.0
        %295 = vst [vmem:[#allocation2 + $0x48] sm:$0xff] 0.0
        %296 = vst [vmem:[#allocation2 + $0x50] sm:$0xff] 0.0
        %297 = vst [vmem:[#allocation2 + $0x58] sm:$0x3] 0.0
        %298 = vst [vmem:[#allocation2 + $0x60] sm:$0xff] 0.0
        %299 = vst [vmem:[#allocation2 + $0x68] sm:$0xff] 0.0
        %300 = vst [vmem:[#allocation2 + $0x70] sm:$0x3] 0.0
        %301 = vst [vmem:[#allocation2 + $0x78] sm:$0xff] 0.0
        %302 = vst [vmem:[#allocation2 + $0x80] sm:$0xff] 0.0
        %303 = vst [vmem:[#allocation2 + $0x88] sm:$0x3] 0.0
        %304 = vst [vmem:[#allocation2 + $0x90] sm:$0xff] 0.0
        %305 = vst [vmem:[#allocation2 + $0x98] sm:$0xff] 0.0
        %306 = vst [vmem:[#allocation2 + $0xa0] sm:$0x3] 0.0
        %307 = vst [vmem:[#allocation2 + $0xa8] sm:$0xff] 0.0
        %308 = vst [vmem:[#allocation2 + $0xb0] sm:$0xff] 0.0
        %309 = vst [vmem:[#allocation2 + $0xb8] sm:$0x3] 0.0
        %310 = vst [vmem:[#allocation2 + $0xc0] sm:$0xff] 0.0
        %311 = vst [vmem:[#allocation2 + $0xc8] sm:$0xff] 0.0
        %312 = vst [vmem:[#allocation2 + $0xd0] sm:$0x3] 0.0
        %313 = vst [vmem:[#allocation2 + $0xd8] sm:$0xff] 0.0
        %314 = vst [vmem:[#allocation2 + $0xe0] sm:$0xff] 0.0
        %315 = vst [vmem:[#allocation2 + $0xe8] sm:$0x3] 0.0
        %316 = vst [vmem:[#allocation2 + $0xf0] sm:$0xff] 0.0
        %317 = vst [vmem:[#allocation2 + $0xf8] sm:$0xff] 0.0
        %318 = vst [vmem:[#allocation2 + $0x100] sm:$0x3] 0.0
        %319 = vst [vmem:[#allocation2 + $0x108] sm:$0xff] 0.0
        %320 = vst [vmem:[#allocation2 + $0x110] sm:$0xff] 0.0
        %321 = vst [vmem:[#allocation2 + $0x118] sm:$0x3] 0.0
        %322 = vst [vmem:[#allocation2 + $0x120] sm:$0xff] 0.0
        %323 = vst [vmem:[#allocation2 + $0x128] sm:$0xff] 0.0
        %324 = vst [vmem:[#allocation2 + $0x130] sm:$0x3] 0.0
        %325 = vst [vmem:[#allocation2 + $0x138] sm:$0xff] 0.0
        %326 = vst [vmem:[#allocation2 + $0x140] sm:$0xff] 0.0
        %327 = vst [vmem:[#allocation2 + $0x148] sm:$0x3] 0.0
        %328 = vst [vmem:[#allocation2 + $0x150] sm:$0xff] 0.0
        %329 = vst [vmem:[#allocation2 + $0x158] sm:$0xff] 0.0
        %330 = vst [vmem:[#allocation2 + $0x160] sm:$0x3] 0.0
        %331 = vst [vmem:[#allocation2 + $0x168] sm:$0xff] 0.0
        %332 = vst [vmem:[#allocation2 + $0x170] sm:$0xff] 0.0
        %333 = vst [vmem:[#allocation2 + $0x178] sm:$0x3] 0.0
        %334 = vst [vmem:[#allocation2 + $0x180] sm:$0xff] 0.0
        %335 = vst [vmem:[#allocation2 + $0x188] sm:$0xff] 0.0
        %336 = vst [vmem:[#allocation2 + $0x190] sm:$0x3] 0.0
        %337 = vst [vmem:[#allocation2 + $0x198] sm:$0xff] 0.0
        %338 = vst [vmem:[#allocation2 + $0x1a0] sm:$0xff] 0.0
        %339 = vst [vmem:[#allocation2 + $0x1a8] sm:$0x3] 0.0
        %v340 = vld [vmem:[%s252] sm:$0xf]
        %v341 = vld [vmem:[%s252 + $0x4] sm:$0xf]
        %v342 = vld [vmem:[%s252 + $0x8] sm:$0xf]
        %v343 = vld [vmem:[%s252 + $0xc] sm:$0xf]
        %v344 = vld [vmem:[%s252 + $0x10] sm:$0xf]
        %v345 = vld [vmem:[%s252 + $0x14] sm:$0xf]
        %v346 = vld [vmem:[%s252 + $0x18] sm:$0xf]
        %v347 = vld [vmem:[%s252 + $0x1c] sm:$0xf]
        %v348 = vld [vmem:[%s252 + $0x20] sm:$0xf]
        %v349 = vld [vmem:[%s252 + $0x24] sm:$0xf]
        %v350 = vld [vmem:[%s252 + $0x28] sm:$0xf]
        %v351 = vld [vmem:[%s252 + $0x2c] sm:$0xf]
        %v352 = vld [vmem:[%s252 + $0x30] sm:$0xf]
        %v353 = vld [vmem:[%s252 + $0x34] sm:$0xf]
        %v354 = vld [vmem:[%s252 + $0x38] sm:$0xf]
        %v355 = vld [vmem:[%s252 + $0x3c] sm:$0xf]
        %v356 = vld [vmem:[%s252 + $0x40] sm:$0xf]
        %v357 = vld [vmem:[%s252 + $0x44] sm:$0xf]
        %v358 = vld [vmem:[%s252 + $0x48] sm:$0xf]
        %v359 = vld [vmem:[%s252 + $0x4c] sm:$0xf]
        %v360 = vld [vmem:[%s252 + $0x50] sm:$0xf]
        %v361 = vld [vmem:[%s252 + $0x54] sm:$0xf]
        %v362 = vld [vmem:[%s252 + $0x58] sm:$0xf]
        %v363 = vld [vmem:[%s252 + $0x5c] sm:$0xf]
        %v364 = vld [vmem:[%s252 + $0x60] sm:$0xf]
        %v365 = vld [vmem:[%s252 + $0x64] sm:$0xf]
        %v366 = vld [vmem:[%s252 + $0x68] sm:$0xf]
        %v367 = vld [vmem:[%s252 + $0x6c] sm:$0xf]
        %v368 = vld [vmem:[%s252 + $0x70] sm:$0xf]
        %v369 = vld [vmem:[%s252 + $0x74] sm:$0xf]
        %v370 = vld [vmem:[%s252 + $0x78] sm:$0xf]
        %v371 = vld [vmem:[%s252 + $0x7c] sm:$0xf]
        %v372 = vunpack.c.l.bf16 %v340
        %v373 = vunpack.c.l.bf16 %v341
        %v374 = vunpack.c.l.bf16 %v342
        %v375 = vunpack.c.l.bf16 %v343
        %v376 = vunpack.c.l.bf16 %v344
        %v377 = vunpack.c.l.bf16 %v345
        %v378 = vunpack.c.l.bf16 %v346
        %v379 = vunpack.c.l.bf16 %v347
        %v380 = vunpack.c.l.bf16 %v348
        %v381 = vunpack.c.l.bf16 %v349
        %v382 = vunpack.c.l.bf16 %v350
        %v383 = vunpack.c.l.bf16 %v351
        %v384 = vunpack.c.l.bf16 %v352
        %v385 = vunpack.c.l.bf16 %v353
        %v386 = vunpack.c.l.bf16 %v354
        %v387 = vunpack.c.l.bf16 %v355
        %v388 = vunpack.c.l.bf16 %v356
        %v389 = vunpack.c.l.bf16 %v357
        %v390 = vunpack.c.l.bf16 %v358
        %v391 = vunpack.c.l.bf16 %v359
        %v392 = vunpack.c.l.bf16 %v360
        %v393 = vunpack.c.l.bf16 %v361
        %v394 = vunpack.c.l.bf16 %v362
        %v395 = vunpack.c.l.bf16 %v363
        %v396 = vunpack.c.l.bf16 %v364
        %v397 = vunpack.c.l.bf16 %v365
        %v398 = vunpack.c.l.bf16 %v366
        %v399 = vunpack.c.l.bf16 %v367
        %v400 = vunpack.c.l.bf16 %v368
        %v401 = vunpack.c.l.bf16 %v369
        %v402 = vunpack.c.l.bf16 %v370
        %v403 = vunpack.c.l.bf16 %v371
        %s404 = scalar_lea.vmem [#allocation2], 24
        %405 = vst [vmem:[%s404 + $0x1] sm:$0xff] %v372
        %406 = vst [vmem:[%s404 + $0x9] sm:$0xff] %v373
        %407 = vst [vmem:[%s404 + $0x19] sm:$0xff] %v374
        %408 = vst [vmem:[%s404 + $0x21] sm:$0xff] %v375
        %409 = vst [vmem:[%s404 + $0x31] sm:$0xff] %v376
        %410 = vst [vmem:[%s404 + $0x39] sm:$0xff] %v377
        %411 = vst [vmem:[%s404 + $0x49] sm:$0xff] %v378
        %412 = vst [vmem:[%s404 + $0x51] sm:$0xff] %v379
        %413 = vst [vmem:[%s404 + $0x61] sm:$0xff] %v380
        %414 = vst [vmem:[%s404 + $0x69] sm:$0xff] %v381
        %415 = vst [vmem:[%s404 + $0x79] sm:$0xff] %v382
        %416 = vst [vmem:[%s404 + $0x81] sm:$0xff] %v383
        %417 = vst [vmem:[%s404 + $0x91] sm:$0xff] %v384
        %418 = vst [vmem:[%s404 + $0x99] sm:$0xff] %v385
        %419 = vst [vmem:[%s404 + $0xa9] sm:$0xff] %v386
        %420 = vst [vmem:[%s404 + $0xb1] sm:$0xff] %v387
        %421 = vst [vmem:[%s404 + $0xc1] sm:$0xff] %v388
        %422 = vst [vmem:[%s404 + $0xc9] sm:$0xff] %v389
        %423 = vst [vmem:[%s404 + $0xd9] sm:$0xff] %v390
        %424 = vst [vmem:[%s404 + $0xe1] sm:$0xff] %v391
        %425 = vst [vmem:[%s404 + $0xf1] sm:$0xff] %v392
        %426 = vst [vmem:[%s404 + $0xf9] sm:$0xff] %v393
        %427 = vst [vmem:[%s404 + $0x109] sm:$0xff] %v394
        %428 = vst [vmem:[%s404 + $0x111] sm:$0xff] %v395
        %429 = vst [vmem:[%s404 + $0x121] sm:$0xff] %v396
        %430 = vst [vmem:[%s404 + $0x129] sm:$0xff] %v397
        %431 = vst [vmem:[%s404 + $0x139] sm:$0xff] %v398
        %432 = vst [vmem:[%s404 + $0x141] sm:$0xff] %v399
        %433 = vst [vmem:[%s404 + $0x151] sm:$0xff] %v400
        %434 = vst [vmem:[%s404 + $0x159] sm:$0xff] %v401
        %435 = vst [vmem:[%s404 + $0x169] sm:$0xff] %v402
        %436 = vst [vmem:[%s404 + $0x171] sm:$0xff] %v403
        %v437 = vld [vmem:[#allocation2] sm:$0xff]
        %v438 = vld [vmem:[#allocation2 + $0x8] sm:$0xff]
        %v439 = vld [vmem:[#allocation2 + $0x18] sm:$0xff]
        %v440 = vld [vmem:[#allocation2 + $0x20] sm:$0xff]
        %v441 = vld [vmem:[#allocation2 + $0x30] sm:$0xff]
        %v442 = vld [vmem:[#allocation2 + $0x38] sm:$0xff]
        %v443 = vld [vmem:[#allocation2 + $0x48] sm:$0xff]
        %v444 = vld [vmem:[#allocation2 + $0x50] sm:$0xff]
        %v445 = vld [vmem:[#allocation2 + $0x60] sm:$0xff]
        %v446 = vld [vmem:[#allocation2 + $0x68] sm:$0xff]
        %v447 = vld [vmem:[#allocation2 + $0x78] sm:$0xff]
        %v448 = vld [vmem:[#allocation2 + $0x80] sm:$0xff]
        %v449 = vld [vmem:[#allocation2 + $0x90] sm:$0xff]
        %v450 = vld [vmem:[#allocation2 + $0x98] sm:$0xff]
        %v451 = vld [vmem:[#allocation2 + $0xa8] sm:$0xff]
        %v452 = vld [vmem:[#allocation2 + $0xb0] sm:$0xff]
        %v453 = vld [vmem:[#allocation2 + $0xc0] sm:$0xff]
        %v454 = vld [vmem:[#allocation2 + $0xc8] sm:$0xff]
        %v455 = vld [vmem:[#allocation2 + $0xd8] sm:$0xff]
        %v456 = vld [vmem:[#allocation2 + $0xe0] sm:$0xff]
        %v457 = vld [vmem:[#allocation2 + $0xf0] sm:$0xff]
        %v458 = vld [vmem:[#allocation2 + $0xf8] sm:$0xff]
        %v459 = vld [vmem:[#allocation2 + $0x108] sm:$0xff]
        %v460 = vld [vmem:[#allocation2 + $0x110] sm:$0xff]
        %v461 = vld [vmem:[#allocation2 + $0x120] sm:$0xff]
        %v462 = vld [vmem:[#allocation2 + $0x128] sm:$0xff]
        %v463 = vld [vmem:[#allocation2 + $0x138] sm:$0xff]
        %v464 = vld [vmem:[#allocation2 + $0x140] sm:$0xff]
        %v465 = vld [vmem:[#allocation2 + $0x150] sm:$0xff]
        %v466 = vld [vmem:[#allocation2 + $0x158] sm:$0xff]
        %v467 = vld [vmem:[#allocation2 + $0x168] sm:$0xff]
        %v468 = vld [vmem:[#allocation2 + $0x170] sm:$0xff]
        %v469 = vpack.c.bf16 %v438, %v437
        %v470 = vpack.c.bf16 %v440, %v439
        %v471 = vpack.c.bf16 %v442, %v441
        %v472 = vpack.c.bf16 %v444, %v443
        %v473 = vpack.c.bf16 %v446, %v445
        %v474 = vpack.c.bf16 %v448, %v447
        %v475 = vpack.c.bf16 %v450, %v449
        %v476 = vpack.c.bf16 %v452, %v451
        %v477 = vpack.c.bf16 %v454, %v453
        %v478 = vpack.c.bf16 %v456, %v455
        %v479 = vpack.c.bf16 %v458, %v457
        %v480 = vpack.c.bf16 %v460, %v459
        %v481 = vpack.c.bf16 %v462, %v461
        %v482 = vpack.c.bf16 %v464, %v463
        %v483 = vpack.c.bf16 %v466, %v465
        %v484 = vpack.c.bf16 %v468, %v467
        %v485 = vld [vmem:[#allocation6] sm:$0xf]
        %v486 = vld [vmem:[#allocation6 + $0x4] sm:$0xf]
        %v487 = vld [vmem:[#allocation6 + $0x8] sm:$0xf]
        %v488 = vld [vmem:[#allocation6 + $0xc] sm:$0xf]
        %v489 = vld [vmem:[#allocation6 + $0x10] sm:$0xf]
        %v490 = vld [vmem:[#allocation6 + $0x14] sm:$0xf]
        %v491 = vld [vmem:[#allocation6 + $0x18] sm:$0xf]
        %v492 = vld [vmem:[#allocation6 + $0x1c] sm:$0xf]
        %v493 = vld [vmem:[#allocation6 + $0x20] sm:$0xf]
        %v494 = vld [vmem:[#allocation6 + $0x24] sm:$0xf]
        %v495 = vld [vmem:[#allocation6 + $0x28] sm:$0xf]
        %v496 = vld [vmem:[#allocation6 + $0x2c] sm:$0xf]
        %v497 = vld [vmem:[#allocation6 + $0x30] sm:$0xf]
        %v498 = vld [vmem:[#allocation6 + $0x34] sm:$0xf]
        %v499 = vld [vmem:[#allocation6 + $0x38] sm:$0xf]
        %v500 = vld [vmem:[#allocation6 + $0x3c] sm:$0xf]
        %v501 = vld [vmem:[#allocation2 + $0x1] sm:$0xff]
        %v502 = vld [vmem:[#allocation2 + $0x9] sm:$0xff]
        %v503 = vld [vmem:[#allocation2 + $0x19] sm:$0xff]
        %v504 = vld [vmem:[#allocation2 + $0x21] sm:$0xff]
        %v505 = vld [vmem:[#allocation2 + $0x31] sm:$0xff]
        %v506 = vld [vmem:[#allocation2 + $0x39] sm:$0xff]
        %v507 = vld [vmem:[#allocation2 + $0x49] sm:$0xff]
        %v508 = vld [vmem:[#allocation2 + $0x51] sm:$0xff]
        %v509 = vld [vmem:[#allocation2 + $0x61] sm:$0xff]
        %v510 = vld [vmem:[#allocation2 + $0x69] sm:$0xff]
        %v511 = vld [vmem:[#allocation2 + $0x79] sm:$0xff]
        %v512 = vld [vmem:[#allocation2 + $0x81] sm:$0xff]
        %v513 = vld [vmem:[#allocation2 + $0x91] sm:$0xff]
        %v514 = vld [vmem:[#allocation2 + $0x99] sm:$0xff]
        %v515 = vld [vmem:[#allocation2 + $0xa9] sm:$0xff]
        %v516 = vld [vmem:[#allocation2 + $0xb1] sm:$0xff]
        %v517 = vld [vmem:[#allocation2 + $0xc1] sm:$0xff]
        %v518 = vld [vmem:[#allocation2 + $0xc9] sm:$0xff]
        %v519 = vld [vmem:[#allocation2 + $0xd9] sm:$0xff]
        %v520 = vld [vmem:[#allocation2 + $0xe1] sm:$0xff]
        %v521 = vld [vmem:[#allocation2 + $0xf1] sm:$0xff]
        %v522 = vld [vmem:[#allocation2 + $0xf9] sm:$0xff]
        %v523 = vld [vmem:[#allocation2 + $0x109] sm:$0xff]
        %v524 = vld [vmem:[#allocation2 + $0x111] sm:$0xff]
        %v525 = vld [vmem:[#allocation2 + $0x121] sm:$0xff]
        %v526 = vld [vmem:[#allocation2 + $0x129] sm:$0xff]
        %v527 = vld [vmem:[#allocation2 + $0x139] sm:$0xff]
        %v528 = vld [vmem:[#allocation2 + $0x141] sm:$0xff]
        %v529 = vld [vmem:[#allocation2 + $0x151] sm:$0xff]
        %v530 = vld [vmem:[#allocation2 + $0x159] sm:$0xff]
        %v531 = vld [vmem:[#allocation2 + $0x169] sm:$0xff]
        %v532 = vld [vmem:[#allocation2 + $0x171] sm:$0xff]
        %v533 = vpack.c.bf16 %v502, %v501
        %v534 = vpack.c.bf16 %v504, %v503
        %v535 = vpack.c.bf16 %v506, %v505
        %v536 = vpack.c.bf16 %v508, %v507
        %v537 = vpack.c.bf16 %v510, %v509
        %v538 = vpack.c.bf16 %v512, %v511
        %v539 = vpack.c.bf16 %v514, %v513
        %v540 = vpack.c.bf16 %v516, %v515
        %v541 = vpack.c.bf16 %v518, %v517
        %v542 = vpack.c.bf16 %v520, %v519
        %v543 = vpack.c.bf16 %v522, %v521
        %v544 = vpack.c.bf16 %v524, %v523
        %v545 = vpack.c.bf16 %v526, %v525
        %v546 = vpack.c.bf16 %v528, %v527
        %v547 = vpack.c.bf16 %v530, %v529
        %v548 = vpack.c.bf16 %v532, %v531
        %s549 = scalar_lea.vmem [#allocation6], 64
        %v550 = vld [vmem:[%s549] sm:$0xf]
        %v551 = vld [vmem:[%s549 + $0x4] sm:$0xf]
        %v552 = vld [vmem:[%s549 + $0x8] sm:$0xf]
        %v553 = vld [vmem:[%s549 + $0xc] sm:$0xf]
        %v554 = vld [vmem:[%s549 + $0x10] sm:$0xf]
        %v555 = vld [vmem:[%s549 + $0x14] sm:$0xf]
        %v556 = vld [vmem:[%s549 + $0x18] sm:$0xf]
        %v557 = vld [vmem:[%s549 + $0x1c] sm:$0xf]
        %v558 = vld [vmem:[%s549 + $0x20] sm:$0xf]
        %v559 = vld [vmem:[%s549 + $0x24] sm:$0xf]
        %v560 = vld [vmem:[%s549 + $0x28] sm:$0xf]
        %v561 = vld [vmem:[%s549 + $0x2c] sm:$0xf]
        %v562 = vld [vmem:[%s549 + $0x30] sm:$0xf]
        %v563 = vld [vmem:[%s549 + $0x34] sm:$0xf]
        %v564 = vld [vmem:[%s549 + $0x38] sm:$0xf]
        %v565 = vld [vmem:[%s549 + $0x3c] sm:$0xf]
        %v582 = vunpack.c.l.b16 %v550
        %v583 = vunpack.c.l.b16 %v551
        %v584 = vunpack.c.l.b16 %v552
        %v585 = vunpack.c.l.b16 %v553
        %v586 = vunpack.c.l.b16 %v554
        %v587 = vunpack.c.l.b16 %v555
        %v588 = vunpack.c.l.b16 %v556
        %v589 = vunpack.c.l.b16 %v557
        %v590 = vunpack.c.l.b16 %v558
        %v591 = vunpack.c.l.b16 %v559
        %v592 = vunpack.c.l.b16 %v560
        %v593 = vunpack.c.l.b16 %v561
        %v594 = vunpack.c.l.b16 %v562
        %v595 = vunpack.c.l.b16 %v563
        %v596 = vunpack.c.l.b16 %v564
        %v597 = vunpack.c.l.b16 %v565
        %v598 = vpack.c.b16 %v583, %v582
        %v599 = vpack.c.b16 %v585, %v584
        %v600 = vpack.c.b16 %v587, %v586
        %v601 = vpack.c.b16 %v589, %v588
        %v602 = vpack.c.b16 %v591, %v590
        %v603 = vpack.c.b16 %v593, %v592
        %v604 = vpack.c.b16 %v595, %v594
        %v605 = vpack.c.b16 %v597, %v596
        %614 = vmatprep.subr.bf16.mxu0 0
        %615 = vmatpush1.bf16.msra.mxu0 %v598
        %616 = vmatprep.subr.bf16.mxu0 0
        %617 = vmatpush1.bf16.msra.mxu0 %v599
        %618 = vmatprep.subr.bf16.mxu0 0
        %619 = vmatpush1.bf16.msra.mxu0 %v600
        %620 = vmatprep.subr.bf16.mxu0 0
        %621 = vmatpush1.bf16.msra.mxu0 %v601
        %622 = vmatprep.subr.bf16.mxu0 0
        %623 = vmatpush1.bf16.msra.mxu0 %v602
        %624 = vmatprep.subr.bf16.mxu0 0
        %625 = vmatpush1.bf16.msra.mxu0 %v603
        %626 = vmatprep.subr.bf16.mxu0 0
        %627 = vmatpush1.bf16.msra.mxu0 %v604
        %628 = vmatprep.subr.bf16.mxu0 0
        %629 = vmatpush1.bf16.msra.mxu0 %v605
        %630 = vmatprep.subr.bf16.mxu0 0
        %631 = vmatpush1.bf16.msra.mxu0 0
        %632 = vmatprep.subr.bf16.mxu0 0
        %633 = vmatpush1.bf16.msra.mxu0 0
        %634 = vmatprep.subr.bf16.mxu0 0
        %635 = vmatpush1.bf16.msra.mxu0 0
        %636 = vmatprep.subr.bf16.mxu0 0
        %637 = vmatpush1.bf16.msra.mxu0 0
        %638 = vmatprep.subr.bf16.mxu0 0
        %639 = vmatpush1.bf16.msra.mxu0 0
        %640 = vmatprep.subr.bf16.mxu0 0
        %641 = vmatpush1.bf16.msra.mxu0 0
        %642 = vmatprep.subr.bf16.mxu0 0
        %643 = vmatpush1.bf16.msra.mxu0 0
        %644 = vmatprep.subr.bf16.mxu0 0
        %645 = vmatpush1.bf16.msra.mxu0 0
        %646 = vmatprep.mubr.bf16.mxu0 0
        %647 = vmatmul.mubr.bf16.gmra.mrb[0].mxu0 %v533
        %v648 = vpop.f32.mrb[0].mxu0
        %v649 = vadd.f32 0.0, %v648
        %v650 = vpop.f32.mrb[0].mxu0
        %v651 = vpop.f32.mrb[0].mxu0
        %v652 = vadd.f32 0.0, %v651
        %v653 = vpop.f32.mrb[0].mxu0
        %654 = vmatprep.mubr.bf16.mxu0 0
        %655 = vmatmul.mubr.bf16.gmra.mrb[0].mxu0 %v534
        %v656 = vpop.f32.mrb[0].mxu0
        %v657 = vadd.f32 0.0, %v656
        %v658 = vpop.f32.mrb[0].mxu0
        %v659 = vpop.f32.mrb[0].mxu0
        %v660 = vadd.f32 0.0, %v659
        %v661 = vpop.f32.mrb[0].mxu0
        %662 = vmatprep.mubr.bf16.mxu0 0
        %663 = vmatmul.mubr.bf16.gmra.mrb[0].mxu0 %v535
        %v664 = vpop.f32.mrb[0].mxu0
        %v665 = vadd.f32 0.0, %v664
        %v666 = vpop.f32.mrb[0].mxu0
        %v667 = vpop.f32.mrb[0].mxu0
        %v668 = vadd.f32 0.0, %v667
        %v669 = vpop.f32.mrb[0].mxu0
        %670 = vmatprep.mubr.bf16.mxu0 0
        %671 = vmatmul.mubr.bf16.gmra.mrb[0].mxu0 %v536
        %v672 = vpop.f32.mrb[0].mxu0
        %v673 = vadd.f32 0.0, %v672
        %v674 = vpop.f32.mrb[0].mxu0
        %v675 = vpop.f32.mrb[0].mxu0
        %v676 = vadd.f32 0.0, %v675
        %v677 = vpop.f32.mrb[0].mxu0
        %678 = vmatprep.mubr.bf16.mxu0 0
        %679 = vmatmul.mubr.bf16.gmra.mrb[0].mxu0 %v537
        %v680 = vpop.f32.mrb[0].mxu0
        %v681 = vadd.f32 0.0, %v680
        %v682 = vpop.f32.mrb[0].mxu0
        %v683 = vpop.f32.mrb[0].mxu0
        %v684 = vadd.f32 0.0, %v683
        %v685 = vpop.f32.mrb[0].mxu0
        %686 = vmatprep.mubr.bf16.mxu0 0
        %687 = vmatmul.mubr.bf16.gmra.mrb[0].mxu0 %v538
        %v688 = vpop.f32.mrb[0].mxu0
        %v689 = vadd.f32 0.0, %v688
        %v690 = vpop.f32.mrb[0].mxu0
        %v691 = vpop.f32.mrb[0].mxu0
        %v692 = vadd.f32 0.0, %v691
        %v693 = vpop.f32.mrb[0].mxu0
        %694 = vmatprep.mubr.bf16.mxu0 0
        %695 = vmatmul.mubr.bf16.gmra.mrb[0].mxu0 %v539
        %v696 = vpop.f32.mrb[0].mxu0
        %v697 = vadd.f32 0.0, %v696
        %v698 = vpop.f32.mrb[0].mxu0
        %v699 = vpop.f32.mrb[0].mxu0
        %v700 = vadd.f32 0.0, %v699
        %v701 = vpop.f32.mrb[0].mxu0
        %702 = vmatprep.mubr.bf16.mxu0 0
        %703 = vmatmul.mubr.bf16.gmra.mrb[0].mxu0 %v540
        %v704 = vpop.f32.mrb[0].mxu0
        %v705 = vadd.f32 0.0, %v704
        %v706 = vpop.f32.mrb[0].mxu0
        %v707 = vpop.f32.mrb[0].mxu0
        %v708 = vadd.f32 0.0, %v707
        %v709 = vpop.f32.mrb[0].mxu0
        %710 = vmatprep.mubr.bf16.mxu0 0
        %711 = vmatmul.mubr.bf16.gmra.mrb[0].mxu0 %v541
        %v712 = vpop.f32.mrb[0].mxu0
        %v713 = vadd.f32 0.0, %v712
        %v714 = vpop.f32.mrb[0].mxu0
        %v715 = vpop.f32.mrb[0].mxu0
        %v716 = vadd.f32 0.0, %v715
        %v717 = vpop.f32.mrb[0].mxu0
        %718 = vmatprep.mubr.bf16.mxu0 0
        %719 = vmatmul.mubr.bf16.gmra.mrb[0].mxu0 %v542
        %v720 = vpop.f32.mrb[0].mxu0
        %v721 = vadd.f32 0.0, %v720
        %v722 = vpop.f32.mrb[0].mxu0
        %v723 = vpop.f32.mrb[0].mxu0
        %v724 = vadd.f32 0.0, %v723
        %v725 = vpop.f32.mrb[0].mxu0
        %726 = vmatprep.mubr.bf16.mxu0 0
        %727 = vmatmul.mubr.bf16.gmra.mrb[0].mxu0 %v543
        %v728 = vpop.f32.mrb[0].mxu0
        %v729 = vadd.f32 0.0, %v728
        %v730 = vpop.f32.mrb[0].mxu0
        %v731 = vpop.f32.mrb[0].mxu0
        %v732 = vadd.f32 0.0, %v731
        %v733 = vpop.f32.mrb[0].mxu0
        %734 = vmatprep.mubr.bf16.mxu0 0
        %735 = vmatmul.mubr.bf16.gmra.mrb[0].mxu0 %v544
        %v736 = vpop.f32.mrb[0].mxu0
        %v737 = vadd.f32 0.0, %v736
        %v738 = vpop.f32.mrb[0].mxu0
        %v739 = vpop.f32.mrb[0].mxu0
        %v740 = vadd.f32 0.0, %v739
        %v741 = vpop.f32.mrb[0].mxu0
        %742 = vmatprep.mubr.bf16.mxu0 0
        %743 = vmatmul.mubr.bf16.gmra.mrb[0].mxu0 %v545
        %v744 = vpop.f32.mrb[0].mxu0
        %v745 = vadd.f32 0.0, %v744
        %v746 = vpop.f32.mrb[0].mxu0
        %v747 = vpop.f32.mrb[0].mxu0
        %v748 = vadd.f32 0.0, %v747
        %v749 = vpop.f32.mrb[0].mxu0
        %750 = vmatprep.mubr.bf16.mxu0 0
        %751 = vmatmul.mubr.bf16.gmra.mrb[0].mxu0 %v546
        %v752 = vpop.f32.mrb[0].mxu0
        %v753 = vadd.f32 0.0, %v752
        %v754 = vpop.f32.mrb[0].mxu0
        %v755 = vpop.f32.mrb[0].mxu0
        %v756 = vadd.f32 0.0, %v755
        %v757 = vpop.f32.mrb[0].mxu0
        %758 = vmatprep.mubr.bf16.mxu0 0
        %759 = vmatmul.mubr.bf16.gmra.mrb[0].mxu0 %v547
        %v760 = vpop.f32.mrb[0].mxu0
        %v761 = vadd.f32 0.0, %v760
        %v762 = vpop.f32.mrb[0].mxu0
        %v763 = vpop.f32.mrb[0].mxu0
        %v764 = vadd.f32 0.0, %v763
        %v765 = vpop.f32.mrb[0].mxu0
        %766 = vmatprep.mubr.bf16.mxu0 0
        %767 = vmatmul.mubr.bf16.gmra.mrb[0].mxu0 %v548
        %v768 = vpop.f32.mrb[0].mxu0
        %v769 = vadd.f32 0.0, %v768
        %v770 = vpop.f32.mrb[0].mxu0
        %v771 = vpop.f32.mrb[0].mxu0
        %v772 = vadd.f32 0.0, %v771
        %v773 = vpop.f32.mrb[0].mxu0
        %774 = vdwg.mxu0
        %v791 = vunpack.c.l.b16 %v485
        %v792 = vunpack.c.l.b16 %v486
        %v793 = vunpack.c.l.b16 %v487
        %v794 = vunpack.c.l.b16 %v488
        %v795 = vunpack.c.l.b16 %v489
        %v796 = vunpack.c.l.b16 %v490
        %v797 = vunpack.c.l.b16 %v491
        %v798 = vunpack.c.l.b16 %v492
        %v799 = vunpack.c.l.b16 %v493
        %v800 = vunpack.c.l.b16 %v494
        %v801 = vunpack.c.l.b16 %v495
        %v802 = vunpack.c.l.b16 %v496
        %v803 = vunpack.c.l.b16 %v497
        %v804 = vunpack.c.l.b16 %v498
        %v805 = vunpack.c.l.b16 %v499
        %v806 = vunpack.c.l.b16 %v500
        %v807 = vpack.c.b16 %v792, %v791
        %v808 = vpack.c.b16 %v794, %v793
        %v809 = vpack.c.b16 %v796, %v795
        %v810 = vpack.c.b16 %v798, %v797
        %v811 = vpack.c.b16 %v800, %v799
        %v812 = vpack.c.b16 %v802, %v801
        %v813 = vpack.c.b16 %v804, %v803
        %v814 = vpack.c.b16 %v806, %v805
        %823 = vmatprep.subr.bf16.mxu0 0
        %824 = vmatpush1.bf16.msra.mxu0 %v807
        %825 = vmatprep.subr.bf16.mxu0 0
        %826 = vmatpush1.bf16.msra.mxu0 %v808
        %827 = vmatprep.subr.bf16.mxu0 0
        %828 = vmatpush1.bf16.msra.mxu0 %v809
        %829 = vmatprep.subr.bf16.mxu0 0
        %830 = vmatpush1.bf16.msra.mxu0 %v810
        %831 = vmatprep.subr.bf16.mxu0 0
        %832 = vmatpush1.bf16.msra.mxu0 %v811
        %833 = vmatprep.subr.bf16.mxu0 0
        %834 = vmatpush1.bf16.msra.mxu0 %v812
        %835 = vmatprep.subr.bf16.mxu0 0
        %836 = vmatpush1.bf16.msra.mxu0 %v813
        %837 = vmatprep.subr.bf16.mxu0 0
        %838 = vmatpush1.bf16.msra.mxu0 %v814
        %839 = vmatprep.subr.bf16.mxu0 0
        %840 = vmatpush1.bf16.msra.mxu0 0
        %841 = vmatprep.subr.bf16.mxu0 0
        %842 = vmatpush1.bf16.msra.mxu0 0
        %843 = vmatprep.subr.bf16.mxu0 0
        %844 = vmatpush1.bf16.msra.mxu0 0
        %845 = vmatprep.subr.bf16.mxu0 0
        %846 = vmatpush1.bf16.msra.mxu0 0
        %847 = vmatprep.subr.bf16.mxu0 0
        %848 = vmatpush1.bf16.msra.mxu0 0
        %849 = vmatprep.subr.bf16.mxu0 0
        %850 = vmatpush1.bf16.msra.mxu0 0
        %851 = vmatprep.subr.bf16.mxu0 0
        %852 = vmatpush1.bf16.msra.mxu0 0
        %853 = vmatprep.subr.bf16.mxu0 0
        %854 = vmatpush1.bf16.msra.mxu0 0
        %855 = vmatprep.mubr.bf16.mxu0 0
        %856 = vmatmul.mubr.bf16.gmra.mrb[0].mxu0 %v469
        %v857 = vpop.f32.mrb[0].mxu0
        %v858 = vadd.f32 %v649, %v857
        %v859 = vpop.f32.mrb[0].mxu0
        %v860 = vpop.f32.mrb[0].mxu0
        %v861 = vadd.f32 %v652, %v860
        %v862 = vpop.f32.mrb[0].mxu0
        %863 = vmatprep.mubr.bf16.mxu0 0
        %864 = vmatmul.mubr.bf16.gmra.mrb[0].mxu0 %v470
        %v865 = vpop.f32.mrb[0].mxu0
        %v866 = vadd.f32 %v657, %v865
        %v867 = vpop.f32.mrb[0].mxu0
        %v868 = vpop.f32.mrb[0].mxu0
        %v869 = vadd.f32 %v660, %v868
        %v870 = vpop.f32.mrb[0].mxu0
        %871 = vmatprep.mubr.bf16.mxu0 0
        %872 = vmatmul.mubr.bf16.gmra.mrb[0].mxu0 %v471
        %v873 = vpop.f32.mrb[0].mxu0
        %v874 = vadd.f32 %v665, %v873
        %v875 = vpop.f32.mrb[0].mxu0
        %v876 = vpop.f32.mrb[0].mxu0
        %v877 = vadd.f32 %v668, %v876
        %v878 = vpop.f32.mrb[0].mxu0
        %879 = vmatprep.mubr.bf16.mxu0 0
        %880 = vmatmul.mubr.bf16.gmra.mrb[0].mxu0 %v472
        %v881 = vpop.f32.mrb[0].mxu0
        %v882 = vadd.f32 %v673, %v881
        %v883 = vpop.f32.mrb[0].mxu0
        %v884 = vpop.f32.mrb[0].mxu0
        %v885 = vadd.f32 %v676, %v884
        %v886 = vpop.f32.mrb[0].mxu0
        %887 = vmatprep.mubr.bf16.mxu0 0
        %888 = vmatmul.mubr.bf16.gmra.mrb[0].mxu0 %v473
        %v889 = vpop.f32.mrb[0].mxu0
        %v890 = vadd.f32 %v681, %v889
        %v891 = vpop.f32.mrb[0].mxu0
        %v892 = vpop.f32.mrb[0].mxu0
        %v893 = vadd.f32 %v684, %v892
        %v894 = vpop.f32.mrb[0].mxu0
        %895 = vmatprep.mubr.bf16.mxu0 0
        %896 = vmatmul.mubr.bf16.gmra.mrb[0].mxu0 %v474
        %v897 = vpop.f32.mrb[0].mxu0
        %v898 = vadd.f32 %v689, %v897
        %v899 = vpop.f32.mrb[0].mxu0
        %v900 = vpop.f32.mrb[0].mxu0
        %v901 = vadd.f32 %v692, %v900
        %v902 = vpop.f32.mrb[0].mxu0
        %903 = vmatprep.mubr.bf16.mxu0 0
        %904 = vmatmul.mubr.bf16.gmra.mrb[0].mxu0 %v475
        %v905 = vpop.f32.mrb[0].mxu0
        %v906 = vadd.f32 %v697, %v905
        %v907 = vpop.f32.mrb[0].mxu0
        %v908 = vpop.f32.mrb[0].mxu0
        %v909 = vadd.f32 %v700, %v908
        %v910 = vpop.f32.mrb[0].mxu0
        %911 = vmatprep.mubr.bf16.mxu0 0
        %912 = vmatmul.mubr.bf16.gmra.mrb[0].mxu0 %v476
        %v913 = vpop.f32.mrb[0].mxu0
        %v914 = vadd.f32 %v705, %v913
        %v915 = vpop.f32.mrb[0].mxu0
        %v916 = vpop.f32.mrb[0].mxu0
        %v917 = vadd.f32 %v708, %v916
        %v918 = vpop.f32.mrb[0].mxu0
        %919 = vmatprep.mubr.bf16.mxu0 0
        %920 = vmatmul.mubr.bf16.gmra.mrb[0].mxu0 %v477
        %v921 = vpop.f32.mrb[0].mxu0
        %v922 = vadd.f32 %v713, %v921
        %v923 = vpop.f32.mrb[0].mxu0
        %v924 = vpop.f32.mrb[0].mxu0
        %v925 = vadd.f32 %v716, %v924
        %v926 = vpop.f32.mrb[0].mxu0
        %927 = vmatprep.mubr.bf16.mxu0 0
        %928 = vmatmul.mubr.bf16.gmra.mrb[0].mxu0 %v478
        %v929 = vpop.f32.mrb[0].mxu0
        %v930 = vadd.f32 %v721, %v929
        %v931 = vpop.f32.mrb[0].mxu0
        %v932 = vpop.f32.mrb[0].mxu0
        %v933 = vadd.f32 %v724, %v932
        %v934 = vpop.f32.mrb[0].mxu0
        %935 = vmatprep.mubr.bf16.mxu0 0
        %936 = vmatmul.mubr.bf16.gmra.mrb[0].mxu0 %v479
        %v937 = vpop.f32.mrb[0].mxu0
        %v938 = vadd.f32 %v729, %v937
        %v939 = vpop.f32.mrb[0].mxu0
        %v940 = vpop.f32.mrb[0].mxu0
        %v941 = vadd.f32 %v732, %v940
        %v942 = vpop.f32.mrb[0].mxu0
        %943 = vmatprep.mubr.bf16.mxu0 0
        %944 = vmatmul.mubr.bf16.gmra.mrb[0].mxu0 %v480
        %v945 = vpop.f32.mrb[0].mxu0
        %v946 = vadd.f32 %v737, %v945
        %v947 = vpop.f32.mrb[0].mxu0
        %v948 = vpop.f32.mrb[0].mxu0
        %v949 = vadd.f32 %v740, %v948
        %v950 = vpop.f32.mrb[0].mxu0
        %951 = vmatprep.mubr.bf16.mxu0 0
        %952 = vmatmul.mubr.bf16.gmra.mrb[0].mxu0 %v481
        %v953 = vpop.f32.mrb[0].mxu0
        %v954 = vadd.f32 %v745, %v953
        %v955 = vpop.f32.mrb[0].mxu0
        %v956 = vpop.f32.mrb[0].mxu0
        %v957 = vadd.f32 %v748, %v956
        %v958 = vpop.f32.mrb[0].mxu0
        %959 = vmatprep.mubr.bf16.mxu0 0
        %960 = vmatmul.mubr.bf16.gmra.mrb[0].mxu0 %v482
        %v961 = vpop.f32.mrb[0].mxu0
        %v962 = vadd.f32 %v753, %v961
        %v963 = vpop.f32.mrb[0].mxu0
        %v964 = vpop.f32.mrb[0].mxu0
        %v965 = vadd.f32 %v756, %v964
        %v966 = vpop.f32.mrb[0].mxu0
        %967 = vmatprep.mubr.bf16.mxu0 0
        %968 = vmatmul.mubr.bf16.gmra.mrb[0].mxu0 %v483
        %v969 = vpop.f32.mrb[0].mxu0
        %v970 = vadd.f32 %v761, %v969
        %v971 = vpop.f32.mrb[0].mxu0
        %v972 = vpop.f32.mrb[0].mxu0
        %v973 = vadd.f32 %v764, %v972
        %v974 = vpop.f32.mrb[0].mxu0
        %975 = vmatprep.mubr.bf16.mxu0 0
        %976 = vmatmul.mubr.bf16.gmra.mrb[0].mxu0 %v484
        %v977 = vpop.f32.mrb[0].mxu0
        %v978 = vadd.f32 %v769, %v977
        %v979 = vpop.f32.mrb[0].mxu0
        %v980 = vpop.f32.mrb[0].mxu0
        %v981 = vadd.f32 %v772, %v980
        %v982 = vpop.f32.mrb[0].mxu0
        %983 = vdwg.mxu0
        %v984 = vld [vmem:[#allocation2 + $0x2] sm:$0xff]
        %v985 = vld [vmem:[#allocation2 + $0xa] sm:$0xff]
        %v986 = vld [vmem:[#allocation2 + $0x1a] sm:$0xff]
        %v987 = vld [vmem:[#allocation2 + $0x22] sm:$0xff]
        %v988 = vld [vmem:[#allocation2 + $0x32] sm:$0xff]
        %v989 = vld [vmem:[#allocation2 + $0x3a] sm:$0xff]
        %v990 = vld [vmem:[#allocation2 + $0x4a] sm:$0xff]
        %v991 = vld [vmem:[#allocation2 + $0x52] sm:$0xff]
        %v992 = vld [vmem:[#allocation2 + $0x62] sm:$0xff]
        %v993 = vld [vmem:[#allocation2 + $0x6a] sm:$0xff]
        %v994 = vld [vmem:[#allocation2 + $0x7a] sm:$0xff]
        %v995 = vld [vmem:[#allocation2 + $0x82] sm:$0xff]
        %v996 = vld [vmem:[#allocation2 + $0x92] sm:$0xff]
        %v997 = vld [vmem:[#allocation2 + $0x9a] sm:$0xff]
        %v998 = vld [vmem:[#allocation2 + $0xaa] sm:$0xff]
        %v999 = vld [vmem:[#allocation2 + $0xb2] sm:$0xff]
        %v1000 = vld [vmem:[#allocation2 + $0xc2] sm:$0xff]
        %v1001 = vld [vmem:[#allocation2 + $0xca] sm:$0xff]
        %v1002 = vld [vmem:[#allocation2 + $0xda] sm:$0xff]
        %v1003 = vld [vmem:[#allocation2 + $0xe2] sm:$0xff]
        %v1004 = vld [vmem:[#allocation2 + $0xf2] sm:$0xff]
        %v1005 = vld [vmem:[#allocation2 + $0xfa] sm:$0xff]
        %v1006 = vld [vmem:[#allocation2 + $0x10a] sm:$0xff]
        %v1007 = vld [vmem:[#allocation2 + $0x112] sm:$0xff]
        %v1008 = vld [vmem:[#allocation2 + $0x122] sm:$0xff]
        %v1009 = vld [vmem:[#allocation2 + $0x12a] sm:$0xff]
        %v1010 = vld [vmem:[#allocation2 + $0x13a] sm:$0xff]
        %v1011 = vld [vmem:[#allocation2 + $0x142] sm:$0xff]
        %v1012 = vld [vmem:[#allocation2 + $0x152] sm:$0xff]
        %v1013 = vld [vmem:[#allocation2 + $0x15a] sm:$0xff]
        %v1014 = vld [vmem:[#allocation2 + $0x16a] sm:$0xff]
        %v1015 = vld [vmem:[#allocation2 + $0x172] sm:$0xff]
        %v1016 = vpack.c.bf16 %v985, %v984
        %v1017 = vpack.c.bf16 %v987, %v986
        %v1018 = vpack.c.bf16 %v989, %v988
        %v1019 = vpack.c.bf16 %v991, %v990
        %v1020 = vpack.c.bf16 %v993, %v992
        %v1021 = vpack.c.bf16 %v995, %v994
        %v1022 = vpack.c.bf16 %v997, %v996
        %v1023 = vpack.c.bf16 %v999, %v998
        %v1024 = vpack.c.bf16 %v1001, %v1000
        %v1025 = vpack.c.bf16 %v1003, %v1002
        %v1026 = vpack.c.bf16 %v1005, %v1004
        %v1027 = vpack.c.bf16 %v1007, %v1006
        %v1028 = vpack.c.bf16 %v1009, %v1008
        %v1029 = vpack.c.bf16 %v1011, %v1010
        %v1030 = vpack.c.bf16 %v1013, %v1012
        %v1031 = vpack.c.bf16 %v1015, %v1014
        %s1032 = scalar_lea.vmem [#allocation6], 128
        %v1033 = vld [vmem:[%s1032] sm:$0xf]
        %v1034 = vld [vmem:[%s1032 + $0x4] sm:$0xf]
        %v1035 = vld [vmem:[%s1032 + $0x8] sm:$0xf]
        %v1036 = vld [vmem:[%s1032 + $0xc] sm:$0xf]
        %v1037 = vld [vmem:[%s1032 + $0x10] sm:$0xf]
        %v1038 = vld [vmem:[%s1032 + $0x14] sm:$0xf]
        %v1039 = vld [vmem:[%s1032 + $0x18] sm:$0xf]
        %v1040 = vld [vmem:[%s1032 + $0x1c] sm:$0xf]
        %v1041 = vld [vmem:[%s1032 + $0x20] sm:$0xf]
        %v1042 = vld [vmem:[%s1032 + $0x24] sm:$0xf]
        %v1043 = vld [vmem:[%s1032 + $0x28] sm:$0xf]
        %v1044 = vld [vmem:[%s1032 + $0x2c] sm:$0xf]
        %v1045 = vld [vmem:[%s1032 + $0x30] sm:$0xf]
        %v1046 = vld [vmem:[%s1032 + $0x34] sm:$0xf]
        %v1047 = vld [vmem:[%s1032 + $0x38] sm:$0xf]
        %v1048 = vld [vmem:[%s1032 + $0x3c] sm:$0xf]
        %v1065 = vunpack.c.l.b16 %v1033
        %v1066 = vunpack.c.l.b16 %v1034
        %v1067 = vunpack.c.l.b16 %v1035
        %v1068 = vunpack.c.l.b16 %v1036
        %v1069 = vunpack.c.l.b16 %v1037
        %v1070 = vunpack.c.l.b16 %v1038
        %v1071 = vunpack.c.l.b16 %v1039
        %v1072 = vunpack.c.l.b16 %v1040
        %v1073 = vunpack.c.l.b16 %v1041
        %v1074 = vunpack.c.l.b16 %v1042
        %v1075 = vunpack.c.l.b16 %v1043
        %v1076 = vunpack.c.l.b16 %v1044
        %v1077 = vunpack.c.l.b16 %v1045
        %v1078 = vunpack.c.l.b16 %v1046
        %v1079 = vunpack.c.l.b16 %v1047
        %v1080 = vunpack.c.l.b16 %v1048
        %v1081 = vpack.c.b16 %v1066, %v1065
        %v1082 = vpack.c.b16 %v1068, %v1067
        %v1083 = vpack.c.b16 %v1070, %v1069
        %v1084 = vpack.c.b16 %v1072, %v1071
        %v1085 = vpack.c.b16 %v1074, %v1073
        %v1086 = vpack.c.b16 %v1076, %v1075
        %v1087 = vpack.c.b16 %v1078, %v1077
        %v1088 = vpack.c.b16 %v1080, %v1079
        %1097 = vmatprep.subr.bf16.mxu0 0
        %1098 = vmatpush1.bf16.msra.mxu0 %v1081
        %1099 = vmatprep.subr.bf16.mxu0 0
        %1100 = vmatpush1.bf16.msra.mxu0 %v1082
        %1101 = vmatprep.subr.bf16.mxu0 0
        %1102 = vmatpush1.bf16.msra.mxu0 %v1083
        %1103 = vmatprep.subr.bf16.mxu0 0
        %1104 = vmatpush1.bf16.msra.mxu0 %v1084
        %1105 = vmatprep.subr.bf16.mxu0 0
        %1106 = vmatpush1.bf16.msra.mxu0 %v1085
        %1107 = vmatprep.subr.bf16.mxu0 0
        %1108 = vmatpush1.bf16.msra.mxu0 %v1086
        %1109 = vmatprep.subr.bf16.mxu0 0
        %1110 = vmatpush1.bf16.msra.mxu0 %v1087
        %1111 = vmatprep.subr.bf16.mxu0 0
        %1112 = vmatpush1.bf16.msra.mxu0 %v1088
        %1113 = vmatprep.subr.bf16.mxu0 0
        %1114 = vmatpush1.bf16.msra.mxu0 0
        %1115 = vmatprep.subr.bf16.mxu0 0
        %1116 = vmatpush1.bf16.msra.mxu0 0
        %1117 = vmatprep.subr.bf16.mxu0 0
        %1118 = vmatpush1.bf16.msra.mxu0 0
        %1119 = vmatprep.subr.bf16.mxu0 0
        %1120 = vmatpush1.bf16.msra.mxu0 0
        %1121 = vmatprep.subr.bf16.mxu0 0
        %1122 = vmatpush1.bf16.msra.mxu0 0
        %1123 = vmatprep.subr.bf16.mxu0 0
        %1124 = vmatpush1.bf16.msra.mxu0 0
        %1125 = vmatprep.subr.bf16.mxu0 0
        %1126 = vmatpush1.bf16.msra.mxu0 0
        %1127 = vmatprep.subr.bf16.mxu0 0
        %1128 = vmatpush1.bf16.msra.mxu0 0
        %1129 = vmatprep.mubr.bf16.mxu0 0
        %1130 = vmatmul.mubr.bf16.gmra.mrb[0].mxu0 %v1016
        %v1131 = vpop.f32.mrb[0].mxu0
        %v1132 = vadd.f32 0.0, %v1131
        %v1133 = vpop.f32.mrb[0].mxu0
        %v1134 = vpop.f32.mrb[0].mxu0
        %v1135 = vadd.f32 0.0, %v1134
        %v1136 = vpop.f32.mrb[0].mxu0
        %1137 = vmatprep.mubr.bf16.mxu0 0
        %1138 = vmatmul.mubr.bf16.gmra.mrb[0].mxu0 %v1017
        %v1139 = vpop.f32.mrb[0].mxu0
        %v1140 = vadd.f32 0.0, %v1139
        %v1141 = vpop.f32.mrb[0].mxu0
        %v1142 = vpop.f32.mrb[0].mxu0
        %v1143 = vadd.f32 0.0, %v1142
        %v1144 = vpop.f32.mrb[0].mxu0
        %1145 = vmatprep.mubr.bf16.mxu0 0
        %1146 = vmatmul.mubr.bf16.gmra.mrb[0].mxu0 %v1018
        %v1147 = vpop.f32.mrb[0].mxu0
        %v1148 = vadd.f32 0.0, %v1147
        %v1149 = vpop.f32.mrb[0].mxu0
        %v1150 = vpop.f32.mrb[0].mxu0
        %v1151 = vadd.f32 0.0, %v1150
        %v1152 = vpop.f32.mrb[0].mxu0
        %1153 = vmatprep.mubr.bf16.mxu0 0
        %1154 = vmatmul.mubr.bf16.gmra.mrb[0].mxu0 %v1019
        %v1155 = vpop.f32.mrb[0].mxu0
        %v1156 = vadd.f32 0.0, %v1155
        %v1157 = vpop.f32.mrb[0].mxu0
        %v1158 = vpop.f32.mrb[0].mxu0
        %v1159 = vadd.f32 0.0, %v1158
        %v1160 = vpop.f32.mrb[0].mxu0
        %1161 = vmatprep.mubr.bf16.mxu0 0
        %1162 = vmatmul.mubr.bf16.gmra.mrb[0].mxu0 %v1020
        %v1163 = vpop.f32.mrb[0].mxu0
        %v1164 = vadd.f32 0.0, %v1163
        %v1165 = vpop.f32.mrb[0].mxu0
        %v1166 = vpop.f32.mrb[0].mxu0
        %v1167 = vadd.f32 0.0, %v1166
        %v1168 = vpop.f32.mrb[0].mxu0
        %1169 = vmatprep.mubr.bf16.mxu0 0
        %1170 = vmatmul.mubr.bf16.gmra.mrb[0].mxu0 %v1021
        %v1171 = vpop.f32.mrb[0].mxu0
        %v1172 = vadd.f32 0.0, %v1171
        %v1173 = vpop.f32.mrb[0].mxu0
        %v1174 = vpop.f32.mrb[0].mxu0
        %v1175 = vadd.f32 0.0, %v1174
        %v1176 = vpop.f32.mrb[0].mxu0
        %1177 = vmatprep.mubr.bf16.mxu0 0
        %1178 = vmatmul.mubr.bf16.gmra.mrb[0].mxu0 %v1022
        %v1179 = vpop.f32.mrb[0].mxu0
        %v1180 = vadd.f32 0.0, %v1179
        %v1181 = vpop.f32.mrb[0].mxu0
        %v1182 = vpop.f32.mrb[0].mxu0
        %v1183 = vadd.f32 0.0, %v1182
        %v1184 = vpop.f32.mrb[0].mxu0
        %1185 = vmatprep.mubr.bf16.mxu0 0
        %1186 = vmatmul.mubr.bf16.gmra.mrb[0].mxu0 %v1023
        %v1187 = vpop.f32.mrb[0].mxu0
        %v1188 = vadd.f32 0.0, %v1187
        %v1189 = vpop.f32.mrb[0].mxu0
        %v1190 = vpop.f32.mrb[0].mxu0
        %v1191 = vadd.f32 0.0, %v1190
        %v1192 = vpop.f32.mrb[0].mxu0
        %1193 = vmatprep.mubr.bf16.mxu0 0
        %1194 = vmatmul.mubr.bf16.gmra.mrb[0].mxu0 %v1024
        %v1195 = vpop.f32.mrb[0].mxu0
        %v1196 = vadd.f32 0.0, %v1195
        %v1197 = vpop.f32.mrb[0].mxu0
        %v1198 = vpop.f32.mrb[0].mxu0
        %v1199 = vadd.f32 0.0, %v1198
        %v1200 = vpop.f32.mrb[0].mxu0
        %1201 = vmatprep.mubr.bf16.mxu0 0
        %1202 = vmatmul.mubr.bf16.gmra.mrb[0].mxu0 %v1025
        %v1203 = vpop.f32.mrb[0].mxu0
        %v1204 = vadd.f32 0.0, %v1203
        %v1205 = vpop.f32.mrb[0].mxu0
        %v1206 = vpop.f32.mrb[0].mxu0
        %v1207 = vadd.f32 0.0, %v1206
        %v1208 = vpop.f32.mrb[0].mxu0
        %1209 = vmatprep.mubr.bf16.mxu0 0
        %1210 = vmatmul.mubr.bf16.gmra.mrb[0].mxu0 %v1026
        %v1211 = vpop.f32.mrb[0].mxu0
        %v1212 = vadd.f32 0.0, %v1211
        %v1213 = vpop.f32.mrb[0].mxu0
        %v1214 = vpop.f32.mrb[0].mxu0
        %v1215 = vadd.f32 0.0, %v1214
        %v1216 = vpop.f32.mrb[0].mxu0
        %1217 = vmatprep.mubr.bf16.mxu0 0
        %1218 = vmatmul.mubr.bf16.gmra.mrb[0].mxu0 %v1027
        %v1219 = vpop.f32.mrb[0].mxu0
        %v1220 = vadd.f32 0.0, %v1219
        %v1221 = vpop.f32.mrb[0].mxu0
        %v1222 = vpop.f32.mrb[0].mxu0
        %v1223 = vadd.f32 0.0, %v1222
        %v1224 = vpop.f32.mrb[0].mxu0
        %1225 = vmatprep.mubr.bf16.mxu0 0
        %1226 = vmatmul.mubr.bf16.gmra.mrb[0].mxu0 %v1028
        %v1227 = vpop.f32.mrb[0].mxu0
        %v1228 = vadd.f32 0.0, %v1227
        %v1229 = vpop.f32.mrb[0].mxu0
        %v1230 = vpop.f32.mrb[0].mxu0
        %v1231 = vadd.f32 0.0, %v1230
        %v1232 = vpop.f32.mrb[0].mxu0
        %1233 = vmatprep.mubr.bf16.mxu0 0
        %1234 = vmatmul.mubr.bf16.gmra.mrb[0].mxu0 %v1029
        %v1235 = vpop.f32.mrb[0].mxu0
        %v1236 = vadd.f32 0.0, %v1235
        %v1237 = vpop.f32.mrb[0].mxu0
        %v1238 = vpop.f32.mrb[0].mxu0
        %v1239 = vadd.f32 0.0, %v1238
        %v1240 = vpop.f32.mrb[0].mxu0
        %1241 = vmatprep.mubr.bf16.mxu0 0
        %1242 = vmatmul.mubr.bf16.gmra.mrb[0].mxu0 %v1030
        %v1243 = vpop.f32.mrb[0].mxu0
        %v1244 = vadd.f32 0.0, %v1243
        %v1245 = vpop.f32.mrb[0].mxu0
        %v1246 = vpop.f32.mrb[0].mxu0
        %v1247 = vadd.f32 0.0, %v1246
        %v1248 = vpop.f32.mrb[0].mxu0
        %1249 = vmatprep.mubr.bf16.mxu0 0
        %1250 = vmatmul.mubr.bf16.gmra.mrb[0].mxu0 %v1031
        %v1251 = vpop.f32.mrb[0].mxu0
        %v1252 = vadd.f32 0.0, %v1251
        %v1253 = vpop.f32.mrb[0].mxu0
        %v1254 = vpop.f32.mrb[0].mxu0
        %v1255 = vadd.f32 0.0, %v1254
        %v1256 = vpop.f32.mrb[0].mxu0
        %1257 = vdwg.mxu0
        %v1258 = vadd.f32 %v858, %v1132
        %v1259 = vadd.f32 %v861, %v1135
        %v1260 = vadd.f32 %v866, %v1140
        %v1261 = vadd.f32 %v869, %v1143
        %v1262 = vadd.f32 %v874, %v1148
        %v1263 = vadd.f32 %v877, %v1151
        %v1264 = vadd.f32 %v882, %v1156
        %v1265 = vadd.f32 %v885, %v1159
        %v1266 = vadd.f32 %v890, %v1164
        %v1267 = vadd.f32 %v893, %v1167
        %v1268 = vadd.f32 %v898, %v1172
        %v1269 = vadd.f32 %v901, %v1175
        %v1270 = vadd.f32 %v906, %v1180
        %v1271 = vadd.f32 %v909, %v1183
        %v1272 = vadd.f32 %v914, %v1188
        %v1273 = vadd.f32 %v917, %v1191
        %v1274 = vadd.f32 %v922, %v1196
        %v1275 = vadd.f32 %v925, %v1199
        %v1276 = vadd.f32 %v930, %v1204
        %v1277 = vadd.f32 %v933, %v1207
        %v1278 = vadd.f32 %v938, %v1212
        %v1279 = vadd.f32 %v941, %v1215
        %v1280 = vadd.f32 %v946, %v1220
        %v1281 = vadd.f32 %v949, %v1223
        %v1282 = vadd.f32 %v954, %v1228
        %v1283 = vadd.f32 %v957, %v1231
        %v1284 = vadd.f32 %v962, %v1236
        %v1285 = vadd.f32 %v965, %v1239
        %v1286 = vadd.f32 %v970, %v1244
        %v1287 = vadd.f32 %v973, %v1247
        %v1288 = vadd.f32 %v978, %v1252
        %v1289 = vadd.f32 %v981, %v1255
        %v1290 = vld [vmem:[%s404] sm:$0xff]
        %v1291 = vld [vmem:[%s404 + $0x8] sm:$0xff]
        %v1292 = vld [vmem:[%s404 + $0x18] sm:$0xff]
        %v1293 = vld [vmem:[%s404 + $0x20] sm:$0xff]
        %v1294 = vld [vmem:[%s404 + $0x30] sm:$0xff]
        %v1295 = vld [vmem:[%s404 + $0x38] sm:$0xff]
        %v1296 = vld [vmem:[%s404 + $0x48] sm:$0xff]
        %v1297 = vld [vmem:[%s404 + $0x50] sm:$0xff]
        %v1298 = vld [vmem:[%s404 + $0x60] sm:$0xff]
        %v1299 = vld [vmem:[%s404 + $0x68] sm:$0xff]
        %v1300 = vld [vmem:[%s404 + $0x78] sm:$0xff]
        %v1301 = vld [vmem:[%s404 + $0x80] sm:$0xff]
        %v1302 = vld [vmem:[%s404 + $0x90] sm:$0xff]
        %v1303 = vld [vmem:[%s404 + $0x98] sm:$0xff]
        %v1304 = vld [vmem:[%s404 + $0xa8] sm:$0xff]
        %v1305 = vld [vmem:[%s404 + $0xb0] sm:$0xff]
        %v1306 = vld [vmem:[%s404 + $0xc0] sm:$0xff]
        %v1307 = vld [vmem:[%s404 + $0xc8] sm:$0xff]
        %v1308 = vld [vmem:[%s404 + $0xd8] sm:$0xff]
        %v1309 = vld [vmem:[%s404 + $0xe0] sm:$0xff]
        %v1310 = vld [vmem:[%s404 + $0xf0] sm:$0xff]
        %v1311 = vld [vmem:[%s404 + $0xf8] sm:$0xff]
        %v1312 = vld [vmem:[%s404 + $0x108] sm:$0xff]
        %v1313 = vld [vmem:[%s404 + $0x110] sm:$0xff]
        %v1314 = vld [vmem:[%s404 + $0x120] sm:$0xff]
        %v1315 = vld [vmem:[%s404 + $0x128] sm:$0xff]
        %v1316 = vld [vmem:[%s404 + $0x138] sm:$0xff]
        %v1317 = vld [vmem:[%s404 + $0x140] sm:$0xff]
        %v1318 = vld [vmem:[%s404 + $0x150] sm:$0xff]
        %v1319 = vld [vmem:[%s404 + $0x158] sm:$0xff]
        %v1320 = vld [vmem:[%s404 + $0x168] sm:$0xff]
        %v1321 = vld [vmem:[%s404 + $0x170] sm:$0xff]
        %v1322 = vpack.c.bf16 %v1291, %v1290
        %v1323 = vpack.c.bf16 %v1293, %v1292
        %v1324 = vpack.c.bf16 %v1295, %v1294
        %v1325 = vpack.c.bf16 %v1297, %v1296
        %v1326 = vpack.c.bf16 %v1299, %v1298
        %v1327 = vpack.c.bf16 %v1301, %v1300
        %v1328 = vpack.c.bf16 %v1303, %v1302
        %v1329 = vpack.c.bf16 %v1305, %v1304
        %v1330 = vpack.c.bf16 %v1307, %v1306
        %v1331 = vpack.c.bf16 %v1309, %v1308
        %v1332 = vpack.c.bf16 %v1311, %v1310
        %v1333 = vpack.c.bf16 %v1313, %v1312
        %v1334 = vpack.c.bf16 %v1315, %v1314
        %v1335 = vpack.c.bf16 %v1317, %v1316
        %v1336 = vpack.c.bf16 %v1319, %v1318
        %v1337 = vpack.c.bf16 %v1321, %v1320
        %s1338 = scalar_lea.vmem [#allocation6], 192
        %v1339 = vld [vmem:[%s1338] sm:$0xf]
        %v1340 = vld [vmem:[%s1338 + $0x4] sm:$0xf]
        %v1341 = vld [vmem:[%s1338 + $0x8] sm:$0xf]
        %v1342 = vld [vmem:[%s1338 + $0xc] sm:$0xf]
        %v1343 = vld [vmem:[%s1338 + $0x10] sm:$0xf]
        %v1344 = vld [vmem:[%s1338 + $0x14] sm:$0xf]
        %v1345 = vld [vmem:[%s1338 + $0x18] sm:$0xf]
        %v1346 = vld [vmem:[%s1338 + $0x1c] sm:$0xf]
        %v1347 = vld [vmem:[%s1338 + $0x20] sm:$0xf]
        %v1348 = vld [vmem:[%s1338 + $0x24] sm:$0xf]
        %v1349 = vld [vmem:[%s1338 + $0x28] sm:$0xf]
        %v1350 = vld [vmem:[%s1338 + $0x2c] sm:$0xf]
        %v1351 = vld [vmem:[%s1338 + $0x30] sm:$0xf]
        %v1352 = vld [vmem:[%s1338 + $0x34] sm:$0xf]
        %v1353 = vld [vmem:[%s1338 + $0x38] sm:$0xf]
        %v1354 = vld [vmem:[%s1338 + $0x3c] sm:$0xf]
        %v1371 = vunpack.c.l.b16 %v1339
        %v1372 = vunpack.c.l.b16 %v1340
        %v1373 = vunpack.c.l.b16 %v1341
        %v1374 = vunpack.c.l.b16 %v1342
        %v1375 = vunpack.c.l.b16 %v1343
        %v1376 = vunpack.c.l.b16 %v1344
        %v1377 = vunpack.c.l.b16 %v1345
        %v1378 = vunpack.c.l.b16 %v1346
        %v1379 = vunpack.c.l.b16 %v1347
        %v1380 = vunpack.c.l.b16 %v1348
        %v1381 = vunpack.c.l.b16 %v1349
        %v1382 = vunpack.c.l.b16 %v1350
        %v1383 = vunpack.c.l.b16 %v1351
        %v1384 = vunpack.c.l.b16 %v1352
        %v1385 = vunpack.c.l.b16 %v1353
        %v1386 = vunpack.c.l.b16 %v1354
        %v1387 = vpack.c.b16 %v1372, %v1371
        %v1388 = vpack.c.b16 %v1374, %v1373
        %v1389 = vpack.c.b16 %v1376, %v1375
        %v1390 = vpack.c.b16 %v1378, %v1377
        %v1391 = vpack.c.b16 %v1380, %v1379
        %v1392 = vpack.c.b16 %v1382, %v1381
        %v1393 = vpack.c.b16 %v1384, %v1383
        %v1394 = vpack.c.b16 %v1386, %v1385
        %1403 = vmatprep.subr.bf16.mxu0 0
        %1404 = vmatpush1.bf16.msra.mxu0 %v1387
        %1405 = vmatprep.subr.bf16.mxu0 0
        %1406 = vmatpush1.bf16.msra.mxu0 %v1388
        %1407 = vmatprep.subr.bf16.mxu0 0
        %1408 = vmatpush1.bf16.msra.mxu0 %v1389
        %1409 = vmatprep.subr.bf16.mxu0 0
        %1410 = vmatpush1.bf16.msra.mxu0 %v1390
        %1411 = vmatprep.subr.bf16.mxu0 0
        %1412 = vmatpush1.bf16.msra.mxu0 %v1391
        %1413 = vmatprep.subr.bf16.mxu0 0
        %1414 = vmatpush1.bf16.msra.mxu0 %v1392
        %1415 = vmatprep.subr.bf16.mxu0 0
        %1416 = vmatpush1.bf16.msra.mxu0 %v1393
        %1417 = vmatprep.subr.bf16.mxu0 0
        %1418 = vmatpush1.bf16.msra.mxu0 %v1394
        %1419 = vmatprep.subr.bf16.mxu0 0
        %1420 = vmatpush1.bf16.msra.mxu0 0
        %1421 = vmatprep.subr.bf16.mxu0 0
        %1422 = vmatpush1.bf16.msra.mxu0 0
        %1423 = vmatprep.subr.bf16.mxu0 0
        %1424 = vmatpush1.bf16.msra.mxu0 0
        %1425 = vmatprep.subr.bf16.mxu0 0
        %1426 = vmatpush1.bf16.msra.mxu0 0
        %1427 = vmatprep.subr.bf16.mxu0 0
        %1428 = vmatpush1.bf16.msra.mxu0 0
        %1429 = vmatprep.subr.bf16.mxu0 0
        %1430 = vmatpush1.bf16.msra.mxu0 0
        %1431 = vmatprep.subr.bf16.mxu0 0
        %1432 = vmatpush1.bf16.msra.mxu0 0
        %1433 = vmatprep.subr.bf16.mxu0 0
        %1434 = vmatpush1.bf16.msra.mxu0 0
        %1435 = vmatprep.mubr.bf16.mxu0 0
        %1436 = vmatmul.mubr.bf16.gmra.mrb[0].mxu0 %v1322
        %v1437 = vpop.f32.mrb[0].mxu0
        %v1438 = vadd.f32 0.0, %v1437
        %v1439 = vpop.f32.mrb[0].mxu0
        %v1440 = vpop.f32.mrb[0].mxu0
        %v1441 = vadd.f32 0.0, %v1440
        %v1442 = vpop.f32.mrb[0].mxu0
        %1443 = vmatprep.mubr.bf16.mxu0 0
        %1444 = vmatmul.mubr.bf16.gmra.mrb[0].mxu0 %v1323
        %v1445 = vpop.f32.mrb[0].mxu0
        %v1446 = vadd.f32 0.0, %v1445
        %v1447 = vpop.f32.mrb[0].mxu0
        %v1448 = vpop.f32.mrb[0].mxu0
        %v1449 = vadd.f32 0.0, %v1448
        %v1450 = vpop.f32.mrb[0].mxu0
        %1451 = vmatprep.mubr.bf16.mxu0 0
        %1452 = vmatmul.mubr.bf16.gmra.mrb[0].mxu0 %v1324
        %v1453 = vpop.f32.mrb[0].mxu0
        %v1454 = vadd.f32 0.0, %v1453
        %v1455 = vpop.f32.mrb[0].mxu0
        %v1456 = vpop.f32.mrb[0].mxu0
        %v1457 = vadd.f32 0.0, %v1456
        %v1458 = vpop.f32.mrb[0].mxu0
        %1459 = vmatprep.mubr.bf16.mxu0 0
        %1460 = vmatmul.mubr.bf16.gmra.mrb[0].mxu0 %v1325
        %v1461 = vpop.f32.mrb[0].mxu0
        %v1462 = vadd.f32 0.0, %v1461
        %v1463 = vpop.f32.mrb[0].mxu0
        %v1464 = vpop.f32.mrb[0].mxu0
        %v1465 = vadd.f32 0.0, %v1464
        %v1466 = vpop.f32.mrb[0].mxu0
        %1467 = vmatprep.mubr.bf16.mxu0 0
        %1468 = vmatmul.mubr.bf16.gmra.mrb[0].mxu0 %v1326
        %v1469 = vpop.f32.mrb[0].mxu0
        %v1470 = vadd.f32 0.0, %v1469
        %v1471 = vpop.f32.mrb[0].mxu0
        %v1472 = vpop.f32.mrb[0].mxu0
        %v1473 = vadd.f32 0.0, %v1472
        %v1474 = vpop.f32.mrb[0].mxu0
        %1475 = vmatprep.mubr.bf16.mxu0 0
        %1476 = vmatmul.mubr.bf16.gmra.mrb[0].mxu0 %v1327
        %v1477 = vpop.f32.mrb[0].mxu0
        %v1478 = vadd.f32 0.0, %v1477
        %v1479 = vpop.f32.mrb[0].mxu0
        %v1480 = vpop.f32.mrb[0].mxu0
        %v1481 = vadd.f32 0.0, %v1480
        %v1482 = vpop.f32.mrb[0].mxu0
        %1483 = vmatprep.mubr.bf16.mxu0 0
        %1484 = vmatmul.mubr.bf16.gmra.mrb[0].mxu0 %v1328
        %v1485 = vpop.f32.mrb[0].mxu0
        %v1486 = vadd.f32 0.0, %v1485
        %v1487 = vpop.f32.mrb[0].mxu0
        %v1488 = vpop.f32.mrb[0].mxu0
        %v1489 = vadd.f32 0.0, %v1488
        %v1490 = vpop.f32.mrb[0].mxu0
        %1491 = vmatprep.mubr.bf16.mxu0 0
        %1492 = vmatmul.mubr.bf16.gmra.mrb[0].mxu0 %v1329
        %v1493 = vpop.f32.mrb[0].mxu0
        %v1494 = vadd.f32 0.0, %v1493
        %v1495 = vpop.f32.mrb[0].mxu0
        %v1496 = vpop.f32.mrb[0].mxu0
        %v1497 = vadd.f32 0.0, %v1496
        %v1498 = vpop.f32.mrb[0].mxu0
        %1499 = vmatprep.mubr.bf16.mxu0 0
        %1500 = vmatmul.mubr.bf16.gmra.mrb[0].mxu0 %v1330
        %v1501 = vpop.f32.mrb[0].mxu0
        %v1502 = vadd.f32 0.0, %v1501
        %v1503 = vpop.f32.mrb[0].mxu0
        %v1504 = vpop.f32.mrb[0].mxu0
        %v1505 = vadd.f32 0.0, %v1504
        %v1506 = vpop.f32.mrb[0].mxu0
        %1507 = vmatprep.mubr.bf16.mxu0 0
        %1508 = vmatmul.mubr.bf16.gmra.mrb[0].mxu0 %v1331
        %v1509 = vpop.f32.mrb[0].mxu0
        %v1510 = vadd.f32 0.0, %v1509
        %v1511 = vpop.f32.mrb[0].mxu0
        %v1512 = vpop.f32.mrb[0].mxu0
        %v1513 = vadd.f32 0.0, %v1512
        %v1514 = vpop.f32.mrb[0].mxu0
        %1515 = vmatprep.mubr.bf16.mxu0 0
        %1516 = vmatmul.mubr.bf16.gmra.mrb[0].mxu0 %v1332
        %v1517 = vpop.f32.mrb[0].mxu0
        %v1518 = vadd.f32 0.0, %v1517
        %v1519 = vpop.f32.mrb[0].mxu0
        %v1520 = vpop.f32.mrb[0].mxu0
        %v1521 = vadd.f32 0.0, %v1520
        %v1522 = vpop.f32.mrb[0].mxu0
        %1523 = vmatprep.mubr.bf16.mxu0 0
        %1524 = vmatmul.mubr.bf16.gmra.mrb[0].mxu0 %v1333
        %v1525 = vpop.f32.mrb[0].mxu0
        %v1526 = vadd.f32 0.0, %v1525
        %v1527 = vpop.f32.mrb[0].mxu0
        %v1528 = vpop.f32.mrb[0].mxu0
        %v1529 = vadd.f32 0.0, %v1528
        %v1530 = vpop.f32.mrb[0].mxu0
        %1531 = vmatprep.mubr.bf16.mxu0 0
        %1532 = vmatmul.mubr.bf16.gmra.mrb[0].mxu0 %v1334
        %v1533 = vpop.f32.mrb[0].mxu0
        %v1534 = vadd.f32 0.0, %v1533
        %v1535 = vpop.f32.mrb[0].mxu0
        %v1536 = vpop.f32.mrb[0].mxu0
        %v1537 = vadd.f32 0.0, %v1536
        %v1538 = vpop.f32.mrb[0].mxu0
        %1539 = vmatprep.mubr.bf16.mxu0 0
        %1540 = vmatmul.mubr.bf16.gmra.mrb[0].mxu0 %v1335
        %v1541 = vpop.f32.mrb[0].mxu0
        %v1542 = vadd.f32 0.0, %v1541
        %v1543 = vpop.f32.mrb[0].mxu0
        %v1544 = vpop.f32.mrb[0].mxu0
        %v1545 = vadd.f32 0.0, %v1544
        %v1546 = vpop.f32.mrb[0].mxu0
        %1547 = vmatprep.mubr.bf16.mxu0 0
        %1548 = vmatmul.mubr.bf16.gmra.mrb[0].mxu0 %v1336
        %v1549 = vpop.f32.mrb[0].mxu0
        %v1550 = vadd.f32 0.0, %v1549
        %v1551 = vpop.f32.mrb[0].mxu0
        %v1552 = vpop.f32.mrb[0].mxu0
        %v1553 = vadd.f32 0.0, %v1552
        %v1554 = vpop.f32.mrb[0].mxu0
        %1555 = vmatprep.mubr.bf16.mxu0 0
        %1556 = vmatmul.mubr.bf16.gmra.mrb[0].mxu0 %v1337
        %v1557 = vpop.f32.mrb[0].mxu0
        %v1558 = vadd.f32 0.0, %v1557
        %v1559 = vpop.f32.mrb[0].mxu0
        %v1560 = vpop.f32.mrb[0].mxu0
        %v1561 = vadd.f32 0.0, %v1560
        %v1562 = vpop.f32.mrb[0].mxu0
        %1563 = vdwg.mxu0
        %v1564 = vadd.f32 %v1258, %v1438
        %v1565 = vadd.f32 %v1259, %v1441
        %v1566 = vadd.f32 %v1260, %v1446
        %v1567 = vadd.f32 %v1261, %v1449
        %v1568 = vadd.f32 %v1262, %v1454
        %v1569 = vadd.f32 %v1263, %v1457
        %v1570 = vadd.f32 %v1264, %v1462
        %v1571 = vadd.f32 %v1265, %v1465
        %v1572 = vadd.f32 %v1266, %v1470
        %v1573 = vadd.f32 %v1267, %v1473
        %v1574 = vadd.f32 %v1268, %v1478
        %v1575 = vadd.f32 %v1269, %v1481
        %v1576 = vadd.f32 %v1270, %v1486
        %v1577 = vadd.f32 %v1271, %v1489
        %v1578 = vadd.f32 %v1272, %v1494
        %v1579 = vadd.f32 %v1273, %v1497
        %v1580 = vadd.f32 %v1274, %v1502
        %v1581 = vadd.f32 %v1275, %v1505
        %v1582 = vadd.f32 %v1276, %v1510
        %v1583 = vadd.f32 %v1277, %v1513
        %v1584 = vadd.f32 %v1278, %v1518
        %v1585 = vadd.f32 %v1279, %v1521
        %v1586 = vadd.f32 %v1280, %v1526
        %v1587 = vadd.f32 %v1281, %v1529
        %v1588 = vadd.f32 %v1282, %v1534
        %v1589 = vadd.f32 %v1283, %v1537
        %v1590 = vadd.f32 %v1284, %v1542
        %v1591 = vadd.f32 %v1285, %v1545
        %v1592 = vadd.f32 %v1286, %v1550
        %v1593 = vadd.f32 %v1287, %v1553
        %v1594 = vadd.f32 %v1288, %v1558
        %v1595 = vadd.f32 %v1289, %v1561
        %v1596 = vld [vmem:[%s404 + $0x1] sm:$0xff]
        %v1597 = vld [vmem:[%s404 + $0x9] sm:$0xff]
        %v1598 = vld [vmem:[%s404 + $0x19] sm:$0xff]
        %v1599 = vld [vmem:[%s404 + $0x21] sm:$0xff]
        %v1600 = vld [vmem:[%s404 + $0x31] sm:$0xff]
        %v1601 = vld [vmem:[%s404 + $0x39] sm:$0xff]
        %v1602 = vld [vmem:[%s404 + $0x49] sm:$0xff]
        %v1603 = vld [vmem:[%s404 + $0x51] sm:$0xff]
        %v1604 = vld [vmem:[%s404 + $0x61] sm:$0xff]
        %v1605 = vld [vmem:[%s404 + $0x69] sm:$0xff]
        %v1606 = vld [vmem:[%s404 + $0x79] sm:$0xff]
        %v1607 = vld [vmem:[%s404 + $0x81] sm:$0xff]
        %v1608 = vld [vmem:[%s404 + $0x91] sm:$0xff]
        %v1609 = vld [vmem:[%s404 + $0x99] sm:$0xff]
        %v1610 = vld [vmem:[%s404 + $0xa9] sm:$0xff]
        %v1611 = vld [vmem:[%s404 + $0xb1] sm:$0xff]
        %v1612 = vld [vmem:[%s404 + $0xc1] sm:$0xff]
        %v1613 = vld [vmem:[%s404 + $0xc9] sm:$0xff]
        %v1614 = vld [vmem:[%s404 + $0xd9] sm:$0xff]
        %v1615 = vld [vmem:[%s404 + $0xe1] sm:$0xff]
        %v1616 = vld [vmem:[%s404 + $0xf1] sm:$0xff]
        %v1617 = vld [vmem:[%s404 + $0xf9] sm:$0xff]
        %v1618 = vld [vmem:[%s404 + $0x109] sm:$0xff]
        %v1619 = vld [vmem:[%s404 + $0x111] sm:$0xff]
        %v1620 = vld [vmem:[%s404 + $0x121] sm:$0xff]
        %v1621 = vld [vmem:[%s404 + $0x129] sm:$0xff]
        %v1622 = vld [vmem:[%s404 + $0x139] sm:$0xff]
        %v1623 = vld [vmem:[%s404 + $0x141] sm:$0xff]
        %v1624 = vld [vmem:[%s404 + $0x151] sm:$0xff]
        %v1625 = vld [vmem:[%s404 + $0x159] sm:$0xff]
        %v1626 = vld [vmem:[%s404 + $0x169] sm:$0xff]
        %v1627 = vld [vmem:[%s404 + $0x171] sm:$0xff]
        %v1628 = vpack.c.bf16 %v1597, %v1596
        %v1629 = vpack.c.bf16 %v1599, %v1598
        %v1630 = vpack.c.bf16 %v1601, %v1600
        %v1631 = vpack.c.bf16 %v1603, %v1602
        %v1632 = vpack.c.bf16 %v1605, %v1604
        %v1633 = vpack.c.bf16 %v1607, %v1606
        %v1634 = vpack.c.bf16 %v1609, %v1608
        %v1635 = vpack.c.bf16 %v1611, %v1610
        %v1636 = vpack.c.bf16 %v1613, %v1612
        %v1637 = vpack.c.bf16 %v1615, %v1614
        %v1638 = vpack.c.bf16 %v1617, %v1616
        %v1639 = vpack.c.bf16 %v1619, %v1618
        %v1640 = vpack.c.bf16 %v1621, %v1620
        %v1641 = vpack.c.bf16 %v1623, %v1622
        %v1642 = vpack.c.bf16 %v1625, %v1624
        %v1643 = vpack.c.bf16 %v1627, %v1626
        %s1644 = scalar_lea.vmem [#allocation6], 256
        %v1645 = vld [vmem:[%s1644] sm:$0xf]
        %v1646 = vld [vmem:[%s1644 + $0x4] sm:$0xf]
        %v1647 = vld [vmem:[%s1644 + $0x8] sm:$0xf]
        %v1648 = vld [vmem:[%s1644 + $0xc] sm:$0xf]
        %v1649 = vld [vmem:[%s1644 + $0x10] sm:$0xf]
        %v1650 = vld [vmem:[%s1644 + $0x14] sm:$0xf]
        %v1651 = vld [vmem:[%s1644 + $0x18] sm:$0xf]
        %v1652 = vld [vmem:[%s1644 + $0x1c] sm:$0xf]
        %v1653 = vld [vmem:[%s1644 + $0x20] sm:$0xf]
        %v1654 = vld [vmem:[%s1644 + $0x24] sm:$0xf]
        %v1655 = vld [vmem:[%s1644 + $0x28] sm:$0xf]
        %v1656 = vld [vmem:[%s1644 + $0x2c] sm:$0xf]
        %v1657 = vld [vmem:[%s1644 + $0x30] sm:$0xf]
        %v1658 = vld [vmem:[%s1644 + $0x34] sm:$0xf]
        %v1659 = vld [vmem:[%s1644 + $0x38] sm:$0xf]
        %v1660 = vld [vmem:[%s1644 + $0x3c] sm:$0xf]
        %v1677 = vunpack.c.l.b16 %v1645
        %v1678 = vunpack.c.l.b16 %v1646
        %v1679 = vunpack.c.l.b16 %v1647
        %v1680 = vunpack.c.l.b16 %v1648
        %v1681 = vunpack.c.l.b16 %v1649
        %v1682 = vunpack.c.l.b16 %v1650
        %v1683 = vunpack.c.l.b16 %v1651
        %v1684 = vunpack.c.l.b16 %v1652
        %v1685 = vunpack.c.l.b16 %v1653
        %v1686 = vunpack.c.l.b16 %v1654
        %v1687 = vunpack.c.l.b16 %v1655
        %v1688 = vunpack.c.l.b16 %v1656
        %v1689 = vunpack.c.l.b16 %v1657
        %v1690 = vunpack.c.l.b16 %v1658
        %v1691 = vunpack.c.l.b16 %v1659
        %v1692 = vunpack.c.l.b16 %v1660
        %v1693 = vpack.c.b16 %v1678, %v1677
        %v1694 = vpack.c.b16 %v1680, %v1679
        %v1695 = vpack.c.b16 %v1682, %v1681
        %v1696 = vpack.c.b16 %v1684, %v1683
        %v1697 = vpack.c.b16 %v1686, %v1685
        %v1698 = vpack.c.b16 %v1688, %v1687
        %v1699 = vpack.c.b16 %v1690, %v1689
        %v1700 = vpack.c.b16 %v1692, %v1691
        %1709 = vmatprep.subr.bf16.mxu0 0
        %1710 = vmatpush1.bf16.msra.mxu0 %v1693
        %1711 = vmatprep.subr.bf16.mxu0 0
        %1712 = vmatpush1.bf16.msra.mxu0 %v1694
        %1713 = vmatprep.subr.bf16.mxu0 0
        %1714 = vmatpush1.bf16.msra.mxu0 %v1695
        %1715 = vmatprep.subr.bf16.mxu0 0
        %1716 = vmatpush1.bf16.msra.mxu0 %v1696
        %1717 = vmatprep.subr.bf16.mxu0 0
        %1718 = vmatpush1.bf16.msra.mxu0 %v1697
        %1719 = vmatprep.subr.bf16.mxu0 0
        %1720 = vmatpush1.bf16.msra.mxu0 %v1698
        %1721 = vmatprep.subr.bf16.mxu0 0
        %1722 = vmatpush1.bf16.msra.mxu0 %v1699
        %1723 = vmatprep.subr.bf16.mxu0 0
        %1724 = vmatpush1.bf16.msra.mxu0 %v1700
        %1725 = vmatprep.subr.bf16.mxu0 0
        %1726 = vmatpush1.bf16.msra.mxu0 0
        %1727 = vmatprep.subr.bf16.mxu0 0
        %1728 = vmatpush1.bf16.msra.mxu0 0
        %1729 = vmatprep.subr.bf16.mxu0 0
        %1730 = vmatpush1.bf16.msra.mxu0 0
        %1731 = vmatprep.subr.bf16.mxu0 0
        %1732 = vmatpush1.bf16.msra.mxu0 0
        %1733 = vmatprep.subr.bf16.mxu0 0
        %1734 = vmatpush1.bf16.msra.mxu0 0
        %1735 = vmatprep.subr.bf16.mxu0 0
        %1736 = vmatpush1.bf16.msra.mxu0 0
        %1737 = vmatprep.subr.bf16.mxu0 0
        %1738 = vmatpush1.bf16.msra.mxu0 0
        %1739 = vmatprep.subr.bf16.mxu0 0
        %1740 = vmatpush1.bf16.msra.mxu0 0
        %1741 = vmatprep.mubr.bf16.mxu0 0
        %1742 = vmatmul.mubr.bf16.gmra.mrb[0].mxu0 %v1628
        %v1743 = vpop.f32.mrb[0].mxu0
        %v1744 = vadd.f32 0.0, %v1743
        %v1745 = vpop.f32.mrb[0].mxu0
        %v1746 = vpop.f32.mrb[0].mxu0
        %v1747 = vadd.f32 0.0, %v1746
        %v1748 = vpop.f32.mrb[0].mxu0
        %1749 = vmatprep.mubr.bf16.mxu0 0
        %1750 = vmatmul.mubr.bf16.gmra.mrb[0].mxu0 %v1629
        %v1751 = vpop.f32.mrb[0].mxu0
        %v1752 = vadd.f32 0.0, %v1751
        %v1753 = vpop.f32.mrb[0].mxu0
        %v1754 = vpop.f32.mrb[0].mxu0
        %v1755 = vadd.f32 0.0, %v1754
        %v1756 = vpop.f32.mrb[0].mxu0
        %1757 = vmatprep.mubr.bf16.mxu0 0
        %1758 = vmatmul.mubr.bf16.gmra.mrb[0].mxu0 %v1630
        %v1759 = vpop.f32.mrb[0].mxu0
        %v1760 = vadd.f32 0.0, %v1759
        %v1761 = vpop.f32.mrb[0].mxu0
        %v1762 = vpop.f32.mrb[0].mxu0
        %v1763 = vadd.f32 0.0, %v1762
        %v1764 = vpop.f32.mrb[0].mxu0
        %1765 = vmatprep.mubr.bf16.mxu0 0
        %1766 = vmatmul.mubr.bf16.gmra.mrb[0].mxu0 %v1631
        %v1767 = vpop.f32.mrb[0].mxu0
        %v1768 = vadd.f32 0.0, %v1767
        %v1769 = vpop.f32.mrb[0].mxu0
        %v1770 = vpop.f32.mrb[0].mxu0
        %v1771 = vadd.f32 0.0, %v1770
        %v1772 = vpop.f32.mrb[0].mxu0
        %1773 = vmatprep.mubr.bf16.mxu0 0
        %1774 = vmatmul.mubr.bf16.gmra.mrb[0].mxu0 %v1632
        %v1775 = vpop.f32.mrb[0].mxu0
        %v1776 = vadd.f32 0.0, %v1775
        %v1777 = vpop.f32.mrb[0].mxu0
        %v1778 = vpop.f32.mrb[0].mxu0
        %v1779 = vadd.f32 0.0, %v1778
        %v1780 = vpop.f32.mrb[0].mxu0
        %1781 = vmatprep.mubr.bf16.mxu0 0
        %1782 = vmatmul.mubr.bf16.gmra.mrb[0].mxu0 %v1633
        %v1783 = vpop.f32.mrb[0].mxu0
        %v1784 = vadd.f32 0.0, %v1783
        %v1785 = vpop.f32.mrb[0].mxu0
        %v1786 = vpop.f32.mrb[0].mxu0
        %v1787 = vadd.f32 0.0, %v1786
        %v1788 = vpop.f32.mrb[0].mxu0
        %1789 = vmatprep.mubr.bf16.mxu0 0
        %1790 = vmatmul.mubr.bf16.gmra.mrb[0].mxu0 %v1634
        %v1791 = vpop.f32.mrb[0].mxu0
        %v1792 = vadd.f32 0.0, %v1791
        %v1793 = vpop.f32.mrb[0].mxu0
        %v1794 = vpop.f32.mrb[0].mxu0
        %v1795 = vadd.f32 0.0, %v1794
        %v1796 = vpop.f32.mrb[0].mxu0
        %1797 = vmatprep.mubr.bf16.mxu0 0
        %1798 = vmatmul.mubr.bf16.gmra.mrb[0].mxu0 %v1635
        %v1799 = vpop.f32.mrb[0].mxu0
        %v1800 = vadd.f32 0.0, %v1799
        %v1801 = vpop.f32.mrb[0].mxu0
        %v1802 = vpop.f32.mrb[0].mxu0
        %v1803 = vadd.f32 0.0, %v1802
        %v1804 = vpop.f32.mrb[0].mxu0
        %1805 = vmatprep.mubr.bf16.mxu0 0
        %1806 = vmatmul.mubr.bf16.gmra.mrb[0].mxu0 %v1636
        %v1807 = vpop.f32.mrb[0].mxu0
        %v1808 = vadd.f32 0.0, %v1807
        %v1809 = vpop.f32.mrb[0].mxu0
        %v1810 = vpop.f32.mrb[0].mxu0
        %v1811 = vadd.f32 0.0, %v1810
        %v1812 = vpop.f32.mrb[0].mxu0
        %1813 = vmatprep.mubr.bf16.mxu0 0
        %1814 = vmatmul.mubr.bf16.gmra.mrb[0].mxu0 %v1637
        %v1815 = vpop.f32.mrb[0].mxu0
        %v1816 = vadd.f32 0.0, %v1815
        %v1817 = vpop.f32.mrb[0].mxu0
        %v1818 = vpop.f32.mrb[0].mxu0
        %v1819 = vadd.f32 0.0, %v1818
        %v1820 = vpop.f32.mrb[0].mxu0
        %1821 = vmatprep.mubr.bf16.mxu0 0
        %1822 = vmatmul.mubr.bf16.gmra.mrb[0].mxu0 %v1638
        %v1823 = vpop.f32.mrb[0].mxu0
        %v1824 = vadd.f32 0.0, %v1823
        %v1825 = vpop.f32.mrb[0].mxu0
        %v1826 = vpop.f32.mrb[0].mxu0
        %v1827 = vadd.f32 0.0, %v1826
        %v1828 = vpop.f32.mrb[0].mxu0
        %1829 = vmatprep.mubr.bf16.mxu0 0
        %1830 = vmatmul.mubr.bf16.gmra.mrb[0].mxu0 %v1639
        %v1831 = vpop.f32.mrb[0].mxu0
        %v1832 = vadd.f32 0.0, %v1831
        %v1833 = vpop.f32.mrb[0].mxu0
        %v1834 = vpop.f32.mrb[0].mxu0
        %v1835 = vadd.f32 0.0, %v1834
        %v1836 = vpop.f32.mrb[0].mxu0
        %1837 = vmatprep.mubr.bf16.mxu0 0
        %1838 = vmatmul.mubr.bf16.gmra.mrb[0].mxu0 %v1640
        %v1839 = vpop.f32.mrb[0].mxu0
        %v1840 = vadd.f32 0.0, %v1839
        %v1841 = vpop.f32.mrb[0].mxu0
        %v1842 = vpop.f32.mrb[0].mxu0
        %v1843 = vadd.f32 0.0, %v1842
        %v1844 = vpop.f32.mrb[0].mxu0
        %1845 = vmatprep.mubr.bf16.mxu0 0
        %1846 = vmatmul.mubr.bf16.gmra.mrb[0].mxu0 %v1641
        %v1847 = vpop.f32.mrb[0].mxu0
        %v1848 = vadd.f32 0.0, %v1847
        %v1849 = vpop.f32.mrb[0].mxu0
        %v1850 = vpop.f32.mrb[0].mxu0
        %v1851 = vadd.f32 0.0, %v1850
        %v1852 = vpop.f32.mrb[0].mxu0
        %1853 = vmatprep.mubr.bf16.mxu0 0
        %1854 = vmatmul.mubr.bf16.gmra.mrb[0].mxu0 %v1642
        %v1855 = vpop.f32.mrb[0].mxu0
        %v1856 = vadd.f32 0.0, %v1855
        %v1857 = vpop.f32.mrb[0].mxu0
        %v1858 = vpop.f32.mrb[0].mxu0
        %v1859 = vadd.f32 0.0, %v1858
        %v1860 = vpop.f32.mrb[0].mxu0
        %1861 = vmatprep.mubr.bf16.mxu0 0
        %1862 = vmatmul.mubr.bf16.gmra.mrb[0].mxu0 %v1643
        %v1863 = vpop.f32.mrb[0].mxu0
        %v1864 = vadd.f32 0.0, %v1863
        %v1865 = vpop.f32.mrb[0].mxu0
        %v1866 = vpop.f32.mrb[0].mxu0
        %v1867 = vadd.f32 0.0, %v1866
        %v1868 = vpop.f32.mrb[0].mxu0
        %1869 = vdwg.mxu0
        %v1870 = vadd.f32 %v1564, %v1744
        %v1871 = vadd.f32 %v1565, %v1747
        %v1872 = vadd.f32 %v1566, %v1752
        %v1873 = vadd.f32 %v1567, %v1755
        %v1874 = vadd.f32 %v1568, %v1760
        %v1875 = vadd.f32 %v1569, %v1763
        %v1876 = vadd.f32 %v1570, %v1768
        %v1877 = vadd.f32 %v1571, %v1771
        %v1878 = vadd.f32 %v1572, %v1776
        %v1879 = vadd.f32 %v1573, %v1779
        %v1880 = vadd.f32 %v1574, %v1784
        %v1881 = vadd.f32 %v1575, %v1787
        %v1882 = vadd.f32 %v1576, %v1792
        %v1883 = vadd.f32 %v1577, %v1795
        %v1884 = vadd.f32 %v1578, %v1800
        %v1885 = vadd.f32 %v1579, %v1803
        %v1886 = vadd.f32 %v1580, %v1808
        %v1887 = vadd.f32 %v1581, %v1811
        %v1888 = vadd.f32 %v1582, %v1816
        %v1889 = vadd.f32 %v1583, %v1819
        %v1890 = vadd.f32 %v1584, %v1824
        %v1891 = vadd.f32 %v1585, %v1827
        %v1892 = vadd.f32 %v1586, %v1832
        %v1893 = vadd.f32 %v1587, %v1835
        %v1894 = vadd.f32 %v1588, %v1840
        %v1895 = vadd.f32 %v1589, %v1843
        %v1896 = vadd.f32 %v1590, %v1848
        %v1897 = vadd.f32 %v1591, %v1851
        %v1898 = vadd.f32 %v1592, %v1856
        %v1899 = vadd.f32 %v1593, %v1859
        %v1900 = vadd.f32 %v1594, %v1864
        %v1901 = vadd.f32 %v1595, %v1867
        %v1902 = vld [vmem:[%s404 + $0x2] sm:$0xff]
        %v1903 = vld [vmem:[%s404 + $0xa] sm:$0xff]
        %v1904 = vld [vmem:[%s404 + $0x1a] sm:$0xff]
        %v1905 = vld [vmem:[%s404 + $0x22] sm:$0xff]
        %v1906 = vld [vmem:[%s404 + $0x32] sm:$0xff]
        %v1907 = vld [vmem:[%s404 + $0x3a] sm:$0xff]
        %v1908 = vld [vmem:[%s404 + $0x4a] sm:$0xff]
        %v1909 = vld [vmem:[%s404 + $0x52] sm:$0xff]
        %v1910 = vld [vmem:[%s404 + $0x62] sm:$0xff]
        %v1911 = vld [vmem:[%s404 + $0x6a] sm:$0xff]
        %v1912 = vld [vmem:[%s404 + $0x7a] sm:$0xff]
        %v1913 = vld [vmem:[%s404 + $0x82] sm:$0xff]
        %v1914 = vld [vmem:[%s404 + $0x92] sm:$0xff]
        %v1915 = vld [vmem:[%s404 + $0x9a] sm:$0xff]
        %v1916 = vld [vmem:[%s404 + $0xaa] sm:$0xff]
        %v1917 = vld [vmem:[%s404 + $0xb2] sm:$0xff]
        %v1918 = vld [vmem:[%s404 + $0xc2] sm:$0xff]
        %v1919 = vld [vmem:[%s404 + $0xca] sm:$0xff]
        %v1920 = vld [vmem:[%s404 + $0xda] sm:$0xff]
        %v1921 = vld [vmem:[%s404 + $0xe2] sm:$0xff]
        %v1922 = vld [vmem:[%s404 + $0xf2] sm:$0xff]
        %v1923 = vld [vmem:[%s404 + $0xfa] sm:$0xff]
        %v1924 = vld [vmem:[%s404 + $0x10a] sm:$0xff]
        %v1925 = vld [vmem:[%s404 + $0x112] sm:$0xff]
        %v1926 = vld [vmem:[%s404 + $0x122] sm:$0xff]
        %v1927 = vld [vmem:[%s404 + $0x12a] sm:$0xff]
        %v1928 = vld [vmem:[%s404 + $0x13a] sm:$0xff]
        %v1929 = vld [vmem:[%s404 + $0x142] sm:$0xff]
        %v1930 = vld [vmem:[%s404 + $0x152] sm:$0xff]
        %v1931 = vld [vmem:[%s404 + $0x15a] sm:$0xff]
        %v1932 = vld [vmem:[%s404 + $0x16a] sm:$0xff]
        %v1933 = vld [vmem:[%s404 + $0x172] sm:$0xff]
        %v1934 = vpack.c.bf16 %v1903, %v1902
        %v1935 = vpack.c.bf16 %v1905, %v1904
        %v1936 = vpack.c.bf16 %v1907, %v1906
        %v1937 = vpack.c.bf16 %v1909, %v1908
        %v1938 = vpack.c.bf16 %v1911, %v1910
        %v1939 = vpack.c.bf16 %v1913, %v1912
        %v1940 = vpack.c.bf16 %v1915, %v1914
        %v1941 = vpack.c.bf16 %v1917, %v1916
        %v1942 = vpack.c.bf16 %v1919, %v1918
        %v1943 = vpack.c.bf16 %v1921, %v1920
        %v1944 = vpack.c.bf16 %v1923, %v1922
        %v1945 = vpack.c.bf16 %v1925, %v1924
        %v1946 = vpack.c.bf16 %v1927, %v1926
        %v1947 = vpack.c.bf16 %v1929, %v1928
        %v1948 = vpack.c.bf16 %v1931, %v1930
        %v1949 = vpack.c.bf16 %v1933, %v1932
        %s1950 = scalar_lea.vmem [#allocation6], 320
        %v1951 = vld [vmem:[%s1950] sm:$0xf]
        %v1952 = vld [vmem:[%s1950 + $0x4] sm:$0xf]
        %v1953 = vld [vmem:[%s1950 + $0x8] sm:$0xf]
        %v1954 = vld [vmem:[%s1950 + $0xc] sm:$0xf]
        %v1955 = vld [vmem:[%s1950 + $0x10] sm:$0xf]
        %v1956 = vld [vmem:[%s1950 + $0x14] sm:$0xf]
        %v1957 = vld [vmem:[%s1950 + $0x18] sm:$0xf]
        %v1958 = vld [vmem:[%s1950 + $0x1c] sm:$0xf]
        %v1959 = vld [vmem:[%s1950 + $0x20] sm:$0xf]
        %v1960 = vld [vmem:[%s1950 + $0x24] sm:$0xf]
        %v1961 = vld [vmem:[%s1950 + $0x28] sm:$0xf]
        %v1962 = vld [vmem:[%s1950 + $0x2c] sm:$0xf]
        %v1963 = vld [vmem:[%s1950 + $0x30] sm:$0xf]
        %v1964 = vld [vmem:[%s1950 + $0x34] sm:$0xf]
        %v1965 = vld [vmem:[%s1950 + $0x38] sm:$0xf]
        %v1966 = vld [vmem:[%s1950 + $0x3c] sm:$0xf]
        %v1983 = vunpack.c.l.b16 %v1951
        %v1984 = vunpack.c.l.b16 %v1952
        %v1985 = vunpack.c.l.b16 %v1953
        %v1986 = vunpack.c.l.b16 %v1954
        %v1987 = vunpack.c.l.b16 %v1955
        %v1988 = vunpack.c.l.b16 %v1956
        %v1989 = vunpack.c.l.b16 %v1957
        %v1990 = vunpack.c.l.b16 %v1958
        %v1991 = vunpack.c.l.b16 %v1959
        %v1992 = vunpack.c.l.b16 %v1960
        %v1993 = vunpack.c.l.b16 %v1961
        %v1994 = vunpack.c.l.b16 %v1962
        %v1995 = vunpack.c.l.b16 %v1963
        %v1996 = vunpack.c.l.b16 %v1964
        %v1997 = vunpack.c.l.b16 %v1965
        %v1998 = vunpack.c.l.b16 %v1966
        %v1999 = vpack.c.b16 %v1984, %v1983
        %v2000 = vpack.c.b16 %v1986, %v1985
        %v2001 = vpack.c.b16 %v1988, %v1987
        %v2002 = vpack.c.b16 %v1990, %v1989
        %v2003 = vpack.c.b16 %v1992, %v1991
        %v2004 = vpack.c.b16 %v1994, %v1993
        %v2005 = vpack.c.b16 %v1996, %v1995
        %v2006 = vpack.c.b16 %v1998, %v1997
        %2015 = vmatprep.subr.bf16.mxu0 0
        %2016 = vmatpush1.bf16.msra.mxu0 %v1999
        %2017 = vmatprep.subr.bf16.mxu0 0
        %2018 = vmatpush1.bf16.msra.mxu0 %v2000
        %2019 = vmatprep.subr.bf16.mxu0 0
        %2020 = vmatpush1.bf16.msra.mxu0 %v2001
        %2021 = vmatprep.subr.bf16.mxu0 0
        %2022 = vmatpush1.bf16.msra.mxu0 %v2002
        %2023 = vmatprep.subr.bf16.mxu0 0
        %2024 = vmatpush1.bf16.msra.mxu0 %v2003
        %2025 = vmatprep.subr.bf16.mxu0 0
        %2026 = vmatpush1.bf16.msra.mxu0 %v2004
        %2027 = vmatprep.subr.bf16.mxu0 0
        %2028 = vmatpush1.bf16.msra.mxu0 %v2005
        %2029 = vmatprep.subr.bf16.mxu0 0
        %2030 = vmatpush1.bf16.msra.mxu0 %v2006
        %2031 = vmatprep.subr.bf16.mxu0 0
        %2032 = vmatpush1.bf16.msra.mxu0 0
        %2033 = vmatprep.subr.bf16.mxu0 0
        %2034 = vmatpush1.bf16.msra.mxu0 0
        %2035 = vmatprep.subr.bf16.mxu0 0
        %2036 = vmatpush1.bf16.msra.mxu0 0
        %2037 = vmatprep.subr.bf16.mxu0 0
        %2038 = vmatpush1.bf16.msra.mxu0 0
        %2039 = vmatprep.subr.bf16.mxu0 0
        %2040 = vmatpush1.bf16.msra.mxu0 0
        %2041 = vmatprep.subr.bf16.mxu0 0
        %2042 = vmatpush1.bf16.msra.mxu0 0
        %2043 = vmatprep.subr.bf16.mxu0 0
        %2044 = vmatpush1.bf16.msra.mxu0 0
        %2045 = vmatprep.subr.bf16.mxu0 0
        %2046 = vmatpush1.bf16.msra.mxu0 0
        %2047 = vmatprep.mubr.bf16.mxu0 0
        %2048 = vmatmul.mubr.bf16.gmra.mrb[0].mxu0 %v1934
        %v2049 = vpop.f32.mrb[0].mxu0
        %v2050 = vadd.f32 0.0, %v2049
        %v2051 = vpop.f32.mrb[0].mxu0
        %v2052 = vpop.f32.mrb[0].mxu0
        %v2053 = vadd.f32 0.0, %v2052
        %v2054 = vpop.f32.mrb[0].mxu0
        %2055 = vmatprep.mubr.bf16.mxu0 0
        %2056 = vmatmul.mubr.bf16.gmra.mrb[0].mxu0 %v1935
        %v2057 = vpop.f32.mrb[0].mxu0
        %v2058 = vadd.f32 0.0, %v2057
        %v2059 = vpop.f32.mrb[0].mxu0
        %v2060 = vpop.f32.mrb[0].mxu0
        %v2061 = vadd.f32 0.0, %v2060
        %v2062 = vpop.f32.mrb[0].mxu0
        %2063 = vmatprep.mubr.bf16.mxu0 0
        %2064 = vmatmul.mubr.bf16.gmra.mrb[0].mxu0 %v1936
        %v2065 = vpop.f32.mrb[0].mxu0
        %v2066 = vadd.f32 0.0, %v2065
        %v2067 = vpop.f32.mrb[0].mxu0
        %v2068 = vpop.f32.mrb[0].mxu0
        %v2069 = vadd.f32 0.0, %v2068
        %v2070 = vpop.f32.mrb[0].mxu0
        %2071 = vmatprep.mubr.bf16.mxu0 0
        %2072 = vmatmul.mubr.bf16.gmra.mrb[0].mxu0 %v1937
        %v2073 = vpop.f32.mrb[0].mxu0
        %v2074 = vadd.f32 0.0, %v2073
        %v2075 = vpop.f32.mrb[0].mxu0
        %v2076 = vpop.f32.mrb[0].mxu0
        %v2077 = vadd.f32 0.0, %v2076
        %v2078 = vpop.f32.mrb[0].mxu0
        %2079 = vmatprep.mubr.bf16.mxu0 0
        %2080 = vmatmul.mubr.bf16.gmra.mrb[0].mxu0 %v1938
        %v2081 = vpop.f32.mrb[0].mxu0
        %v2082 = vadd.f32 0.0, %v2081
        %v2083 = vpop.f32.mrb[0].mxu0
        %v2084 = vpop.f32.mrb[0].mxu0
        %v2085 = vadd.f32 0.0, %v2084
        %v2086 = vpop.f32.mrb[0].mxu0
        %2087 = vmatprep.mubr.bf16.mxu0 0
        %2088 = vmatmul.mubr.bf16.gmra.mrb[0].mxu0 %v1939
        %v2089 = vpop.f32.mrb[0].mxu0
        %v2090 = vadd.f32 0.0, %v2089
        %v2091 = vpop.f32.mrb[0].mxu0
        %v2092 = vpop.f32.mrb[0].mxu0
        %v2093 = vadd.f32 0.0, %v2092
        %v2094 = vpop.f32.mrb[0].mxu0
        %2095 = vmatprep.mubr.bf16.mxu0 0
        %2096 = vmatmul.mubr.bf16.gmra.mrb[0].mxu0 %v1940
        %v2097 = vpop.f32.mrb[0].mxu0
        %v2098 = vadd.f32 0.0, %v2097
        %v2099 = vpop.f32.mrb[0].mxu0
        %v2100 = vpop.f32.mrb[0].mxu0
        %v2101 = vadd.f32 0.0, %v2100
        %v2102 = vpop.f32.mrb[0].mxu0
        %2103 = vmatprep.mubr.bf16.mxu0 0
        %2104 = vmatmul.mubr.bf16.gmra.mrb[0].mxu0 %v1941
        %v2105 = vpop.f32.mrb[0].mxu0
        %v2106 = vadd.f32 0.0, %v2105
        %v2107 = vpop.f32.mrb[0].mxu0
        %v2108 = vpop.f32.mrb[0].mxu0
        %v2109 = vadd.f32 0.0, %v2108
        %v2110 = vpop.f32.mrb[0].mxu0
        %2111 = vmatprep.mubr.bf16.mxu0 0
        %2112 = vmatmul.mubr.bf16.gmra.mrb[0].mxu0 %v1942
        %v2113 = vpop.f32.mrb[0].mxu0
        %v2114 = vadd.f32 0.0, %v2113
        %v2115 = vpop.f32.mrb[0].mxu0
        %v2116 = vpop.f32.mrb[0].mxu0
        %v2117 = vadd.f32 0.0, %v2116
        %v2118 = vpop.f32.mrb[0].mxu0
        %2119 = vmatprep.mubr.bf16.mxu0 0
        %2120 = vmatmul.mubr.bf16.gmra.mrb[0].mxu0 %v1943
        %v2121 = vpop.f32.mrb[0].mxu0
        %v2122 = vadd.f32 0.0, %v2121
        %v2123 = vpop.f32.mrb[0].mxu0
        %v2124 = vpop.f32.mrb[0].mxu0
        %v2125 = vadd.f32 0.0, %v2124
        %v2126 = vpop.f32.mrb[0].mxu0
        %2127 = vmatprep.mubr.bf16.mxu0 0
        %2128 = vmatmul.mubr.bf16.gmra.mrb[0].mxu0 %v1944
        %v2129 = vpop.f32.mrb[0].mxu0
        %v2130 = vadd.f32 0.0, %v2129
        %v2131 = vpop.f32.mrb[0].mxu0
        %v2132 = vpop.f32.mrb[0].mxu0
        %v2133 = vadd.f32 0.0, %v2132
        %v2134 = vpop.f32.mrb[0].mxu0
        %2135 = vmatprep.mubr.bf16.mxu0 0
        %2136 = vmatmul.mubr.bf16.gmra.mrb[0].mxu0 %v1945
        %v2137 = vpop.f32.mrb[0].mxu0
        %v2138 = vadd.f32 0.0, %v2137
        %v2139 = vpop.f32.mrb[0].mxu0
        %v2140 = vpop.f32.mrb[0].mxu0
        %v2141 = vadd.f32 0.0, %v2140
        %v2142 = vpop.f32.mrb[0].mxu0
        %2143 = vmatprep.mubr.bf16.mxu0 0
        %2144 = vmatmul.mubr.bf16.gmra.mrb[0].mxu0 %v1946
        %v2145 = vpop.f32.mrb[0].mxu0
        %v2146 = vadd.f32 0.0, %v2145
        %v2147 = vpop.f32.mrb[0].mxu0
        %v2148 = vpop.f32.mrb[0].mxu0
        %v2149 = vadd.f32 0.0, %v2148
        %v2150 = vpop.f32.mrb[0].mxu0
        %2151 = vmatprep.mubr.bf16.mxu0 0
        %2152 = vmatmul.mubr.bf16.gmra.mrb[0].mxu0 %v1947
        %v2153 = vpop.f32.mrb[0].mxu0
        %v2154 = vadd.f32 0.0, %v2153
        %v2155 = vpop.f32.mrb[0].mxu0
        %v2156 = vpop.f32.mrb[0].mxu0
        %v2157 = vadd.f32 0.0, %v2156
        %v2158 = vpop.f32.mrb[0].mxu0
        %2159 = vmatprep.mubr.bf16.mxu0 0
        %2160 = vmatmul.mubr.bf16.gmra.mrb[0].mxu0 %v1948
        %v2161 = vpop.f32.mrb[0].mxu0
        %v2162 = vadd.f32 0.0, %v2161
        %v2163 = vpop.f32.mrb[0].mxu0
        %v2164 = vpop.f32.mrb[0].mxu0
        %v2165 = vadd.f32 0.0, %v2164
        %v2166 = vpop.f32.mrb[0].mxu0
        %2167 = vmatprep.mubr.bf16.mxu0 0
        %2168 = vmatmul.mubr.bf16.gmra.mrb[0].mxu0 %v1949
        %v2169 = vpop.f32.mrb[0].mxu0
        %v2170 = vadd.f32 0.0, %v2169
        %v2171 = vpop.f32.mrb[0].mxu0
        %v2172 = vpop.f32.mrb[0].mxu0
        %v2173 = vadd.f32 0.0, %v2172
        %v2174 = vpop.f32.mrb[0].mxu0
        %2175 = vdwg.mxu0
        %v2176 = vadd.f32 %v1870, %v2050
        %v2177 = vadd.f32 %v1871, %v2053
        %v2178 = vadd.f32 %v1872, %v2058
        %v2179 = vadd.f32 %v1873, %v2061
        %v2180 = vadd.f32 %v1874, %v2066
        %v2181 = vadd.f32 %v1875, %v2069
        %v2182 = vadd.f32 %v1876, %v2074
        %v2183 = vadd.f32 %v1877, %v2077
        %v2184 = vadd.f32 %v1878, %v2082
        %v2185 = vadd.f32 %v1879, %v2085
        %v2186 = vadd.f32 %v1880, %v2090
        %v2187 = vadd.f32 %v1881, %v2093
        %v2188 = vadd.f32 %v1882, %v2098
        %v2189 = vadd.f32 %v1883, %v2101
        %v2190 = vadd.f32 %v1884, %v2106
        %v2191 = vadd.f32 %v1885, %v2109
        %v2192 = vadd.f32 %v1886, %v2114
        %v2193 = vadd.f32 %v1887, %v2117
        %v2194 = vadd.f32 %v1888, %v2122
        %v2195 = vadd.f32 %v1889, %v2125
        %v2196 = vadd.f32 %v1890, %v2130
        %v2197 = vadd.f32 %v1891, %v2133
        %v2198 = vadd.f32 %v1892, %v2138
        %v2199 = vadd.f32 %v1893, %v2141
        %v2200 = vadd.f32 %v1894, %v2146
        %v2201 = vadd.f32 %v1895, %v2149
        %v2202 = vadd.f32 %v1896, %v2154
        %v2203 = vadd.f32 %v1897, %v2157
        %v2204 = vadd.f32 %v1898, %v2162
        %v2205 = vadd.f32 %v1899, %v2165
        %v2206 = vadd.f32 %v1900, %v2170
        %v2207 = vadd.f32 %v1901, %v2173
        %s2208 = scalar_lea.vmem [#allocation2], 48
        %v2209 = vld [vmem:[%s2208] sm:$0xff]
        %v2210 = vld [vmem:[%s2208 + $0x8] sm:$0xff]
        %v2211 = vld [vmem:[%s2208 + $0x18] sm:$0xff]
        %v2212 = vld [vmem:[%s2208 + $0x20] sm:$0xff]
        %v2213 = vld [vmem:[%s2208 + $0x30] sm:$0xff]
        %v2214 = vld [vmem:[%s2208 + $0x38] sm:$0xff]
        %v2215 = vld [vmem:[%s2208 + $0x48] sm:$0xff]
        %v2216 = vld [vmem:[%s2208 + $0x50] sm:$0xff]
        %v2217 = vld [vmem:[%s2208 + $0x60] sm:$0xff]
        %v2218 = vld [vmem:[%s2208 + $0x68] sm:$0xff]
        %v2219 = vld [vmem:[%s2208 + $0x78] sm:$0xff]
        %v2220 = vld [vmem:[%s2208 + $0x80] sm:$0xff]
        %v2221 = vld [vmem:[%s2208 + $0x90] sm:$0xff]
        %v2222 = vld [vmem:[%s2208 + $0x98] sm:$0xff]
        %v2223 = vld [vmem:[%s2208 + $0xa8] sm:$0xff]
        %v2224 = vld [vmem:[%s2208 + $0xb0] sm:$0xff]
        %v2225 = vld [vmem:[%s2208 + $0xc0] sm:$0xff]
        %v2226 = vld [vmem:[%s2208 + $0xc8] sm:$0xff]
        %v2227 = vld [vmem:[%s2208 + $0xd8] sm:$0xff]
        %v2228 = vld [vmem:[%s2208 + $0xe0] sm:$0xff]
        %v2229 = vld [vmem:[%s2208 + $0xf0] sm:$0xff]
        %v2230 = vld [vmem:[%s2208 + $0xf8] sm:$0xff]
        %v2231 = vld [vmem:[%s2208 + $0x108] sm:$0xff]
        %v2232 = vld [vmem:[%s2208 + $0x110] sm:$0xff]
        %v2233 = vld [vmem:[%s2208 + $0x120] sm:$0xff]
        %v2234 = vld [vmem:[%s2208 + $0x128] sm:$0xff]
        %v2235 = vld [vmem:[%s2208 + $0x138] sm:$0xff]
        %v2236 = vld [vmem:[%s2208 + $0x140] sm:$0xff]
        %v2237 = vld [vmem:[%s2208 + $0x150] sm:$0xff]
        %v2238 = vld [vmem:[%s2208 + $0x158] sm:$0xff]
        %v2239 = vld [vmem:[%s2208 + $0x168] sm:$0xff]
        %v2240 = vld [vmem:[%s2208 + $0x170] sm:$0xff]
        %v2241 = vpack.c.bf16 %v2210, %v2209
        %v2242 = vpack.c.bf16 %v2212, %v2211
        %v2243 = vpack.c.bf16 %v2214, %v2213
        %v2244 = vpack.c.bf16 %v2216, %v2215
        %v2245 = vpack.c.bf16 %v2218, %v2217
        %v2246 = vpack.c.bf16 %v2220, %v2219
        %v2247 = vpack.c.bf16 %v2222, %v2221
        %v2248 = vpack.c.bf16 %v2224, %v2223
        %v2249 = vpack.c.bf16 %v2226, %v2225
        %v2250 = vpack.c.bf16 %v2228, %v2227
        %v2251 = vpack.c.bf16 %v2230, %v2229
        %v2252 = vpack.c.bf16 %v2232, %v2231
        %v2253 = vpack.c.bf16 %v2234, %v2233
        %v2254 = vpack.c.bf16 %v2236, %v2235
        %v2255 = vpack.c.bf16 %v2238, %v2237
        %v2256 = vpack.c.bf16 %v2240, %v2239
        %s2257 = scalar_lea.vmem [#allocation6], 384
        %v2258 = vld [vmem:[%s2257] sm:$0xf]
        %v2259 = vld [vmem:[%s2257 + $0x4] sm:$0xf]
        %v2260 = vld [vmem:[%s2257 + $0x8] sm:$0xf]
        %v2261 = vld [vmem:[%s2257 + $0xc] sm:$0xf]
        %v2262 = vld [vmem:[%s2257 + $0x10] sm:$0xf]
        %v2263 = vld [vmem:[%s2257 + $0x14] sm:$0xf]
        %v2264 = vld [vmem:[%s2257 + $0x18] sm:$0xf]
        %v2265 = vld [vmem:[%s2257 + $0x1c] sm:$0xf]
        %v2266 = vld [vmem:[%s2257 + $0x20] sm:$0xf]
        %v2267 = vld [vmem:[%s2257 + $0x24] sm:$0xf]
        %v2268 = vld [vmem:[%s2257 + $0x28] sm:$0xf]
        %v2269 = vld [vmem:[%s2257 + $0x2c] sm:$0xf]
        %v2270 = vld [vmem:[%s2257 + $0x30] sm:$0xf]
        %v2271 = vld [vmem:[%s2257 + $0x34] sm:$0xf]
        %v2272 = vld [vmem:[%s2257 + $0x38] sm:$0xf]
        %v2273 = vld [vmem:[%s2257 + $0x3c] sm:$0xf]
        %v2290 = vunpack.c.l.b16 %v2258
        %v2291 = vunpack.c.l.b16 %v2259
        %v2292 = vunpack.c.l.b16 %v2260
        %v2293 = vunpack.c.l.b16 %v2261
        %v2294 = vunpack.c.l.b16 %v2262
        %v2295 = vunpack.c.l.b16 %v2263
        %v2296 = vunpack.c.l.b16 %v2264
        %v2297 = vunpack.c.l.b16 %v2265
        %v2298 = vunpack.c.l.b16 %v2266
        %v2299 = vunpack.c.l.b16 %v2267
        %v2300 = vunpack.c.l.b16 %v2268
        %v2301 = vunpack.c.l.b16 %v2269
        %v2302 = vunpack.c.l.b16 %v2270
        %v2303 = vunpack.c.l.b16 %v2271
        %v2304 = vunpack.c.l.b16 %v2272
        %v2305 = vunpack.c.l.b16 %v2273
        %v2306 = vpack.c.b16 %v2291, %v2290
        %v2307 = vpack.c.b16 %v2293, %v2292
        %v2308 = vpack.c.b16 %v2295, %v2294
        %v2309 = vpack.c.b16 %v2297, %v2296
        %v2310 = vpack.c.b16 %v2299, %v2298
        %v2311 = vpack.c.b16 %v2301, %v2300
        %v2312 = vpack.c.b16 %v2303, %v2302
        %v2313 = vpack.c.b16 %v2305, %v2304
        %2322 = vmatprep.subr.bf16.mxu0 0
        %2323 = vmatpush1.bf16.msra.mxu0 %v2306
        %2324 = vmatprep.subr.bf16.mxu0 0
        %2325 = vmatpush1.bf16.msra.mxu0 %v2307
        %2326 = vmatprep.subr.bf16.mxu0 0
        %2327 = vmatpush1.bf16.msra.mxu0 %v2308
        %2328 = vmatprep.subr.bf16.mxu0 0
        %2329 = vmatpush1.bf16.msra.mxu0 %v2309
        %2330 = vmatprep.subr.bf16.mxu0 0
        %2331 = vmatpush1.bf16.msra.mxu0 %v2310
        %2332 = vmatprep.subr.bf16.mxu0 0
        %2333 = vmatpush1.bf16.msra.mxu0 %v2311
        %2334 = vmatprep.subr.bf16.mxu0 0
        %2335 = vmatpush1.bf16.msra.mxu0 %v2312
        %2336 = vmatprep.subr.bf16.mxu0 0
        %2337 = vmatpush1.bf16.msra.mxu0 %v2313
        %2338 = vmatprep.subr.bf16.mxu0 0
        %2339 = vmatpush1.bf16.msra.mxu0 0
        %2340 = vmatprep.subr.bf16.mxu0 0
        %2341 = vmatpush1.bf16.msra.mxu0 0
        %2342 = vmatprep.subr.bf16.mxu0 0
        %2343 = vmatpush1.bf16.msra.mxu0 0
        %2344 = vmatprep.subr.bf16.mxu0 0
        %2345 = vmatpush1.bf16.msra.mxu0 0
        %2346 = vmatprep.subr.bf16.mxu0 0
        %2347 = vmatpush1.bf16.msra.mxu0 0
        %2348 = vmatprep.subr.bf16.mxu0 0
        %2349 = vmatpush1.bf16.msra.mxu0 0
        %2350 = vmatprep.subr.bf16.mxu0 0
        %2351 = vmatpush1.bf16.msra.mxu0 0
        %2352 = vmatprep.subr.bf16.mxu0 0
        %2353 = vmatpush1.bf16.msra.mxu0 0
        %2354 = vmatprep.mubr.bf16.mxu0 0
        %2355 = vmatmul.mubr.bf16.gmra.mrb[0].mxu0 %v2241
        %v2356 = vpop.f32.mrb[0].mxu0
        %v2357 = vadd.f32 0.0, %v2356
        %v2358 = vpop.f32.mrb[0].mxu0
        %v2359 = vpop.f32.mrb[0].mxu0
        %v2360 = vadd.f32 0.0, %v2359
        %v2361 = vpop.f32.mrb[0].mxu0
        %2362 = vmatprep.mubr.bf16.mxu0 0
        %2363 = vmatmul.mubr.bf16.gmra.mrb[0].mxu0 %v2242
        %v2364 = vpop.f32.mrb[0].mxu0
        %v2365 = vadd.f32 0.0, %v2364
        %v2366 = vpop.f32.mrb[0].mxu0
        %v2367 = vpop.f32.mrb[0].mxu0
        %v2368 = vadd.f32 0.0, %v2367
        %v2369 = vpop.f32.mrb[0].mxu0
        %2370 = vmatprep.mubr.bf16.mxu0 0
        %2371 = vmatmul.mubr.bf16.gmra.mrb[0].mxu0 %v2243
        %v2372 = vpop.f32.mrb[0].mxu0
        %v2373 = vadd.f32 0.0, %v2372
        %v2374 = vpop.f32.mrb[0].mxu0
        %v2375 = vpop.f32.mrb[0].mxu0
        %v2376 = vadd.f32 0.0, %v2375
        %v2377 = vpop.f32.mrb[0].mxu0
        %2378 = vmatprep.mubr.bf16.mxu0 0
        %2379 = vmatmul.mubr.bf16.gmra.mrb[0].mxu0 %v2244
        %v2380 = vpop.f32.mrb[0].mxu0
        %v2381 = vadd.f32 0.0, %v2380
        %v2382 = vpop.f32.mrb[0].mxu0
        %v2383 = vpop.f32.mrb[0].mxu0
        %v2384 = vadd.f32 0.0, %v2383
        %v2385 = vpop.f32.mrb[0].mxu0
        %2386 = vmatprep.mubr.bf16.mxu0 0
        %2387 = vmatmul.mubr.bf16.gmra.mrb[0].mxu0 %v2245
        %v2388 = vpop.f32.mrb[0].mxu0
        %v2389 = vadd.f32 0.0, %v2388
        %v2390 = vpop.f32.mrb[0].mxu0
        %v2391 = vpop.f32.mrb[0].mxu0
        %v2392 = vadd.f32 0.0, %v2391
        %v2393 = vpop.f32.mrb[0].mxu0
        %2394 = vmatprep.mubr.bf16.mxu0 0
        %2395 = vmatmul.mubr.bf16.gmra.mrb[0].mxu0 %v2246
        %v2396 = vpop.f32.mrb[0].mxu0
        %v2397 = vadd.f32 0.0, %v2396
        %v2398 = vpop.f32.mrb[0].mxu0
        %v2399 = vpop.f32.mrb[0].mxu0
        %v2400 = vadd.f32 0.0, %v2399
        %v2401 = vpop.f32.mrb[0].mxu0
        %2402 = vmatprep.mubr.bf16.mxu0 0
        %2403 = vmatmul.mubr.bf16.gmra.mrb[0].mxu0 %v2247
        %v2404 = vpop.f32.mrb[0].mxu0
        %v2405 = vadd.f32 0.0, %v2404
        %v2406 = vpop.f32.mrb[0].mxu0
        %v2407 = vpop.f32.mrb[0].mxu0
        %v2408 = vadd.f32 0.0, %v2407
        %v2409 = vpop.f32.mrb[0].mxu0
        %2410 = vmatprep.mubr.bf16.mxu0 0
        %2411 = vmatmul.mubr.bf16.gmra.mrb[0].mxu0 %v2248
        %v2412 = vpop.f32.mrb[0].mxu0
        %v2413 = vadd.f32 0.0, %v2412
        %v2414 = vpop.f32.mrb[0].mxu0
        %v2415 = vpop.f32.mrb[0].mxu0
        %v2416 = vadd.f32 0.0, %v2415
        %v2417 = vpop.f32.mrb[0].mxu0
        %2418 = vmatprep.mubr.bf16.mxu0 0
        %2419 = vmatmul.mubr.bf16.gmra.mrb[0].mxu0 %v2249
        %v2420 = vpop.f32.mrb[0].mxu0
        %v2421 = vadd.f32 0.0, %v2420
        %v2422 = vpop.f32.mrb[0].mxu0
        %v2423 = vpop.f32.mrb[0].mxu0
        %v2424 = vadd.f32 0.0, %v2423
        %v2425 = vpop.f32.mrb[0].mxu0
        %2426 = vmatprep.mubr.bf16.mxu0 0
        %2427 = vmatmul.mubr.bf16.gmra.mrb[0].mxu0 %v2250
        %v2428 = vpop.f32.mrb[0].mxu0
        %v2429 = vadd.f32 0.0, %v2428
        %v2430 = vpop.f32.mrb[0].mxu0
        %v2431 = vpop.f32.mrb[0].mxu0
        %v2432 = vadd.f32 0.0, %v2431
        %v2433 = vpop.f32.mrb[0].mxu0
        %2434 = vmatprep.mubr.bf16.mxu0 0
        %2435 = vmatmul.mubr.bf16.gmra.mrb[0].mxu0 %v2251
        %v2436 = vpop.f32.mrb[0].mxu0
        %v2437 = vadd.f32 0.0, %v2436
        %v2438 = vpop.f32.mrb[0].mxu0
        %v2439 = vpop.f32.mrb[0].mxu0
        %v2440 = vadd.f32 0.0, %v2439
        %v2441 = vpop.f32.mrb[0].mxu0
        %2442 = vmatprep.mubr.bf16.mxu0 0
        %2443 = vmatmul.mubr.bf16.gmra.mrb[0].mxu0 %v2252
        %v2444 = vpop.f32.mrb[0].mxu0
        %v2445 = vadd.f32 0.0, %v2444
        %v2446 = vpop.f32.mrb[0].mxu0
        %v2447 = vpop.f32.mrb[0].mxu0
        %v2448 = vadd.f32 0.0, %v2447
        %v2449 = vpop.f32.mrb[0].mxu0
        %2450 = vmatprep.mubr.bf16.mxu0 0
        %2451 = vmatmul.mubr.bf16.gmra.mrb[0].mxu0 %v2253
        %v2452 = vpop.f32.mrb[0].mxu0
        %v2453 = vadd.f32 0.0, %v2452
        %v2454 = vpop.f32.mrb[0].mxu0
        %v2455 = vpop.f32.mrb[0].mxu0
        %v2456 = vadd.f32 0.0, %v2455
        %v2457 = vpop.f32.mrb[0].mxu0
        %2458 = vmatprep.mubr.bf16.mxu0 0
        %2459 = vmatmul.mubr.bf16.gmra.mrb[0].mxu0 %v2254
        %v2460 = vpop.f32.mrb[0].mxu0
        %v2461 = vadd.f32 0.0, %v2460
        %v2462 = vpop.f32.mrb[0].mxu0
        %v2463 = vpop.f32.mrb[0].mxu0
        %v2464 = vadd.f32 0.0, %v2463
        %v2465 = vpop.f32.mrb[0].mxu0
        %2466 = vmatprep.mubr.bf16.mxu0 0
        %2467 = vmatmul.mubr.bf16.gmra.mrb[0].mxu0 %v2255
        %v2468 = vpop.f32.mrb[0].mxu0
        %v2469 = vadd.f32 0.0, %v2468
        %v2470 = vpop.f32.mrb[0].mxu0
        %v2471 = vpop.f32.mrb[0].mxu0
        %v2472 = vadd.f32 0.0, %v2471
        %v2473 = vpop.f32.mrb[0].mxu0
        %2474 = vmatprep.mubr.bf16.mxu0 0
        %2475 = vmatmul.mubr.bf16.gmra.mrb[0].mxu0 %v2256
        %v2476 = vpop.f32.mrb[0].mxu0
        %v2477 = vadd.f32 0.0, %v2476
        %v2478 = vpop.f32.mrb[0].mxu0
        %v2479 = vpop.f32.mrb[0].mxu0
        %v2480 = vadd.f32 0.0, %v2479
        %v2481 = vpop.f32.mrb[0].mxu0
        %2482 = vdwg.mxu0
        %v2483 = vadd.f32 %v2176, %v2357
        %v2484 = vadd.f32 %v2177, %v2360
        %v2485 = vadd.f32 %v2178, %v2365
        %v2486 = vadd.f32 %v2179, %v2368
        %v2487 = vadd.f32 %v2180, %v2373
        %v2488 = vadd.f32 %v2181, %v2376
        %v2489 = vadd.f32 %v2182, %v2381
        %v2490 = vadd.f32 %v2183, %v2384
        %v2491 = vadd.f32 %v2184, %v2389
        %v2492 = vadd.f32 %v2185, %v2392
        %v2493 = vadd.f32 %v2186, %v2397
        %v2494 = vadd.f32 %v2187, %v2400
        %v2495 = vadd.f32 %v2188, %v2405
        %v2496 = vadd.f32 %v2189, %v2408
        %v2497 = vadd.f32 %v2190, %v2413
        %v2498 = vadd.f32 %v2191, %v2416
        %v2499 = vadd.f32 %v2192, %v2421
        %v2500 = vadd.f32 %v2193, %v2424
        %v2501 = vadd.f32 %v2194, %v2429
        %v2502 = vadd.f32 %v2195, %v2432
        %v2503 = vadd.f32 %v2196, %v2437
        %v2504 = vadd.f32 %v2197, %v2440
        %v2505 = vadd.f32 %v2198, %v2445
        %v2506 = vadd.f32 %v2199, %v2448
        %v2507 = vadd.f32 %v2200, %v2453
        %v2508 = vadd.f32 %v2201, %v2456
        %v2509 = vadd.f32 %v2202, %v2461
        %v2510 = vadd.f32 %v2203, %v2464
        %v2511 = vadd.f32 %v2204, %v2469
        %v2512 = vadd.f32 %v2205, %v2472
        %v2513 = vadd.f32 %v2206, %v2477
        %v2514 = vadd.f32 %v2207, %v2480
        %v2515 = vld [vmem:[%s2208 + $0x1] sm:$0xff]
        %v2516 = vld [vmem:[%s2208 + $0x9] sm:$0xff]
        %v2517 = vld [vmem:[%s2208 + $0x19] sm:$0xff]
        %v2518 = vld [vmem:[%s2208 + $0x21] sm:$0xff]
        %v2519 = vld [vmem:[%s2208 + $0x31] sm:$0xff]
        %v2520 = vld [vmem:[%s2208 + $0x39] sm:$0xff]
        %v2521 = vld [vmem:[%s2208 + $0x49] sm:$0xff]
        %v2522 = vld [vmem:[%s2208 + $0x51] sm:$0xff]
        %v2523 = vld [vmem:[%s2208 + $0x61] sm:$0xff]
        %v2524 = vld [vmem:[%s2208 + $0x69] sm:$0xff]
        %v2525 = vld [vmem:[%s2208 + $0x79] sm:$0xff]
        %v2526 = vld [vmem:[%s2208 + $0x81] sm:$0xff]
        %v2527 = vld [vmem:[%s2208 + $0x91] sm:$0xff]
        %v2528 = vld [vmem:[%s2208 + $0x99] sm:$0xff]
        %v2529 = vld [vmem:[%s2208 + $0xa9] sm:$0xff]
        %v2530 = vld [vmem:[%s2208 + $0xb1] sm:$0xff]
        %v2531 = vld [vmem:[%s2208 + $0xc1] sm:$0xff]
        %v2532 = vld [vmem:[%s2208 + $0xc9] sm:$0xff]
        %v2533 = vld [vmem:[%s2208 + $0xd9] sm:$0xff]
        %v2534 = vld [vmem:[%s2208 + $0xe1] sm:$0xff]
        %v2535 = vld [vmem:[%s2208 + $0xf1] sm:$0xff]
        %v2536 = vld [vmem:[%s2208 + $0xf9] sm:$0xff]
        %v2537 = vld [vmem:[%s2208 + $0x109] sm:$0xff]
        %v2538 = vld [vmem:[%s2208 + $0x111] sm:$0xff]
        %v2539 = vld [vmem:[%s2208 + $0x121] sm:$0xff]
        %v2540 = vld [vmem:[%s2208 + $0x129] sm:$0xff]
        %v2541 = vld [vmem:[%s2208 + $0x139] sm:$0xff]
        %v2542 = vld [vmem:[%s2208 + $0x141] sm:$0xff]
        %v2543 = vld [vmem:[%s2208 + $0x151] sm:$0xff]
        %v2544 = vld [vmem:[%s2208 + $0x159] sm:$0xff]
        %v2545 = vld [vmem:[%s2208 + $0x169] sm:$0xff]
        %v2546 = vld [vmem:[%s2208 + $0x171] sm:$0xff]
        %v2547 = vpack.c.bf16 %v2516, %v2515
        %v2548 = vpack.c.bf16 %v2518, %v2517
        %v2549 = vpack.c.bf16 %v2520, %v2519
        %v2550 = vpack.c.bf16 %v2522, %v2521
        %v2551 = vpack.c.bf16 %v2524, %v2523
        %v2552 = vpack.c.bf16 %v2526, %v2525
        %v2553 = vpack.c.bf16 %v2528, %v2527
        %v2554 = vpack.c.bf16 %v2530, %v2529
        %v2555 = vpack.c.bf16 %v2532, %v2531
        %v2556 = vpack.c.bf16 %v2534, %v2533
        %v2557 = vpack.c.bf16 %v2536, %v2535
        %v2558 = vpack.c.bf16 %v2538, %v2537
        %v2559 = vpack.c.bf16 %v2540, %v2539
        %v2560 = vpack.c.bf16 %v2542, %v2541
        %v2561 = vpack.c.bf16 %v2544, %v2543
        %v2562 = vpack.c.bf16 %v2546, %v2545
        %s2563 = scalar_lea.vmem [#allocation6], 448
        %v2564 = vld [vmem:[%s2563] sm:$0xf]
        %v2565 = vld [vmem:[%s2563 + $0x4] sm:$0xf]
        %v2566 = vld [vmem:[%s2563 + $0x8] sm:$0xf]
        %v2567 = vld [vmem:[%s2563 + $0xc] sm:$0xf]
        %v2568 = vld [vmem:[%s2563 + $0x10] sm:$0xf]
        %v2569 = vld [vmem:[%s2563 + $0x14] sm:$0xf]
        %v2570 = vld [vmem:[%s2563 + $0x18] sm:$0xf]
        %v2571 = vld [vmem:[%s2563 + $0x1c] sm:$0xf]
        %v2572 = vld [vmem:[%s2563 + $0x20] sm:$0xf]
        %v2573 = vld [vmem:[%s2563 + $0x24] sm:$0xf]
        %v2574 = vld [vmem:[%s2563 + $0x28] sm:$0xf]
        %v2575 = vld [vmem:[%s2563 + $0x2c] sm:$0xf]
        %v2576 = vld [vmem:[%s2563 + $0x30] sm:$0xf]
        %v2577 = vld [vmem:[%s2563 + $0x34] sm:$0xf]
        %v2578 = vld [vmem:[%s2563 + $0x38] sm:$0xf]
        %v2579 = vld [vmem:[%s2563 + $0x3c] sm:$0xf]
        %v2596 = vunpack.c.l.b16 %v2564
        %v2597 = vunpack.c.l.b16 %v2565
        %v2598 = vunpack.c.l.b16 %v2566
        %v2599 = vunpack.c.l.b16 %v2567
        %v2600 = vunpack.c.l.b16 %v2568
        %v2601 = vunpack.c.l.b16 %v2569
        %v2602 = vunpack.c.l.b16 %v2570
        %v2603 = vunpack.c.l.b16 %v2571
        %v2604 = vunpack.c.l.b16 %v2572
        %v2605 = vunpack.c.l.b16 %v2573
        %v2606 = vunpack.c.l.b16 %v2574
        %v2607 = vunpack.c.l.b16 %v2575
        %v2608 = vunpack.c.l.b16 %v2576
        %v2609 = vunpack.c.l.b16 %v2577
        %v2610 = vunpack.c.l.b16 %v2578
        %v2611 = vunpack.c.l.b16 %v2579
        %v2612 = vpack.c.b16 %v2597, %v2596
        %v2613 = vpack.c.b16 %v2599, %v2598
        %v2614 = vpack.c.b16 %v2601, %v2600
        %v2615 = vpack.c.b16 %v2603, %v2602
        %v2616 = vpack.c.b16 %v2605, %v2604
        %v2617 = vpack.c.b16 %v2607, %v2606
        %v2618 = vpack.c.b16 %v2609, %v2608
        %v2619 = vpack.c.b16 %v2611, %v2610
        %2628 = vmatprep.subr.bf16.mxu0 0
        %2629 = vmatpush1.bf16.msra.mxu0 %v2612
        %2630 = vmatprep.subr.bf16.mxu0 0
        %2631 = vmatpush1.bf16.msra.mxu0 %v2613
        %2632 = vmatprep.subr.bf16.mxu0 0
        %2633 = vmatpush1.bf16.msra.mxu0 %v2614
        %2634 = vmatprep.subr.bf16.mxu0 0
        %2635 = vmatpush1.bf16.msra.mxu0 %v2615
        %2636 = vmatprep.subr.bf16.mxu0 0
        %2637 = vmatpush1.bf16.msra.mxu0 %v2616
        %2638 = vmatprep.subr.bf16.mxu0 0
        %2639 = vmatpush1.bf16.msra.mxu0 %v2617
        %2640 = vmatprep.subr.bf16.mxu0 0
        %2641 = vmatpush1.bf16.msra.mxu0 %v2618
        %2642 = vmatprep.subr.bf16.mxu0 0
        %2643 = vmatpush1.bf16.msra.mxu0 %v2619
        %2644 = vmatprep.subr.bf16.mxu0 0
        %2645 = vmatpush1.bf16.msra.mxu0 0
        %2646 = vmatprep.subr.bf16.mxu0 0
        %2647 = vmatpush1.bf16.msra.mxu0 0
        %2648 = vmatprep.subr.bf16.mxu0 0
        %2649 = vmatpush1.bf16.msra.mxu0 0
        %2650 = vmatprep.subr.bf16.mxu0 0
        %2651 = vmatpush1.bf16.msra.mxu0 0
        %2652 = vmatprep.subr.bf16.mxu0 0
        %2653 = vmatpush1.bf16.msra.mxu0 0
        %2654 = vmatprep.subr.bf16.mxu0 0
        %2655 = vmatpush1.bf16.msra.mxu0 0
        %2656 = vmatprep.subr.bf16.mxu0 0
        %2657 = vmatpush1.bf16.msra.mxu0 0
        %2658 = vmatprep.subr.bf16.mxu0 0
        %2659 = vmatpush1.bf16.msra.mxu0 0
        %2660 = vmatprep.mubr.bf16.mxu0 0
        %2661 = vmatmul.mubr.bf16.gmra.mrb[0].mxu0 %v2547
        %v2662 = vpop.f32.mrb[0].mxu0
        %v2663 = vadd.f32 0.0, %v2662
        %v2664 = vpop.f32.mrb[0].mxu0
        %v2665 = vpop.f32.mrb[0].mxu0
        %v2666 = vadd.f32 0.0, %v2665
        %v2667 = vpop.f32.mrb[0].mxu0
        %2668 = vmatprep.mubr.bf16.mxu0 0
        %2669 = vmatmul.mubr.bf16.gmra.mrb[0].mxu0 %v2548
        %v2670 = vpop.f32.mrb[0].mxu0
        %v2671 = vadd.f32 0.0, %v2670
        %v2672 = vpop.f32.mrb[0].mxu0
        %v2673 = vpop.f32.mrb[0].mxu0
        %v2674 = vadd.f32 0.0, %v2673
        %v2675 = vpop.f32.mrb[0].mxu0
        %2676 = vmatprep.mubr.bf16.mxu0 0
        %2677 = vmatmul.mubr.bf16.gmra.mrb[0].mxu0 %v2549
        %v2678 = vpop.f32.mrb[0].mxu0
        %v2679 = vadd.f32 0.0, %v2678
        %v2680 = vpop.f32.mrb[0].mxu0
        %v2681 = vpop.f32.mrb[0].mxu0
        %v2682 = vadd.f32 0.0, %v2681
        %v2683 = vpop.f32.mrb[0].mxu0
        %2684 = vmatprep.mubr.bf16.mxu0 0
        %2685 = vmatmul.mubr.bf16.gmra.mrb[0].mxu0 %v2550
        %v2686 = vpop.f32.mrb[0].mxu0
        %v2687 = vadd.f32 0.0, %v2686
        %v2688 = vpop.f32.mrb[0].mxu0
        %v2689 = vpop.f32.mrb[0].mxu0
        %v2690 = vadd.f32 0.0, %v2689
        %v2691 = vpop.f32.mrb[0].mxu0
        %2692 = vmatprep.mubr.bf16.mxu0 0
        %2693 = vmatmul.mubr.bf16.gmra.mrb[0].mxu0 %v2551
        %v2694 = vpop.f32.mrb[0].mxu0
        %v2695 = vadd.f32 0.0, %v2694
        %v2696 = vpop.f32.mrb[0].mxu0
        %v2697 = vpop.f32.mrb[0].mxu0
        %v2698 = vadd.f32 0.0, %v2697
        %v2699 = vpop.f32.mrb[0].mxu0
        %2700 = vmatprep.mubr.bf16.mxu0 0
        %2701 = vmatmul.mubr.bf16.gmra.mrb[0].mxu0 %v2552
        %v2702 = vpop.f32.mrb[0].mxu0
        %v2703 = vadd.f32 0.0, %v2702
        %v2704 = vpop.f32.mrb[0].mxu0
        %v2705 = vpop.f32.mrb[0].mxu0
        %v2706 = vadd.f32 0.0, %v2705
        %v2707 = vpop.f32.mrb[0].mxu0
        %2708 = vmatprep.mubr.bf16.mxu0 0
        %2709 = vmatmul.mubr.bf16.gmra.mrb[0].mxu0 %v2553
        %v2710 = vpop.f32.mrb[0].mxu0
        %v2711 = vadd.f32 0.0, %v2710
        %v2712 = vpop.f32.mrb[0].mxu0
        %v2713 = vpop.f32.mrb[0].mxu0
        %v2714 = vadd.f32 0.0, %v2713
        %v2715 = vpop.f32.mrb[0].mxu0
        %2716 = vmatprep.mubr.bf16.mxu0 0
        %2717 = vmatmul.mubr.bf16.gmra.mrb[0].mxu0 %v2554
        %v2718 = vpop.f32.mrb[0].mxu0
        %v2719 = vadd.f32 0.0, %v2718
        %v2720 = vpop.f32.mrb[0].mxu0
        %v2721 = vpop.f32.mrb[0].mxu0
        %v2722 = vadd.f32 0.0, %v2721
        %v2723 = vpop.f32.mrb[0].mxu0
        %2724 = vmatprep.mubr.bf16.mxu0 0
        %2725 = vmatmul.mubr.bf16.gmra.mrb[0].mxu0 %v2555
        %v2726 = vpop.f32.mrb[0].mxu0
        %v2727 = vadd.f32 0.0, %v2726
        %v2728 = vpop.f32.mrb[0].mxu0
        %v2729 = vpop.f32.mrb[0].mxu0
        %v2730 = vadd.f32 0.0, %v2729
        %v2731 = vpop.f32.mrb[0].mxu0
        %2732 = vmatprep.mubr.bf16.mxu0 0
        %2733 = vmatmul.mubr.bf16.gmra.mrb[0].mxu0 %v2556
        %v2734 = vpop.f32.mrb[0].mxu0
        %v2735 = vadd.f32 0.0, %v2734
        %v2736 = vpop.f32.mrb[0].mxu0
        %v2737 = vpop.f32.mrb[0].mxu0
        %v2738 = vadd.f32 0.0, %v2737
        %v2739 = vpop.f32.mrb[0].mxu0
        %2740 = vmatprep.mubr.bf16.mxu0 0
        %2741 = vmatmul.mubr.bf16.gmra.mrb[0].mxu0 %v2557
        %v2742 = vpop.f32.mrb[0].mxu0
        %v2743 = vadd.f32 0.0, %v2742
        %v2744 = vpop.f32.mrb[0].mxu0
        %v2745 = vpop.f32.mrb[0].mxu0
        %v2746 = vadd.f32 0.0, %v2745
        %v2747 = vpop.f32.mrb[0].mxu0
        %2748 = vmatprep.mubr.bf16.mxu0 0
        %2749 = vmatmul.mubr.bf16.gmra.mrb[0].mxu0 %v2558
        %v2750 = vpop.f32.mrb[0].mxu0
        %v2751 = vadd.f32 0.0, %v2750
        %v2752 = vpop.f32.mrb[0].mxu0
        %v2753 = vpop.f32.mrb[0].mxu0
        %v2754 = vadd.f32 0.0, %v2753
        %v2755 = vpop.f32.mrb[0].mxu0
        %2756 = vmatprep.mubr.bf16.mxu0 0
        %2757 = vmatmul.mubr.bf16.gmra.mrb[0].mxu0 %v2559
        %v2758 = vpop.f32.mrb[0].mxu0
        %v2759 = vadd.f32 0.0, %v2758
        %v2760 = vpop.f32.mrb[0].mxu0
        %v2761 = vpop.f32.mrb[0].mxu0
        %v2762 = vadd.f32 0.0, %v2761
        %v2763 = vpop.f32.mrb[0].mxu0
        %2764 = vmatprep.mubr.bf16.mxu0 0
        %2765 = vmatmul.mubr.bf16.gmra.mrb[0].mxu0 %v2560
        %v2766 = vpop.f32.mrb[0].mxu0
        %v2767 = vadd.f32 0.0, %v2766
        %v2768 = vpop.f32.mrb[0].mxu0
        %v2769 = vpop.f32.mrb[0].mxu0
        %v2770 = vadd.f32 0.0, %v2769
        %v2771 = vpop.f32.mrb[0].mxu0
        %2772 = vmatprep.mubr.bf16.mxu0 0
        %2773 = vmatmul.mubr.bf16.gmra.mrb[0].mxu0 %v2561
        %v2774 = vpop.f32.mrb[0].mxu0
        %v2775 = vadd.f32 0.0, %v2774
        %v2776 = vpop.f32.mrb[0].mxu0
        %v2777 = vpop.f32.mrb[0].mxu0
        %v2778 = vadd.f32 0.0, %v2777
        %v2779 = vpop.f32.mrb[0].mxu0
        %2780 = vmatprep.mubr.bf16.mxu0 0
        %2781 = vmatmul.mubr.bf16.gmra.mrb[0].mxu0 %v2562
        %v2782 = vpop.f32.mrb[0].mxu0
        %v2783 = vadd.f32 0.0, %v2782
        %v2784 = vpop.f32.mrb[0].mxu0
        %v2785 = vpop.f32.mrb[0].mxu0
        %v2786 = vadd.f32 0.0, %v2785
        %v2787 = vpop.f32.mrb[0].mxu0
        %2788 = vdwg.mxu0
        %v2789 = vadd.f32 %v2483, %v2663
        %v2790 = vadd.f32 %v2484, %v2666
        %v2791 = vadd.f32 %v2485, %v2671
        %v2792 = vadd.f32 %v2486, %v2674
        %v2793 = vadd.f32 %v2487, %v2679
        %v2794 = vadd.f32 %v2488, %v2682
        %v2795 = vadd.f32 %v2489, %v2687
        %v2796 = vadd.f32 %v2490, %v2690
        %v2797 = vadd.f32 %v2491, %v2695
        %v2798 = vadd.f32 %v2492, %v2698
        %v2799 = vadd.f32 %v2493, %v2703
        %v2800 = vadd.f32 %v2494, %v2706
        %v2801 = vadd.f32 %v2495, %v2711
        %v2802 = vadd.f32 %v2496, %v2714
        %v2803 = vadd.f32 %v2497, %v2719
        %v2804 = vadd.f32 %v2498, %v2722
        %v2805 = vadd.f32 %v2499, %v2727
        %v2806 = vadd.f32 %v2500, %v2730
        %v2807 = vadd.f32 %v2501, %v2735
        %v2808 = vadd.f32 %v2502, %v2738
        %v2809 = vadd.f32 %v2503, %v2743
        %v2810 = vadd.f32 %v2504, %v2746
        %v2811 = vadd.f32 %v2505, %v2751
        %v2812 = vadd.f32 %v2506, %v2754
        %v2813 = vadd.f32 %v2507, %v2759
        %v2814 = vadd.f32 %v2508, %v2762
        %v2815 = vadd.f32 %v2509, %v2767
        %v2816 = vadd.f32 %v2510, %v2770
        %v2817 = vadd.f32 %v2511, %v2775
        %v2818 = vadd.f32 %v2512, %v2778
        %v2819 = vadd.f32 %v2513, %v2783
        %v2820 = vadd.f32 %v2514, %v2786
        %v2821 = vld [vmem:[%s2208 + $0x2] sm:$0xff]
        %v2822 = vld [vmem:[%s2208 + $0xa] sm:$0xff]
        %v2823 = vld [vmem:[%s2208 + $0x1a] sm:$0xff]
        %v2824 = vld [vmem:[%s2208 + $0x22] sm:$0xff]
        %v2825 = vld [vmem:[%s2208 + $0x32] sm:$0xff]
        %v2826 = vld [vmem:[%s2208 + $0x3a] sm:$0xff]
        %v2827 = vld [vmem:[%s2208 + $0x4a] sm:$0xff]
        %v2828 = vld [vmem:[%s2208 + $0x52] sm:$0xff]
        %v2829 = vld [vmem:[%s2208 + $0x62] sm:$0xff]
        %v2830 = vld [vmem:[%s2208 + $0x6a] sm:$0xff]
        %v2831 = vld [vmem:[%s2208 + $0x7a] sm:$0xff]
        %v2832 = vld [vmem:[%s2208 + $0x82] sm:$0xff]
        %v2833 = vld [vmem:[%s2208 + $0x92] sm:$0xff]
        %v2834 = vld [vmem:[%s2208 + $0x9a] sm:$0xff]
        %v2835 = vld [vmem:[%s2208 + $0xaa] sm:$0xff]
        %v2836 = vld [vmem:[%s2208 + $0xb2] sm:$0xff]
        %v2837 = vld [vmem:[%s2208 + $0xc2] sm:$0xff]
        %v2838 = vld [vmem:[%s2208 + $0xca] sm:$0xff]
        %v2839 = vld [vmem:[%s2208 + $0xda] sm:$0xff]
        %v2840 = vld [vmem:[%s2208 + $0xe2] sm:$0xff]
        %v2841 = vld [vmem:[%s2208 + $0xf2] sm:$0xff]
        %v2842 = vld [vmem:[%s2208 + $0xfa] sm:$0xff]
        %v2843 = vld [vmem:[%s2208 + $0x10a] sm:$0xff]
        %v2844 = vld [vmem:[%s2208 + $0x112] sm:$0xff]
        %v2845 = vld [vmem:[%s2208 + $0x122] sm:$0xff]
        %v2846 = vld [vmem:[%s2208 + $0x12a] sm:$0xff]
        %v2847 = vld [vmem:[%s2208 + $0x13a] sm:$0xff]
        %v2848 = vld [vmem:[%s2208 + $0x142] sm:$0xff]
        %v2849 = vld [vmem:[%s2208 + $0x152] sm:$0xff]
        %v2850 = vld [vmem:[%s2208 + $0x15a] sm:$0xff]
        %v2851 = vld [vmem:[%s2208 + $0x16a] sm:$0xff]
        %v2852 = vld [vmem:[%s2208 + $0x172] sm:$0xff]
        %v2853 = vpack.c.bf16 %v2822, %v2821
        %v2854 = vpack.c.bf16 %v2824, %v2823
        %v2855 = vpack.c.bf16 %v2826, %v2825
        %v2856 = vpack.c.bf16 %v2828, %v2827
        %v2857 = vpack.c.bf16 %v2830, %v2829
        %v2858 = vpack.c.bf16 %v2832, %v2831
        %v2859 = vpack.c.bf16 %v2834, %v2833
        %v2860 = vpack.c.bf16 %v2836, %v2835
        %v2861 = vpack.c.bf16 %v2838, %v2837
        %v2862 = vpack.c.bf16 %v2840, %v2839
        %v2863 = vpack.c.bf16 %v2842, %v2841
        %v2864 = vpack.c.bf16 %v2844, %v2843
        %v2865 = vpack.c.bf16 %v2846, %v2845
        %v2866 = vpack.c.bf16 %v2848, %v2847
        %v2867 = vpack.c.bf16 %v2850, %v2849
        %v2868 = vpack.c.bf16 %v2852, %v2851
        %s2869 = scalar_lea.vmem [#allocation6], 512
        %v2870 = vld [vmem:[%s2869] sm:$0xf]
        %v2871 = vld [vmem:[%s2869 + $0x4] sm:$0xf]
        %v2872 = vld [vmem:[%s2869 + $0x8] sm:$0xf]
        %v2873 = vld [vmem:[%s2869 + $0xc] sm:$0xf]
        %v2874 = vld [vmem:[%s2869 + $0x10] sm:$0xf]
        %v2875 = vld [vmem:[%s2869 + $0x14] sm:$0xf]
        %v2876 = vld [vmem:[%s2869 + $0x18] sm:$0xf]
        %v2877 = vld [vmem:[%s2869 + $0x1c] sm:$0xf]
        %v2878 = vld [vmem:[%s2869 + $0x20] sm:$0xf]
        %v2879 = vld [vmem:[%s2869 + $0x24] sm:$0xf]
        %v2880 = vld [vmem:[%s2869 + $0x28] sm:$0xf]
        %v2881 = vld [vmem:[%s2869 + $0x2c] sm:$0xf]
        %v2882 = vld [vmem:[%s2869 + $0x30] sm:$0xf]
        %v2883 = vld [vmem:[%s2869 + $0x34] sm:$0xf]
        %v2884 = vld [vmem:[%s2869 + $0x38] sm:$0xf]
        %v2885 = vld [vmem:[%s2869 + $0x3c] sm:$0xf]
        %v2902 = vunpack.c.l.b16 %v2870
        %v2903 = vunpack.c.l.b16 %v2871
        %v2904 = vunpack.c.l.b16 %v2872
        %v2905 = vunpack.c.l.b16 %v2873
        %v2906 = vunpack.c.l.b16 %v2874
        %v2907 = vunpack.c.l.b16 %v2875
        %v2908 = vunpack.c.l.b16 %v2876
        %v2909 = vunpack.c.l.b16 %v2877
        %v2910 = vunpack.c.l.b16 %v2878
        %v2911 = vunpack.c.l.b16 %v2879
        %v2912 = vunpack.c.l.b16 %v2880
        %v2913 = vunpack.c.l.b16 %v2881
        %v2914 = vunpack.c.l.b16 %v2882
        %v2915 = vunpack.c.l.b16 %v2883
        %v2916 = vunpack.c.l.b16 %v2884
        %v2917 = vunpack.c.l.b16 %v2885
        %v2918 = vpack.c.b16 %v2903, %v2902
        %v2919 = vpack.c.b16 %v2905, %v2904
        %v2920 = vpack.c.b16 %v2907, %v2906
        %v2921 = vpack.c.b16 %v2909, %v2908
        %v2922 = vpack.c.b16 %v2911, %v2910
        %v2923 = vpack.c.b16 %v2913, %v2912
        %v2924 = vpack.c.b16 %v2915, %v2914
        %v2925 = vpack.c.b16 %v2917, %v2916
        %2934 = vmatprep.subr.bf16.mxu0 0
        %2935 = vmatpush1.bf16.msra.mxu0 %v2918
        %2936 = vmatprep.subr.bf16.mxu0 0
        %2937 = vmatpush1.bf16.msra.mxu0 %v2919
        %2938 = vmatprep.subr.bf16.mxu0 0
        %2939 = vmatpush1.bf16.msra.mxu0 %v2920
        %2940 = vmatprep.subr.bf16.mxu0 0
        %2941 = vmatpush1.bf16.msra.mxu0 %v2921
        %2942 = vmatprep.subr.bf16.mxu0 0
        %2943 = vmatpush1.bf16.msra.mxu0 %v2922
        %2944 = vmatprep.subr.bf16.mxu0 0
        %2945 = vmatpush1.bf16.msra.mxu0 %v2923
        %2946 = vmatprep.subr.bf16.mxu0 0
        %2947 = vmatpush1.bf16.msra.mxu0 %v2924
        %2948 = vmatprep.subr.bf16.mxu0 0
        %2949 = vmatpush1.bf16.msra.mxu0 %v2925
        %2950 = vmatprep.subr.bf16.mxu0 0
        %2951 = vmatpush1.bf16.msra.mxu0 0
        %2952 = vmatprep.subr.bf16.mxu0 0
        %2953 = vmatpush1.bf16.msra.mxu0 0
        %2954 = vmatprep.subr.bf16.mxu0 0
        %2955 = vmatpush1.bf16.msra.mxu0 0
        %2956 = vmatprep.subr.bf16.mxu0 0
        %2957 = vmatpush1.bf16.msra.mxu0 0
        %2958 = vmatprep.subr.bf16.mxu0 0
        %2959 = vmatpush1.bf16.msra.mxu0 0
        %2960 = vmatprep.subr.bf16.mxu0 0
        %2961 = vmatpush1.bf16.msra.mxu0 0
        %2962 = vmatprep.subr.bf16.mxu0 0
        %2963 = vmatpush1.bf16.msra.mxu0 0
        %2964 = vmatprep.subr.bf16.mxu0 0
        %2965 = vmatpush1.bf16.msra.mxu0 0
        %2966 = vmatprep.mubr.bf16.mxu0 0
        %2967 = vmatmul.mubr.bf16.gmra.mrb[0].mxu0 %v2853
        %v2968 = vpop.f32.mrb[0].mxu0
        %v2969 = vadd.f32 0.0, %v2968
        %v2970 = vpop.f32.mrb[0].mxu0
        %v2971 = vpop.f32.mrb[0].mxu0
        %v2972 = vadd.f32 0.0, %v2971
        %v2973 = vpop.f32.mrb[0].mxu0
        %2974 = vmatprep.mubr.bf16.mxu0 0
        %2975 = vmatmul.mubr.bf16.gmra.mrb[0].mxu0 %v2854
        %v2976 = vpop.f32.mrb[0].mxu0
        %v2977 = vadd.f32 0.0, %v2976
        %v2978 = vpop.f32.mrb[0].mxu0
        %v2979 = vpop.f32.mrb[0].mxu0
        %v2980 = vadd.f32 0.0, %v2979
        %v2981 = vpop.f32.mrb[0].mxu0
        %2982 = vmatprep.mubr.bf16.mxu0 0
        %2983 = vmatmul.mubr.bf16.gmra.mrb[0].mxu0 %v2855
        %v2984 = vpop.f32.mrb[0].mxu0
        %v2985 = vadd.f32 0.0, %v2984
        %v2986 = vpop.f32.mrb[0].mxu0
        %v2987 = vpop.f32.mrb[0].mxu0
        %v2988 = vadd.f32 0.0, %v2987
        %v2989 = vpop.f32.mrb[0].mxu0
        %2990 = vmatprep.mubr.bf16.mxu0 0
        %2991 = vmatmul.mubr.bf16.gmra.mrb[0].mxu0 %v2856
        %v2992 = vpop.f32.mrb[0].mxu0
        %v2993 = vadd.f32 0.0, %v2992
        %v2994 = vpop.f32.mrb[0].mxu0
        %v2995 = vpop.f32.mrb[0].mxu0
        %v2996 = vadd.f32 0.0, %v2995
        %v2997 = vpop.f32.mrb[0].mxu0
        %2998 = vmatprep.mubr.bf16.mxu0 0
        %2999 = vmatmul.mubr.bf16.gmra.mrb[0].mxu0 %v2857
        %v3000 = vpop.f32.mrb[0].mxu0
        %v3001 = vadd.f32 0.0, %v3000
        %v3002 = vpop.f32.mrb[0].mxu0
        %v3003 = vpop.f32.mrb[0].mxu0
        %v3004 = vadd.f32 0.0, %v3003
        %v3005 = vpop.f32.mrb[0].mxu0
        %3006 = vmatprep.mubr.bf16.mxu0 0
        %3007 = vmatmul.mubr.bf16.gmra.mrb[0].mxu0 %v2858
        %v3008 = vpop.f32.mrb[0].mxu0
        %v3009 = vadd.f32 0.0, %v3008
        %v3010 = vpop.f32.mrb[0].mxu0
        %v3011 = vpop.f32.mrb[0].mxu0
        %v3012 = vadd.f32 0.0, %v3011
        %v3013 = vpop.f32.mrb[0].mxu0
        %3014 = vmatprep.mubr.bf16.mxu0 0
        %3015 = vmatmul.mubr.bf16.gmra.mrb[0].mxu0 %v2859
        %v3016 = vpop.f32.mrb[0].mxu0
        %v3017 = vadd.f32 0.0, %v3016
        %v3018 = vpop.f32.mrb[0].mxu0
        %v3019 = vpop.f32.mrb[0].mxu0
        %v3020 = vadd.f32 0.0, %v3019
        %v3021 = vpop.f32.mrb[0].mxu0
        %3022 = vmatprep.mubr.bf16.mxu0 0
        %3023 = vmatmul.mubr.bf16.gmra.mrb[0].mxu0 %v2860
        %v3024 = vpop.f32.mrb[0].mxu0
        %v3025 = vadd.f32 0.0, %v3024
        %v3026 = vpop.f32.mrb[0].mxu0
        %v3027 = vpop.f32.mrb[0].mxu0
        %v3028 = vadd.f32 0.0, %v3027
        %v3029 = vpop.f32.mrb[0].mxu0
        %3030 = vmatprep.mubr.bf16.mxu0 0
        %3031 = vmatmul.mubr.bf16.gmra.mrb[0].mxu0 %v2861
        %v3032 = vpop.f32.mrb[0].mxu0
        %v3033 = vadd.f32 0.0, %v3032
        %v3034 = vpop.f32.mrb[0].mxu0
        %v3035 = vpop.f32.mrb[0].mxu0
        %v3036 = vadd.f32 0.0, %v3035
        %v3037 = vpop.f32.mrb[0].mxu0
        %3038 = vmatprep.mubr.bf16.mxu0 0
        %3039 = vmatmul.mubr.bf16.gmra.mrb[0].mxu0 %v2862
        %v3040 = vpop.f32.mrb[0].mxu0
        %v3041 = vadd.f32 0.0, %v3040
        %v3042 = vpop.f32.mrb[0].mxu0
        %v3043 = vpop.f32.mrb[0].mxu0
        %v3044 = vadd.f32 0.0, %v3043
        %v3045 = vpop.f32.mrb[0].mxu0
        %3046 = vmatprep.mubr.bf16.mxu0 0
        %3047 = vmatmul.mubr.bf16.gmra.mrb[0].mxu0 %v2863
        %v3048 = vpop.f32.mrb[0].mxu0
        %v3049 = vadd.f32 0.0, %v3048
        %v3050 = vpop.f32.mrb[0].mxu0
        %v3051 = vpop.f32.mrb[0].mxu0
        %v3052 = vadd.f32 0.0, %v3051
        %v3053 = vpop.f32.mrb[0].mxu0
        %3054 = vmatprep.mubr.bf16.mxu0 0
        %3055 = vmatmul.mubr.bf16.gmra.mrb[0].mxu0 %v2864
        %v3056 = vpop.f32.mrb[0].mxu0
        %v3057 = vadd.f32 0.0, %v3056
        %v3058 = vpop.f32.mrb[0].mxu0
        %v3059 = vpop.f32.mrb[0].mxu0
        %v3060 = vadd.f32 0.0, %v3059
        %v3061 = vpop.f32.mrb[0].mxu0
        %3062 = vmatprep.mubr.bf16.mxu0 0
        %3063 = vmatmul.mubr.bf16.gmra.mrb[0].mxu0 %v2865
        %v3064 = vpop.f32.mrb[0].mxu0
        %v3065 = vadd.f32 0.0, %v3064
        %v3066 = vpop.f32.mrb[0].mxu0
        %v3067 = vpop.f32.mrb[0].mxu0
        %v3068 = vadd.f32 0.0, %v3067
        %v3069 = vpop.f32.mrb[0].mxu0
        %3070 = vmatprep.mubr.bf16.mxu0 0
        %3071 = vmatmul.mubr.bf16.gmra.mrb[0].mxu0 %v2866
        %v3072 = vpop.f32.mrb[0].mxu0
        %v3073 = vadd.f32 0.0, %v3072
        %v3074 = vpop.f32.mrb[0].mxu0
        %v3075 = vpop.f32.mrb[0].mxu0
        %v3076 = vadd.f32 0.0, %v3075
        %v3077 = vpop.f32.mrb[0].mxu0
        %3078 = vmatprep.mubr.bf16.mxu0 0
        %3079 = vmatmul.mubr.bf16.gmra.mrb[0].mxu0 %v2867
        %v3080 = vpop.f32.mrb[0].mxu0
        %v3081 = vadd.f32 0.0, %v3080
        %v3082 = vpop.f32.mrb[0].mxu0
        %v3083 = vpop.f32.mrb[0].mxu0
        %v3084 = vadd.f32 0.0, %v3083
        %v3085 = vpop.f32.mrb[0].mxu0
        %3086 = vmatprep.mubr.bf16.mxu0 0
        %3087 = vmatmul.mubr.bf16.gmra.mrb[0].mxu0 %v2868
        %v3088 = vpop.f32.mrb[0].mxu0
        %v3089 = vadd.f32 0.0, %v3088
        %v3090 = vpop.f32.mrb[0].mxu0
        %v3091 = vpop.f32.mrb[0].mxu0
        %v3092 = vadd.f32 0.0, %v3091
        %v3093 = vpop.f32.mrb[0].mxu0
        %3094 = vdwg.mxu0
        %v3095 = vadd.f32 %v2789, %v2969
        %v3096 = vadd.f32 %v2790, %v2972
        %v3097 = vadd.f32 %v2791, %v2977
        %v3098 = vadd.f32 %v2792, %v2980
        %v3099 = vadd.f32 %v2793, %v2985
        %v3100 = vadd.f32 %v2794, %v2988
        %v3101 = vadd.f32 %v2795, %v2993
        %v3102 = vadd.f32 %v2796, %v2996
        %v3103 = vadd.f32 %v2797, %v3001
        %v3104 = vadd.f32 %v2798, %v3004
        %v3105 = vadd.f32 %v2799, %v3009
        %v3106 = vadd.f32 %v2800, %v3012
        %v3107 = vadd.f32 %v2801, %v3017
        %v3108 = vadd.f32 %v2802, %v3020
        %v3109 = vadd.f32 %v2803, %v3025
        %v3110 = vadd.f32 %v2804, %v3028
        %v3111 = vadd.f32 %v2805, %v3033
        %v3112 = vadd.f32 %v2806, %v3036
        %v3113 = vadd.f32 %v2807, %v3041
        %v3114 = vadd.f32 %v2808, %v3044
        %v3115 = vadd.f32 %v2809, %v3049
        %v3116 = vadd.f32 %v2810, %v3052
        %v3117 = vadd.f32 %v2811, %v3057
        %v3118 = vadd.f32 %v2812, %v3060
        %v3119 = vadd.f32 %v2813, %v3065
        %v3120 = vadd.f32 %v2814, %v3068
        %v3121 = vadd.f32 %v2815, %v3073
        %v3122 = vadd.f32 %v2816, %v3076
        %v3123 = vadd.f32 %v2817, %v3081
        %v3124 = vadd.f32 %v2818, %v3084
        %v3125 = vadd.f32 %v2819, %v3089
        %v3126 = vadd.f32 %v2820, %v3092
        %v3127 = vld [vmem:[%s2] sm:$0x1]
        %v3129 = vlaneseq
        %v3130 = vshrl.u32 %v3129, 7
        %v3131 = vsub.s32 0, %v3130
        %v3132 = vrot.slane %v3127, %v3131
        %v3134 = vmul.f32 %v3095, %v3132
        %v3135 = vmul.f32 %v3096, %v3132
        %v3136 = vmul.f32 %v3097, %v3132
        %v3137 = vmul.f32 %v3098, %v3132
        %v3138 = vmul.f32 %v3099, %v3132
        %v3139 = vmul.f32 %v3100, %v3132
        %v3140 = vmul.f32 %v3101, %v3132
        %v3141 = vmul.f32 %v3102, %v3132
        %v3142 = vmul.f32 %v3103, %v3132
        %v3143 = vmul.f32 %v3104, %v3132
        %v3144 = vmul.f32 %v3105, %v3132
        %v3145 = vmul.f32 %v3106, %v3132
        %v3146 = vmul.f32 %v3107, %v3132
        %v3147 = vmul.f32 %v3108, %v3132
        %v3148 = vmul.f32 %v3109, %v3132
        %v3149 = vmul.f32 %v3110, %v3132
        %v3150 = vmul.f32 %v3111, %v3132
        %v3151 = vmul.f32 %v3112, %v3132
        %v3152 = vmul.f32 %v3113, %v3132
        %v3153 = vmul.f32 %v3114, %v3132
        %v3154 = vmul.f32 %v3115, %v3132
        %v3155 = vmul.f32 %v3116, %v3132
        %v3156 = vmul.f32 %v3117, %v3132
        %v3157 = vmul.f32 %v3118, %v3132
        %v3158 = vmul.f32 %v3119, %v3132
        %v3159 = vmul.f32 %v3120, %v3132
        %v3160 = vmul.f32 %v3121, %v3132
        %v3161 = vmul.f32 %v3122, %v3132
        %v3162 = vmul.f32 %v3123, %v3132
        %v3163 = vmul.f32 %v3124, %v3132
        %v3164 = vmul.f32 %v3125, %v3132
        %v3165 = vmul.f32 %v3126, %v3132
        %v3166 = vld [vmem:[%s3] sm:$0x1]
        %v3168 = vlaneseq
        %v3169 = vshrl.u32 %v3168, 7
        %v3170 = vsub.s32 0, %v3169
        %v3171 = vrot.slane %v3166, %v3170
        %v3173 = vadd.f32 %v3134, %v3171
        %v3174 = vadd.f32 %v3135, %v3171
        %v3175 = vadd.f32 %v3136, %v3171
        %v3176 = vadd.f32 %v3137, %v3171
        %v3177 = vadd.f32 %v3138, %v3171
        %v3178 = vadd.f32 %v3139, %v3171
        %v3179 = vadd.f32 %v3140, %v3171
        %v3180 = vadd.f32 %v3141, %v3171
        %v3181 = vadd.f32 %v3142, %v3171
        %v3182 = vadd.f32 %v3143, %v3171
        %v3183 = vadd.f32 %v3144, %v3171
        %v3184 = vadd.f32 %v3145, %v3171
        %v3185 = vadd.f32 %v3146, %v3171
        %v3186 = vadd.f32 %v3147, %v3171
        %v3187 = vadd.f32 %v3148, %v3171
        %v3188 = vadd.f32 %v3149, %v3171
        %v3189 = vadd.f32 %v3150, %v3171
        %v3190 = vadd.f32 %v3151, %v3171
        %v3191 = vadd.f32 %v3152, %v3171
        %v3192 = vadd.f32 %v3153, %v3171
        %v3193 = vadd.f32 %v3154, %v3171
        %v3194 = vadd.f32 %v3155, %v3171
        %v3195 = vadd.f32 %v3156, %v3171
        %v3196 = vadd.f32 %v3157, %v3171
        %v3197 = vadd.f32 %v3158, %v3171
        %v3198 = vadd.f32 %v3159, %v3171
        %v3199 = vadd.f32 %v3160, %v3171
        %v3200 = vadd.f32 %v3161, %v3171
        %v3201 = vadd.f32 %v3162, %v3171
        %v3202 = vadd.f32 %v3163, %v3171
        %v3203 = vadd.f32 %v3164, %v3171
        %v3204 = vadd.f32 %v3165, %v3171
        %v3205 = vmax.f32 %v3173, 0.0
        %v3206 = vmax.f32 %v3174, 0.0
        %v3207 = vmax.f32 %v3175, 0.0
        %v3208 = vmax.f32 %v3176, 0.0
        %v3209 = vmax.f32 %v3177, 0.0
        %v3210 = vmax.f32 %v3178, 0.0
        %v3211 = vmax.f32 %v3179, 0.0
        %v3212 = vmax.f32 %v3180, 0.0
        %v3213 = vmax.f32 %v3181, 0.0
        %v3214 = vmax.f32 %v3182, 0.0
        %v3215 = vmax.f32 %v3183, 0.0
        %v3216 = vmax.f32 %v3184, 0.0
        %v3217 = vmax.f32 %v3185, 0.0
        %v3218 = vmax.f32 %v3186, 0.0
        %v3219 = vmax.f32 %v3187, 0.0
        %v3220 = vmax.f32 %v3188, 0.0
        %v3221 = vmax.f32 %v3189, 0.0
        %v3222 = vmax.f32 %v3190, 0.0
        %v3223 = vmax.f32 %v3191, 0.0
        %v3224 = vmax.f32 %v3192, 0.0
        %v3225 = vmax.f32 %v3193, 0.0
        %v3226 = vmax.f32 %v3194, 0.0
        %v3227 = vmax.f32 %v3195, 0.0
        %v3228 = vmax.f32 %v3196, 0.0
        %v3229 = vmax.f32 %v3197, 0.0
        %v3230 = vmax.f32 %v3198, 0.0
        %v3231 = vmax.f32 %v3199, 0.0
        %v3232 = vmax.f32 %v3200, 0.0
        %v3233 = vmax.f32 %v3201, 0.0
        %v3234 = vmax.f32 %v3202, 0.0
        %v3235 = vmax.f32 %v3203, 0.0
        %v3236 = vmax.f32 %v3204, 0.0
        %v3237 = vld [vmem:[%s4] sm:$0x1]
        %v3239 = vlaneseq
        %v3240 = vshrl.u32 %v3239, 7
        %v3241 = vsub.s32 0, %v3240
        %v3242 = vrot.slane %v3237, %v3241
        %v3244 = vmul.f32 %v3205, %v3242
        %v3245 = vmul.f32 %v3206, %v3242
        %v3246 = vmul.f32 %v3207, %v3242
        %v3247 = vmul.f32 %v3208, %v3242
        %v3248 = vmul.f32 %v3209, %v3242
        %v3249 = vmul.f32 %v3210, %v3242
        %v3250 = vmul.f32 %v3211, %v3242
        %v3251 = vmul.f32 %v3212, %v3242
        %v3252 = vmul.f32 %v3213, %v3242
        %v3253 = vmul.f32 %v3214, %v3242
        %v3254 = vmul.f32 %v3215, %v3242
        %v3255 = vmul.f32 %v3216, %v3242
        %v3256 = vmul.f32 %v3217, %v3242
        %v3257 = vmul.f32 %v3218, %v3242
        %v3258 = vmul.f32 %v3219, %v3242
        %v3259 = vmul.f32 %v3220, %v3242
        %v3260 = vmul.f32 %v3221, %v3242
        %v3261 = vmul.f32 %v3222, %v3242
        %v3262 = vmul.f32 %v3223, %v3242
        %v3263 = vmul.f32 %v3224, %v3242
        %v3264 = vmul.f32 %v3225, %v3242
        %v3265 = vmul.f32 %v3226, %v3242
        %v3266 = vmul.f32 %v3227, %v3242
        %v3267 = vmul.f32 %v3228, %v3242
        %v3268 = vmul.f32 %v3229, %v3242
        %v3269 = vmul.f32 %v3230, %v3242
        %v3270 = vmul.f32 %v3231, %v3242
        %v3271 = vmul.f32 %v3232, %v3242
        %v3272 = vmul.f32 %v3233, %v3242
        %v3273 = vmul.f32 %v3234, %v3242
        %v3274 = vmul.f32 %v3235, %v3242
        %v3275 = vmul.f32 %v3236, %v3242
        %v3276 = vld [vmem:[%s5] sm:$0x1]
        %v3278 = vlaneseq
        %v3279 = vshrl.u32 %v3278, 7
        %v3280 = vsub.s32 0, %v3279
        %v3281 = vrot.slane %v3276, %v3280
        %v3283 = vadd.f32 %v3244, %v3281
        %v3284 = vadd.f32 %v3245, %v3281
        %v3285 = vadd.f32 %v3246, %v3281
        %v3286 = vadd.f32 %v3247, %v3281
        %v3287 = vadd.f32 %v3248, %v3281
        %v3288 = vadd.f32 %v3249, %v3281
        %v3289 = vadd.f32 %v3250, %v3281
        %v3290 = vadd.f32 %v3251, %v3281
        %v3291 = vadd.f32 %v3252, %v3281
        %v3292 = vadd.f32 %v3253, %v3281
        %v3293 = vadd.f32 %v3254, %v3281
        %v3294 = vadd.f32 %v3255, %v3281
        %v3295 = vadd.f32 %v3256, %v3281
        %v3296 = vadd.f32 %v3257, %v3281
        %v3297 = vadd.f32 %v3258, %v3281
        %v3298 = vadd.f32 %v3259, %v3281
        %v3299 = vadd.f32 %v3260, %v3281
        %v3300 = vadd.f32 %v3261, %v3281
        %v3301 = vadd.f32 %v3262, %v3281
        %v3302 = vadd.f32 %v3263, %v3281
        %v3303 = vadd.f32 %v3264, %v3281
        %v3304 = vadd.f32 %v3265, %v3281
        %v3305 = vadd.f32 %v3266, %v3281
        %v3306 = vadd.f32 %v3267, %v3281
        %v3307 = vadd.f32 %v3268, %v3281
        %v3308 = vadd.f32 %v3269, %v3281
        %v3309 = vadd.f32 %v3270, %v3281
        %v3310 = vadd.f32 %v3271, %v3281
        %v3311 = vadd.f32 %v3272, %v3281
        %v3312 = vadd.f32 %v3273, %v3281
        %v3313 = vadd.f32 %v3274, %v3281
        %v3314 = vadd.f32 %v3275, %v3281
        %v3315 = vmax.f32 %v3283, 0.0
        %v3316 = vmax.f32 %v3284, 0.0
        %v3317 = vmax.f32 %v3285, 0.0
        %v3318 = vmax.f32 %v3286, 0.0
        %v3319 = vmax.f32 %v3287, 0.0
        %v3320 = vmax.f32 %v3288, 0.0
        %v3321 = vmax.f32 %v3289, 0.0
        %v3322 = vmax.f32 %v3290, 0.0
        %v3323 = vmax.f32 %v3291, 0.0
        %v3324 = vmax.f32 %v3292, 0.0
        %v3325 = vmax.f32 %v3293, 0.0
        %v3326 = vmax.f32 %v3294, 0.0
        %v3327 = vmax.f32 %v3295, 0.0
        %v3328 = vmax.f32 %v3296, 0.0
        %v3329 = vmax.f32 %v3297, 0.0
        %v3330 = vmax.f32 %v3298, 0.0
        %v3331 = vmax.f32 %v3299, 0.0
        %v3332 = vmax.f32 %v3300, 0.0
        %v3333 = vmax.f32 %v3301, 0.0
        %v3334 = vmax.f32 %v3302, 0.0
        %v3335 = vmax.f32 %v3303, 0.0
        %v3336 = vmax.f32 %v3304, 0.0
        %v3337 = vmax.f32 %v3305, 0.0
        %v3338 = vmax.f32 %v3306, 0.0
        %v3339 = vmax.f32 %v3307, 0.0
        %v3340 = vmax.f32 %v3308, 0.0
        %v3341 = vmax.f32 %v3309, 0.0
        %v3342 = vmax.f32 %v3310, 0.0
        %v3343 = vmax.f32 %v3311, 0.0
        %v3344 = vmax.f32 %v3312, 0.0
        %v3345 = vmax.f32 %v3313, 0.0
        %v3346 = vmax.f32 %v3314, 0.0
        %3347 = vst [vmem:[%s284] sm:$0xff] %v3315
        %3348 = vst [vmem:[%s284 + $0x8] sm:$0xff] %v3316
        %3349 = vst [vmem:[%s284 + $0x10] sm:$0xff] %v3317
        %3350 = vst [vmem:[%s284 + $0x18] sm:$0xff] %v3318
        %3351 = vst [vmem:[%s284 + $0x20] sm:$0xff] %v3319
        %3352 = vst [vmem:[%s284 + $0x28] sm:$0xff] %v3320
        %3353 = vst [vmem:[%s284 + $0x30] sm:$0xff] %v3321
        %3354 = vst [vmem:[%s284 + $0x38] sm:$0xff] %v3322
        %3355 = vst [vmem:[%s284 + $0x40] sm:$0xff] %v3323
        %3356 = vst [vmem:[%s284 + $0x48] sm:$0xff] %v3324
        %3357 = vst [vmem:[%s284 + $0x50] sm:$0xff] %v3325
        %3358 = vst [vmem:[%s284 + $0x58] sm:$0xff] %v3326
        %3359 = vst [vmem:[%s284 + $0x60] sm:$0xff] %v3327
        %3360 = vst [vmem:[%s284 + $0x68] sm:$0xff] %v3328
        %3361 = vst [vmem:[%s284 + $0x70] sm:$0xff] %v3329
        %3362 = vst [vmem:[%s284 + $0x78] sm:$0xff] %v3330
        %3363 = vst [vmem:[%s284 + $0x80] sm:$0xff] %v3331
        %3364 = vst [vmem:[%s284 + $0x88] sm:$0xff] %v3332
        %3365 = vst [vmem:[%s284 + $0x90] sm:$0xff] %v3333
        %3366 = vst [vmem:[%s284 + $0x98] sm:$0xff] %v3334
        %3367 = vst [vmem:[%s284 + $0xa0] sm:$0xff] %v3335
        %3368 = vst [vmem:[%s284 + $0xa8] sm:$0xff] %v3336
        %3369 = vst [vmem:[%s284 + $0xb0] sm:$0xff] %v3337
        %3370 = vst [vmem:[%s284 + $0xb8] sm:$0xff] %v3338
        %3371 = vst [vmem:[%s284 + $0xc0] sm:$0xff] %v3339
        %3372 = vst [vmem:[%s284 + $0xc8] sm:$0xff] %v3340
        %3373 = vst [vmem:[%s284 + $0xd0] sm:$0xff] %v3341
        %3374 = vst [vmem:[%s284 + $0xd8] sm:$0xff] %v3342
        %3375 = vst [vmem:[%s284 + $0xe0] sm:$0xff] %v3343
        %3376 = vst [vmem:[%s284 + $0xe8] sm:$0xff] %v3344
        %3377 = vst [vmem:[%s284 + $0xf0] sm:$0xff] %v3345
        %3378 = vst [vmem:[%s284 + $0xf8] sm:$0xff] %v3346
        %s3379 = sand.u32 %s163, 1
        %s3380 = scalar_lea.sflag [#allocation5], %s3379
        %s3381 = sand.u32 %s163, 1
        %s3382 = smul.addr %s3381, 256
        %s3383 = scalar_lea.vmem [#allocation8], %s3382
        // Predicated region
        $region53: #{tpu_custom_call.1} parent=43 // pred_check
          %p3384 = pneg %p173
        $region54: #{tpu_custom_call.1} parent=43 // pred_check_branch
          %3386 = sbr.rel (%p3384) target = $region56
        $region55: #{tpu_custom_call.1} parent=43 // pred_region
          %s3388 = ssub.s32 4096, 4096
          %3389 = vsyncadd %s3380, %s3388
          %s3390 = smul.addr %s24, 32
          %s3391 = smul.addr %s3390, 128
          %s3392 = scalar_lea.hbm %s6, %s3391
          %s3393 = sshll.u32 %s3383, 4
          %s3394 = int_to_ptr.vmem [resolvable:$true] %s3393
          %3399 = dma.vmem_to_hbm [thread:$0]  %s3394, 4096, %s3392, %s3380, 128, 128, 8
        $region56: #{tpu_custom_call.1} parent=43 // pred_fallthru
          _
      $region44: #{tpu_custom_call.1} parent=5 // pred_fallthru
        _
      %p3400 = scmp.le.s32.totalorder 2, %s19
      // Predicated region
      $region57: #{tpu_custom_call.1} parent=5 // pred_check
        %p3401 = pneg %p3400
      $region58: #{tpu_custom_call.1} parent=5 // pred_check_branch
        %3403 = sbr.rel (%p3401) target = $region60
      $region59: #{tpu_custom_call.1} parent=5 // pred_region
        %s3404 = ssub.s32 %s19, 2
        // Predicated region
        $region61: #{tpu_custom_call.1} parent=59 // pred_check
          %p3405 = pneg %p179
        $region62: #{tpu_custom_call.1} parent=59 // pred_check_branch
          %3407 = sbr.rel (%p3405) target = $region64
        $region63: #{tpu_custom_call.1} parent=59 // pred_region
          %s3408 = sand.u32 %s164, 1
          %s3409 = scalar_lea.sflag [#allocation5], %s3408
          %s3410 = sand.u32 %s164, 1
          %s3411 = smul.addr %s3410, 256
          %s3412 = scalar_lea.vmem [#allocation8], %s3411
          %3413 = dma.done %s3409, 4096
        $region64: #{tpu_custom_call.1} parent=59 // pred_fallthru
          _
      $region60: #{tpu_custom_call.1} parent=5 // pred_fallthru
        _
    $region6: #{tpu_custom_call.1} parent=1 // loop_footer
      %s23 = sadd.s32 1, %s19
    $region7: #{tpu_custom_call.1} parent=1 // loop_footer_branch
      %18 = sbr.rel target = $region3
    $region8: #{tpu_custom_call.1} parent=1 // loop_exit
      _
    %3414 = vsyncpa [#allocation4], 1
    %s3415 = scalar_lea.sflag [#allocation4], 1
    %3416 = vsyncpa %s3415, 1
    %3417 = vsyncpa [#allocation7], 1
    %3418 = vsyncpa [#allocation5], 1
    %s3419 = scalar_lea.sflag [#allocation5], 1
    %3420 = vsyncpa %s3419, 1

</llo_original>
